<compile_context>
chip_gen: v5e
topology: v5e:2x2
jax: 0.10.0
libtpu: 0.0.40
codegen_flags: <defaults>
</compile_context>

<pallas_src>
import functools

import jax
import jax.numpy as jnp
from jax.experimental import pallas as pl
from jax.experimental.pallas import tpu as pltpu


_LRELU_SLOPE = 0.2
_BN_EPS = 1e-5
_TILE_M = 512          # rows per grid step (multiple of 8)


def _pick_tile(m, target=_TILE_M):
    """Pick an M tile and the padded M so the tile divides it exactly."""
    if m <= target:
        return m, m                                   # single block == full array
    m_pad = ((m + target - 1) // target) * target
    return target, m_pad


def _vmem_limit(*nbytes):
    """Generous scoped-VMEM limit (covers double-buffering), capped for v7x (64 MiB)."""
    est = 2 * sum(int(b) for b in nbytes)
    return int(min(max(est, 16 * 2**20), 64 * 2**20))


# ---------------------------------------------------------------------------
# Pallas kernels
# ---------------------------------------------------------------------------
def _conv_act_kernel(p_ref, w_ref, b_ref, o_ref, *, act):
    """(tm, K) bf16 @ (K, Cout) bf16 on the MXU (f32 acc) + bias + activation."""
    x = jnp.dot(p_ref[...], w_ref[...], preferred_element_type=jnp.float32)
    x = x + b_ref[...]
    if act == "lrelu":
        x = jnp.where(x >= 0.0, x, _LRELU_SLOPE * x)
    else:  # sigmoid: reciprocal on the EUP slot; clamp guards the approx overshoot
        x = pl.reciprocal(1.0 + jnp.exp(-x), approx=True)
        x = jnp.clip(x, 0.0, 1.0)
    o_ref[...] = x.astype(o_ref.dtype)


def _conv_stats_kernel(p_ref, w_ref, b_ref, o_ref, s_ref, *, m_real, tile_m):
    """Conv matmul + bias; additionally emits per-tile f32 (sum, sum_sq) per channel."""
    i = pl.program_id(0)
    x = jnp.dot(p_ref[...], w_ref[...], preferred_element_type=jnp.float32)
    x = x + b_ref[...]
    o_ref[...] = x.astype(o_ref.dtype)
    # Mask rows that are zero-padding so the BN batch statistics stay exact.
    rows = i * tile_m + jax.lax.broadcasted_iota(jnp.int32, x.shape, 0)
    xm = jnp.where(rows < m_real, x, 0.0)
    s = jnp.sum(xm, axis=0, keepdims=True)             # (1, Cout)  f32
    ss = jnp.sum(xm * xm, axis=0, keepdims=True)       # (1, Cout)  f32
    s_ref[...] = jnp.concatenate([s, ss], axis=0).reshape(s_ref.shape)


def _bn_lrelu_kernel(x_ref, scale_ref, shift_ref, o_ref):
    """Apply precomputed per-channel affine (folded BN) + leaky_relu."""
    y = x_ref[...].astype(jnp.float32) * scale_ref[...] + shift_ref[...]
    o_ref[...] = jnp.where(y >= 0.0, y, _LRELU_SLOPE * y).astype(o_ref.dtype)


# ---------------------------------------------------------------------------
# pallas_call wrappers
# ---------------------------------------------------------------------------
def conv_matmul_act(patches, w_mat, bias, *, act, out_dtype):
    """patches (M, K) bf16, w_mat (K, Cout) bf16, bias (1, Cout) f32 -> (M, Cout)."""
    m, k = patches.shape
    cout = w_mat.shape[1]
    tm, m_pad = _pick_tile(m)
    if m_pad != m:
        patches = jnp.pad(patches, ((0, m_pad - m), (0, 0)))
    out = pl.pallas_call(
        functools.partial(_conv_act_kernel, act=act),
        out_shape=jax.ShapeDtypeStruct((m_pad, cout), out_dtype),
        grid_spec=pltpu.PrefetchScalarGridSpec(
            num_scalar_prefetch=0,
            grid=(m_pad // tm,),
            in_specs=[
                pl.BlockSpec((tm, k), lambda i: (i, 0)),       # streamed patch tile
                pl.BlockSpec((k, cout), lambda i: (0, 0)),     # resident weight
                pl.BlockSpec((1, cout), lambda i: (0, 0)),     # resident bias
            ],
            out_specs=pl.BlockSpec((tm, cout), lambda i: (i, 0)),
        ),
        compiler_params=pltpu.CompilerParams(
            dimension_semantics=("parallel",),
            vmem_limit_bytes=_vmem_limit(
                tm * k * 2, k * cout * 2,
                tm * cout * jnp.dtype(out_dtype).itemsize, cout * 4)),
    )(patches, w_mat, bias)
    return out[:m]


def conv_matmul_stats(patches, w_mat, bias, *, out_dtype):
    """Conv matmul; returns (padded conv output, per-channel (sum, sum_sq))."""
    m, k = patches.shape
    cout = w_mat.shape[1]
    tm, m_pad = _pick_tile(m)
    if m_pad != m:
        patches = jnp.pad(patches, ((0, m_pad - m), (0, 0)))
    n_tiles = m_pad // tm
    out, part = pl.pallas_call(
        functools.partial(_conv_stats_kernel, m_real=m, tile_m=tm),
        out_shape=(jax.ShapeDtypeStruct((m_pad, cout), out_dtype),
                   jax.ShapeDtypeStruct((n_tiles, 2, cout), jnp.float32)),
        grid_spec=pltpu.PrefetchScalarGridSpec(
            num_scalar_prefetch=0,
            grid=(n_tiles,),
            in_specs=[
                pl.BlockSpec((tm, k), lambda i: (i, 0)),
                pl.BlockSpec((k, cout), lambda i: (0, 0)),
                pl.BlockSpec((1, cout), lambda i: (0, 0)),
            ],
            out_specs=(pl.BlockSpec((tm, cout), lambda i: (i, 0)),
                       pl.BlockSpec((1, 2, cout), lambda i: (i, 0, 0))),
        ),
        compiler_params=pltpu.CompilerParams(
            dimension_semantics=("parallel",),
            vmem_limit_bytes=_vmem_limit(
                tm * k * 2, k * cout * 2,
                tm * cout * jnp.dtype(out_dtype).itemsize, 2 * cout * 4)),
    )(patches, w_mat, bias)
    return out, jnp.sum(part, axis=0)          # (m_pad, Cout), (2, Cout)


def bn_lrelu(y_pad, scale, shift, *, m_real, out_dtype):
    """y_pad (M_pad, Cout), scale/shift (1, Cout) f32 -> leaky_relu(y*scale+shift)[:M]."""
    m_pad, cout = y_pad.shape
    tm, m_pad2 = _pick_tile(m_pad)
    assert m_pad2 == m_pad
    out = pl.pallas_call(
        _bn_lrelu_kernel,
        out_shape=jax.ShapeDtypeStruct((m_pad, cout), out_dtype),
        grid_spec=pltpu.PrefetchScalarGridSpec(
            num_scalar_prefetch=0,
            grid=(m_pad // tm,),
            in_specs=[pl.BlockSpec((tm, cout), lambda i: (i, 0)),
                      pl.BlockSpec((1, cout), lambda i: (0, 0)),
                      pl.BlockSpec((1, cout), lambda i: (0, 0))],
            out_specs=pl.BlockSpec((tm, cout), lambda i: (i, 0)),
        ),
        compiler_params=pltpu.CompilerParams(
            dimension_semantics=("parallel",),
            vmem_limit_bytes=_vmem_limit(
                tm * cout * jnp.dtype(y_pad.dtype).itemsize,
                tm * cout * jnp.dtype(out_dtype).itemsize, 2 * cout * 4)),
    )(y_pad, scale, shift)
    return out[:m_real]


# ---------------------------------------------------------------------------
# JAX glue: NHWC im2col (pad / strided slice / reshape only) and layer driver
# ---------------------------------------------------------------------------
def im2col_nhwc(x, k, stride, pad):
    """x: (N, H, W, C) -> patches (N*Ho*Wo, k*k*C); column order (kh, kw, c)."""
    n, h, w, c = x.shape
    xp = jnp.pad(x, ((0, 0), (pad, pad), (pad, pad), (0, 0)))
    ho = (h + 2 * pad - k) // stride + 1
    wo = (w + 2 * pad - k) // stride + 1
    cols = []
    for kh in range(k):
        for kw in range(k):
            cols.append(xp[:, kh:kh + stride * ho:stride,
                            kw:kw + stride * wo:stride, :])
    patches = jnp.stack(cols, axis=3)                    # (n, ho, wo, k*k, c)
    patches = patches.reshape(n * ho * wo, k * k * c)
    return patches, ho, wo


def conv_block(x_nhwc, w, b, gamma, beta, *, stride, pad, use_bn, act):
    """x: (N, H, W, Cin) bf16, w: PyTorch (Cout, Cin, k, k) -> (N, Ho, Wo, Cout)."""
    n = x_nhwc.shape[0]
    cout, cin, k, _ = w.shape
    patches, ho, wo = im2col_nhwc(x_nhwc, k, stride, pad)      # bf16
    m = patches.shape[0]
    # weight columns ordered (kh, kw, cin) to match im2col column layout
    w_mat = jnp.transpose(w, (2, 3, 1, 0)).reshape(k * k * cin, cout).astype(jnp.bfloat16)
    bias = b.astype(jnp.float32).reshape(1, cout)

    if use_bn:
        y_pad, sums = conv_matmul_stats(patches, w_mat, bias, out_dtype=jnp.bfloat16)
        mean = sums[0] / m
        var = jnp.maximum(sums[1] / m - mean * mean, 0.0)      # biased var (training BN)
        scale = gamma.astype(jnp.float32) * jax.lax.rsqrt(var + _BN_EPS)
        shift = beta.astype(jnp.float32) - mean * scale
        out = bn_lrelu(y_pad, scale.reshape(1, cout), shift.reshape(1, cout),
                       m_real=m, out_dtype=jnp.bfloat16)
    else:
        out_dtype = jnp.float32 if act == "sigmoid" else jnp.bfloat16
        out = conv_matmul_act(patches, w_mat, bias, act=act, out_dtype=out_dtype)
    return out.reshape(n, ho, wo, cout)


# ---------------------------------------------------------------------------
# DCDiscriminator forward (spectral_norm=False branch)
# ---------------------------------------------------------------------------
def init_params(key, d):
    def conv_p(k_, cin, cout, ksz=4, std=0.02):
        w = jax.random.normal(k_, (cout, cin, ksz, ksz), jnp.float32) * std
        return w, jnp.zeros((cout,), jnp.float32)

    ks = jax.random.split(key, 5)
    p = {
        "conv1": conv_p(ks[0], 1, d),
        "conv2": conv_p(ks[1], d, 2 * d),
        "conv3": conv_p(ks[2], 2 * d, 4 * d),
        "conv4": conv_p(ks[3], 4 * d, 8 * d),
        "conv5": conv_p(ks[4], 8 * d, 1),
    }
    # BatchNorm2d default init: gamma=1, beta=0
    for name, c in (("bn2", 2 * d), ("bn3", 4 * d), ("bn4", 8 * d)):
        p[name] = (jnp.ones((c,), jnp.float32), jnp.zeros((c,), jnp.float32))
    return p


def dc_discriminator_forward(params, x_nchw):
    # one layout transpose in, one out; NHWC bf16 between layers
    x = jnp.transpose(x_nchw, (0, 2, 3, 1)).astype(jnp.bfloat16)

    w, b = params["conv1"]
    x = conv_block(x, w, b, None, None, stride=2, pad=1, use_bn=False, act="lrelu")

    w, b = params["conv2"]; g, be = params["bn2"]
    x = conv_block(x, w, b, g, be, stride=2, pad=1, use_bn=True, act="lrelu")

    w, b = params["conv3"]; g, be = params["bn3"]
    x = conv_block(x, w, b, g, be, stride=2, pad=1, use_bn=True, act="lrelu")

    w, b = params["conv4"]; g, be = params["bn4"]
    x = conv_block(x, w, b, g, be, stride=2, pad=1, use_bn=True, act="lrelu")

    w, b = params["conv5"]
    x = conv_block(x, w, b, None, None, stride=1, pad=0, use_bn=False, act="sigmoid")

    return jnp.transpose(x, (0, 3, 1, 2))      # back to NCHW, f32


if __name__ == "__main__":
    key = jax.random.PRNGKey(0)
    k_param, k_in = jax.random.split(key)

    d = 4                     # small stand-in for d=128
    # DCGAN discriminator expects 64x64 single-channel input (64->32->16->8->4->1)
    x = jax.random.normal(k_in, (2, 1, 64, 64), jnp.float32)
    params = init_params(k_param, d)

    fwd = jax.jit(dc_discriminator_forward)
    out = jax.block_until_ready(fwd(params, x))

    assert out.shape == (2, 1, 1, 1), out.shape
    assert out.dtype == jnp.float32, out.dtype
    assert bool(jnp.all((out >= 0.0) & (out <= 1.0)))
    print("KERNEL_OK")
</pallas_src>

<mosaic_0001>
module attributes {stable_mosaic.version = 11 : i64} {
  func.func @_conv_act_kernel(%arg0: i32, %arg1: memref<512x16xbf16, #tpu.memory_space<vmem>>, %arg2: memref<16x4xbf16, #tpu.memory_space<vmem>>, %arg3: memref<1x4xf32, #tpu.memory_space<vmem>>, %arg4: memref<512x4xbf16, #tpu.memory_space<vmem>>) attributes {dimension_semantics = [#tpu.dimension_semantics<parallel>], iteration_bounds = array<i64: 4>, scalar_prefetch = 0 : i64, scratch_operands = 0 : i64, tpu.core_type = #tpu.core_type<tc>, window_params = [{transform_indices = @transform_0, window_bounds = array<i64: 512, 16>}, {pipeline_mode = #tpu.pipeline_mode<synchronous>, transform_indices = @transform_1, window_bounds = array<i64: 16, 4>}, {pipeline_mode = #tpu.pipeline_mode<synchronous>, transform_indices = @transform_2, window_bounds = array<i64: 1, 4>}, {transform_indices = @transform_3, window_bounds = array<i64: 512, 4>}]} {
    %c0 = arith.constant 0 : index
    %c0_0 = arith.constant 0 : index
    %0 = vector.load %arg1[%c0, %c0_0] : memref<512x16xbf16, #tpu.memory_space<vmem>>, vector<512x16xbf16>
    %c0_1 = arith.constant 0 : index
    %c0_2 = arith.constant 0 : index
    %1 = vector.load %arg2[%c0_1, %c0_2] : memref<16x4xbf16, #tpu.memory_space<vmem>>, vector<16x4xbf16>
    %cst = arith.constant dense<0.000000e+00> : vector<512x4xf32>
    %2 = tpu.matmul %0, %1, %cst {dimension_numbers = #tpu.dot_dimension_numbers<[1], [0], [0], [1], [0, 0, 1, 1], [], []>} : vector<512x16xbf16>, vector<16x4xbf16>, vector<512x4xf32> -> vector<512x4xf32>
    %c0_3 = arith.constant 0 : index
    %c0_4 = arith.constant 0 : index
    %3 = vector.load %arg3[%c0_3, %c0_4] : memref<1x4xf32, #tpu.memory_space<vmem>>, vector<1x4xf32>
    %4 = vector.broadcast %3 : vector<1x4xf32> to vector<512x4xf32>
    %5 = arith.addf %2, %4 : vector<512x4xf32>
    %cst_5 = arith.constant 0.000000e+00 : f32
    %6 = vector.broadcast %cst_5 : f32 to vector<512x4xf32>
    %7 = arith.cmpf oge, %5, %6 : vector<512x4xf32>
    %cst_6 = arith.constant 2.000000e-01 : f32
    %8 = vector.broadcast %cst_6 : f32 to vector<512x4xf32>
    %9 = arith.mulf %8, %5 : vector<512x4xf32>
    %10 = arith.select %7, %5, %9 : vector<512x4xi1>, vector<512x4xf32>
    %11 = arith.truncf %10 : vector<512x4xf32> to vector<512x4xbf16>
    %c0_7 = arith.constant 0 : index
    %c0_8 = arith.constant 0 : index
    %12 = vector.load %arg4[%c0_7, %c0_8] : memref<512x4xbf16, #tpu.memory_space<vmem>>, vector<512x4xbf16>
    tpu.vector_store %arg4[%c0_7, %c0_8], %11 {strides = array<i32>} : memref<512x4xbf16, #tpu.memory_space<vmem>>, vector<512x4xbf16>,
    return
  }
  func.func @transform_0(%arg0: i32) -> (i32, i32) {
    %c0_i32 = arith.constant 0 : i32
    %c0_i32_0 = arith.constant 0 : i32
    return %arg0, %c0_i32 : i32, i32
  }
  func.func @transform_1(%arg0: i32) -> (i32, i32) {
    %c0_i32 = arith.constant 0 : i32
    %c0_i32_0 = arith.constant 0 : i32
    %c0_i32_1 = arith.constant 0 : i32
    return %c0_i32, %c0_i32_0 : i32, i32
  }
  func.func @transform_2(%arg0: i32) -> (i32, i32) {
    %c0_i32 = arith.constant 0 : i32
    %c0_i32_0 = arith.constant 0 : i32
    %c0_i32_1 = arith.constant 0 : i32
    return %c0_i32, %c0_i32_0 : i32, i32
  }
  func.func @transform_3(%arg0: i32) -> (i32, i32) {
    %c0_i32 = arith.constant 0 : i32
    %c0_i32_0 = arith.constant 0 : i32
    return %arg0, %c0_i32 : i32, i32
  }
}

module attributes {stable_mosaic.version = 11 : i64} {
  func.func @_conv_stats_kernel(%arg0: i32, %arg1: memref<512x64xbf16, #tpu.memory_space<vmem>>, %arg2: memref<64x8xbf16, #tpu.memory_space<vmem>>, %arg3: memref<1x8xf32, #tpu.memory_space<vmem>>, %arg4: memref<512x8xbf16, #tpu.memory_space<vmem>>, %arg5: memref<1x2x8xf32, #tpu.memory_space<vmem>>) attributes {dimension_semantics = [#tpu.dimension_semantics<parallel>], iteration_bounds = array<i64: 1>, scalar_prefetch = 0 : i64, scratch_operands = 0 : i64, tpu.core_type = #tpu.core_type<tc>, window_params = [{transform_indices = @transform_0, window_bounds = array<i64: 512, 64>}, {pipeline_mode = #tpu.pipeline_mode<synchronous>, transform_indices = @transform_1, window_bounds = array<i64: 64, 8>}, {pipeline_mode = #tpu.pipeline_mode<synchronous>, transform_indices = @transform_2, window_bounds = array<i64: 1, 8>}, {transform_indices = @transform_3, window_bounds = array<i64: 512, 8>}, {transform_indices = @transform_4, window_bounds = array<i64: 1, 2, 8>}]} {
    %c0 = arith.constant 0 : index
    %c0_0 = arith.constant 0 : index
    %0 = vector.load %arg1[%c0, %c0_0] : memref<512x64xbf16, #tpu.memory_space<vmem>>, vector<512x64xbf16>
    %c0_1 = arith.constant 0 : index
    %c0_2 = arith.constant 0 : index
    %1 = vector.load %arg2[%c0_1, %c0_2] : memref<64x8xbf16, #tpu.memory_space<vmem>>, vector<64x8xbf16>
    %cst = arith.constant dense<0.000000e+00> : vector<512x8xf32>
    %2 = tpu.matmul %0, %1, %cst {dimension_numbers = #tpu.dot_dimension_numbers<[1], [0], [0], [1], [0, 0, 1, 1], [], []>} : vector<512x64xbf16>, vector<64x8xbf16>, vector<512x8xf32> -> vector<512x8xf32>
    %c0_3 = arith.constant 0 : index
    %c0_4 = arith.constant 0 : index
    %3 = vector.load %arg3[%c0_3, %c0_4] : memref<1x8xf32, #tpu.memory_space<vmem>>, vector<1x8xf32>
    %4 = vector.broadcast %3 : vector<1x8xf32> to vector<512x8xf32>
    %5 = arith.addf %2, %4 : vector<512x8xf32>
    %6 = arith.truncf %5 : vector<512x8xf32> to vector<512x8xbf16>
    %c0_5 = arith.constant 0 : index
    %c0_6 = arith.constant 0 : index
    %7 = vector.load %arg4[%c0_5, %c0_6] : memref<512x8xbf16, #tpu.memory_space<vmem>>, vector<512x8xbf16>
    tpu.vector_store %arg4[%c0_5, %c0_6], %6 {strides = array<i32>} : memref<512x8xbf16, #tpu.memory_space<vmem>>, vector<512x8xbf16>,
    %c512_i32 = arith.constant 512 : i32
    %8 = arith.muli %arg0, %c512_i32 : i32
    %9 = tpu.iota {dimensions = array<i32: 0>} : vector<512x8xi32>
    %10 = vector.broadcast %8 : i32 to vector<512x8xi32>
    %11 = arith.addi %10, %9 : vector<512x8xi32>
    %c512_i32_7 = arith.constant 512 : i32
    %12 = vector.broadcast %c512_i32_7 : i32 to vector<512x8xi32>
    %13 = arith.cmpi slt, %11, %12 : vector<512x8xi32>
    %cst_8 = arith.constant 0.000000e+00 : f32
    %14 = vector.broadcast %cst_8 : f32 to vector<512x8xf32>
    %15 = arith.select %13, %5, %14 : vector<512x8xi1>, vector<512x8xf32>
    %cst_9 = arith.constant dense<0.000000e+00> : vector<8xf32>
    %16 = vector.multi_reduction <add>, %15, %cst_9 [0] : vector<512x8xf32> to vector<8xf32>
    %17 = vector.shape_cast %16 : vector<8xf32> to vector<1x8xf32>
    %18 = arith.mulf %15, %15 : vector<512x8xf32>
    %cst_10 = arith.constant dense<0.000000e+00> : vector<8xf32>
    %19 = vector.multi_reduction <add>, %18, %cst_10 [0] : vector<512x8xf32> to vector<8xf32>
    %20 = vector.shape_cast %19 : vector<8xf32> to vector<1x8xf32>
    %21 = tpu.concatenate %17, %20 in 0 : vector<1x8xf32>, vector<1x8xf32> -> vector<2x8xf32>
    %22 = vector.shape_cast %21 : vector<2x8xf32> to vector<1x2x8xf32>
    %c0_11 = arith.constant 0 : index
    %c0_12 = arith.constant 0 : index
    %c0_13 = arith.constant 0 : index
    %23 = vector.load %arg5[%c0_11, %c0_12, %c0_13] : memref<1x2x8xf32, #tpu.memory_space<vmem>>, vector<1x2x8xf32>
    tpu.vector_store %arg5[%c0_11, %c0_12, %c0_13], %22 {strides = array<i32>} : memref<1x2x8xf32, #tpu.memory_space<vmem>>, vector<1x2x8xf32>,
    return
  }
  func.func @transform_0(%arg0: i32) -> (i32, i32) {
    %c0_i32 = arith.constant 0 : i32
    %c0_i32_0 = arith.constant 0 : i32
    return %arg0, %c0_i32 : i32, i32
  }
  func.func @transform_1(%arg0: i32) -> (i32, i32) {
    %c0_i32 = arith.constant 0 : i32
    %c0_i32_0 = arith.constant 0 : i32
    %c0_i32_1 = arith.constant 0 : i32
    return %c0_i32, %c0_i32_0 : i32, i32
  }
  func.func @transform_2(%arg0: i32) -> (i32, i32) {
    %c0_i32 = arith.constant 0 : i32
    %c0_i32_0 = arith.constant 0 : i32
    %c0_i32_1 = arith.constant 0 : i32
    return %c0_i32, %c0_i32_0 : i32, i32
  }
  func.func @transform_3(%arg0: i32) -> (i32, i32) {
    %c0_i32 = arith.constant 0 : i32
    %c0_i32_0 = arith.constant 0 : i32
    return %arg0, %c0_i32 : i32, i32
  }
  func.func @transform_4(%arg0: i32) -> (i32, i32, i32) {
    %c0_i32 = arith.constant 0 : i32
    %c0_i32_0 = arith.constant 0 : i32
    %c0_i32_1 = arith.constant 0 : i32
    return %arg0, %c0_i32, %c0_i32_0 : i32, i32, i32
  }
}

module attributes {stable_mosaic.version = 11 : i64} {
  func.func @_bn_lrelu_kernel(%arg0: i32, %arg1: memref<512x8xbf16, #tpu.memory_space<vmem>>, %arg2: memref<1x8xf32, #tpu.memory_space<vmem>>, %arg3: memref<1x8xf32, #tpu.memory_space<vmem>>, %arg4: memref<512x8xbf16, #tpu.memory_space<vmem>>) attributes {dimension_semantics = [#tpu.dimension_semantics<parallel>], iteration_bounds = array<i64: 1>, scalar_prefetch = 0 : i64, scratch_operands = 0 : i64, tpu.core_type = #tpu.core_type<tc>, window_params = [{transform_indices = @transform_0, window_bounds = array<i64: 512, 8>}, {pipeline_mode = #tpu.pipeline_mode<synchronous>, transform_indices = @transform_1, window_bounds = array<i64: 1, 8>}, {pipeline_mode = #tpu.pipeline_mode<synchronous>, transform_indices = @transform_2, window_bounds = array<i64: 1, 8>}, {transform_indices = @transform_3, window_bounds = array<i64: 512, 8>}]} {
    %c0 = arith.constant 0 : index
    %c0_0 = arith.constant 0 : index
    %0 = vector.load %arg1[%c0, %c0_0] : memref<512x8xbf16, #tpu.memory_space<vmem>>, vector<512x8xbf16>
    %1 = arith.extf %0 : vector<512x8xbf16> to vector<512x8xf32>
    %c0_1 = arith.constant 0 : index
    %c0_2 = arith.constant 0 : index
    %2 = vector.load %arg2[%c0_1, %c0_2] : memref<1x8xf32, #tpu.memory_space<vmem>>, vector<1x8xf32>
    %3 = vector.broadcast %2 : vector<1x8xf32> to vector<512x8xf32>
    %4 = arith.mulf %1, %3 : vector<512x8xf32>
    %c0_3 = arith.constant 0 : index
    %c0_4 = arith.constant 0 : index
    %5 = vector.load %arg3[%c0_3, %c0_4] : memref<1x8xf32, #tpu.memory_space<vmem>>, vector<1x8xf32>
    %6 = vector.broadcast %5 : vector<1x8xf32> to vector<512x8xf32>
    %7 = arith.addf %4, %6 : vector<512x8xf32>
    %cst = arith.constant 0.000000e+00 : f32
    %8 = vector.broadcast %cst : f32 to vector<512x8xf32>
    %9 = arith.cmpf oge, %7, %8 : vector<512x8xf32>
    %cst_5 = arith.constant 2.000000e-01 : f32
    %10 = vector.broadcast %cst_5 : f32 to vector<512x8xf32>
    %11 = arith.mulf %10, %7 : vector<512x8xf32>
    %12 = arith.select %9, %7, %11 : vector<512x8xi1>, vector<512x8xf32>
    %13 = arith.truncf %12 : vector<512x8xf32> to vector<512x8xbf16>
    %c0_6 = arith.constant 0 : index
    %c0_7 = arith.constant 0 : index
    %14 = vector.load %arg4[%c0_6, %c0_7] : memref<512x8xbf16, #tpu.memory_space<vmem>>, vector<512x8xbf16>
    tpu.vector_store %arg4[%c0_6, %c0_7], %13 {strides = array<i32>} : memref<512x8xbf16, #tpu.memory_space<vmem>>, vector<512x8xbf16>,
    return
  }
  func.func @transform_0(%arg0: i32) -> (i32, i32) {
    %c0_i32 = arith.constant 0 : i32
    %c0_i32_0 = arith.constant 0 : i32
    return %arg0, %c0_i32 : i32, i32
  }
  func.func @transform_1(%arg0: i32) -> (i32, i32) {
    %c0_i32 = arith.constant 0 : i32
    %c0_i32_0 = arith.constant 0 : i32
    %c0_i32_1 = arith.constant 0 : i32
    return %c0_i32, %c0_i32_0 : i32, i32
  }
  func.func @transform_2(%arg0: i32) -> (i32, i32) {
    %c0_i32 = arith.constant 0 : i32
    %c0_i32_0 = arith.constant 0 : i32
    %c0_i32_1 = arith.constant 0 : i32
    return %c0_i32, %c0_i32_0 : i32, i32
  }
  func.func @transform_3(%arg0: i32) -> (i32, i32) {
    %c0_i32 = arith.constant 0 : i32
    %c0_i32_0 = arith.constant 0 : i32
    return %arg0, %c0_i32 : i32, i32
  }
}

module attributes {stable_mosaic.version = 11 : i64} {
  func.func @_conv_stats_kernel(%arg0: i32, %arg1: memref<128x128xbf16, #tpu.memory_space<vmem>>, %arg2: memref<128x16xbf16, #tpu.memory_space<vmem>>, %arg3: memref<1x16xf32, #tpu.memory_space<vmem>>, %arg4: memref<128x16xbf16, #tpu.memory_space<vmem>>, %arg5: memref<1x2x16xf32, #tpu.memory_space<vmem>>) attributes {dimension_semantics = [#tpu.dimension_semantics<parallel>], iteration_bounds = array<i64: 1>, scalar_prefetch = 0 : i64, scratch_operands = 0 : i64, tpu.core_type = #tpu.core_type<tc>, window_params = [{transform_indices = @transform_0, window_bounds = array<i64: 128, 128>}, {pipeline_mode = #tpu.pipeline_mode<synchronous>, transform_indices = @transform_1, window_bounds = array<i64: 128, 16>}, {pipeline_mode = #tpu.pipeline_mode<synchronous>, transform_indices = @transform_2, window_bounds = array<i64: 1, 16>}, {transform_indices = @transform_3, window_bounds = array<i64: 128, 16>}, {transform_indices = @transform_4, window_bounds = array<i64: 1, 2, 16>}]} {
    %c0 = arith.constant 0 : index
    %c0_0 = arith.constant 0 : index
    %0 = vector.load %arg1[%c0, %c0_0] : memref<128x128xbf16, #tpu.memory_space<vmem>>, vector<128x128xbf16>
    %c0_1 = arith.constant 0 : index
    %c0_2 = arith.constant 0 : index
    %1 = vector.load %arg2[%c0_1, %c0_2] : memref<128x16xbf16, #tpu.memory_space<vmem>>, vector<128x16xbf16>
    %cst = arith.constant dense<0.000000e+00> : vector<128x16xf32>
    %2 = tpu.matmul %0, %1, %cst {dimension_numbers = #tpu.dot_dimension_numbers<[1], [0], [0], [1], [0, 0, 1, 1], [], []>} : vector<128x128xbf16>, vector<128x16xbf16>, vector<128x16xf32> -> vector<128x16xf32>
    %c0_3 = arith.constant 0 : index
    %c0_4 = arith.constant 0 : index
    %3 = vector.load %arg3[%c0_3, %c0_4] : memref<1x16xf32, #tpu.memory_space<vmem>>, vector<1x16xf32>
    %4 = vector.broadcast %3 : vector<1x16xf32> to vector<128x16xf32>
    %5 = arith.addf %2, %4 : vector<128x16xf32>
    %6 = arith.truncf %5 : vector<128x16xf32> to vector<128x16xbf16>
    %c0_5 = arith.constant 0 : index
    %c0_6 = arith.constant 0 : index
    %7 = vector.load %arg4[%c0_5, %c0_6] : memref<128x16xbf16, #tpu.memory_space<vmem>>, vector<128x16xbf16>
    tpu.vector_store %arg4[%c0_5, %c0_6], %6 {strides = array<i32>} : memref<128x16xbf16, #tpu.memory_space<vmem>>, vector<128x16xbf16>,
    %c128_i32 = arith.constant 128 : i32
    %8 = arith.muli %arg0, %c128_i32 : i32
    %9 = tpu.iota {dimensions = array<i32: 0>} : vector<128x16xi32>
    %10 = vector.broadcast %8 : i32 to vector<128x16xi32>
    %11 = arith.addi %10, %9 : vector<128x16xi32>
    %c128_i32_7 = arith.constant 128 : i32
    %12 = vector.broadcast %c128_i32_7 : i32 to vector<128x16xi32>
    %13 = arith.cmpi slt, %11, %12 : vector<128x16xi32>
    %cst_8 = arith.constant 0.000000e+00 : f32
    %14 = vector.broadcast %cst_8 : f32 to vector<128x16xf32>
    %15 = arith.select %13, %5, %14 : vector<128x16xi1>, vector<128x16xf32>
    %cst_9 = arith.constant dense<0.000000e+00> : vector<16xf32>
    %16 = vector.multi_reduction <add>, %15, %cst_9 [0] : vector<128x16xf32> to vector<16xf32>
    %17 = vector.shape_cast %16 : vector<16xf32> to vector<1x16xf32>
    %18 = arith.mulf %15, %15 : vector<128x16xf32>
    %cst_10 = arith.constant dense<0.000000e+00> : vector<16xf32>
    %19 = vector.multi_reduction <add>, %18, %cst_10 [0] : vector<128x16xf32> to vector<16xf32>
    %20 = vector.shape_cast %19 : vector<16xf32> to vector<1x16xf32>
    %21 = tpu.concatenate %17, %20 in 0 : vector<1x16xf32>, vector<1x16xf32> -> vector<2x16xf32>
    %22 = vector.shape_cast %21 : vector<2x16xf32> to vector<1x2x16xf32>
    %c0_11 = arith.constant 0 : index
    %c0_12 = arith.constant 0 : index
    %c0_13 = arith.constant 0 : index
    %23 = vector.load %arg5[%c0_11, %c0_12, %c0_13] : memref<1x2x16xf32, #tpu.memory_space<vmem>>, vector<1x2x16xf32>
    tpu.vector_store %arg5[%c0_11, %c0_12, %c0_13], %22 {strides = array<i32>} : memref<1x2x16xf32, #tpu.memory_space<vmem>>, vector<1x2x16xf32>,
    return
  }
  func.func @transform_0(%arg0: i32) -> (i32, i32) {
    %c0_i32 = arith.constant 0 : i32
    %c0_i32_0 = arith.constant 0 : i32
    return %arg0, %c0_i32 : i32, i32
  }
  func.func @transform_1(%arg0: i32) -> (i32, i32) {
    %c0_i32 = arith.constant 0 : i32
    %c0_i32_0 = arith.constant 0 : i32
    %c0_i32_1 = arith.constant 0 : i32
    return %c0_i32, %c0_i32_0 : i32, i32
  }
  func.func @transform_2(%arg0: i32) -> (i32, i32) {
    %c0_i32 = arith.constant 0 : i32
    %c0_i32_0 = arith.constant 0 : i32
    %c0_i32_1 = arith.constant 0 : i32
    return %c0_i32, %c0_i32_0 : i32, i32
  }
  func.func @transform_3(%arg0: i32) -> (i32, i32) {
    %c0_i32 = arith.constant 0 : i32
    %c0_i32_0 = arith.constant 0 : i32
    return %arg0, %c0_i32 : i32, i32
  }
  func.func @transform_4(%arg0: i32) -> (i32, i32, i32) {
    %c0_i32 = arith.constant 0 : i32
    %c0_i32_0 = arith.constant 0 : i32
    %c0_i32_1 = arith.constant 0 : i32
    return %arg0, %c0_i32, %c0_i32_0 : i32, i32, i32
  }
}

module attributes {stable_mosaic.version = 11 : i64} {
  func.func @_bn_lrelu_kernel(%arg0: i32, %arg1: memref<128x16xbf16, #tpu.memory_space<vmem>>, %arg2: memref<1x16xf32, #tpu.memory_space<vmem>>, %arg3: memref<1x16xf32, #tpu.memory_space<vmem>>, %arg4: memref<128x16xbf16, #tpu.memory_space<vmem>>) attributes {dimension_semantics = [#tpu.dimension_semantics<parallel>], iteration_bounds = array<i64: 1>, scalar_prefetch = 0 : i64, scratch_operands = 0 : i64, tpu.core_type = #tpu.core_type<tc>, window_params = [{transform_indices = @transform_0, window_bounds = array<i64: 128, 16>}, {pipeline_mode = #tpu.pipeline_mode<synchronous>, transform_indices = @transform_1, window_bounds = array<i64: 1, 16>}, {pipeline_mode = #tpu.pipeline_mode<synchronous>, transform_indices = @transform_2, window_bounds = array<i64: 1, 16>}, {transform_indices = @transform_3, window_bounds = array<i64: 128, 16>}]} {
    %c0 = arith.constant 0 : index
    %c0_0 = arith.constant 0 : index
    %0 = vector.load %arg1[%c0, %c0_0] : memref<128x16xbf16, #tpu.memory_space<vmem>>, vector<128x16xbf16>
    %1 = arith.extf %0 : vector<128x16xbf16> to vector<128x16xf32>
    %c0_1 = arith.constant 0 : index
    %c0_2 = arith.constant 0 : index
    %2 = vector.load %arg2[%c0_1, %c0_2] : memref<1x16xf32, #tpu.memory_space<vmem>>, vector<1x16xf32>
    %3 = vector.broadcast %2 : vector<1x16xf32> to vector<128x16xf32>
    %4 = arith.mulf %1, %3 : vector<128x16xf32>
    %c0_3 = arith.constant 0 : index
    %c0_4 = arith.constant 0 : index
    %5 = vector.load %arg3[%c0_3, %c0_4] : memref<1x16xf32, #tpu.memory_space<vmem>>, vector<1x16xf32>
    %6 = vector.broadcast %5 : vector<1x16xf32> to vector<128x16xf32>
    %7 = arith.addf %4, %6 : vector<128x16xf32>
    %cst = arith.constant 0.000000e+00 : f32
    %8 = vector.broadcast %cst : f32 to vector<128x16xf32>
    %9 = arith.cmpf oge, %7, %8 : vector<128x16xf32>
    %cst_5 = arith.constant 2.000000e-01 : f32
    %10 = vector.broadcast %cst_5 : f32 to vector<128x16xf32>
    %11 = arith.mulf %10, %7 : vector<128x16xf32>
    %12 = arith.select %9, %7, %11 : vector<128x16xi1>, vector<128x16xf32>
    %13 = arith.truncf %12 : vector<128x16xf32> to vector<128x16xbf16>
    %c0_6 = arith.constant 0 : index
    %c0_7 = arith.constant 0 : index
    %14 = vector.load %arg4[%c0_6, %c0_7] : memref<128x16xbf16, #tpu.memory_space<vmem>>, vector<128x16xbf16>
    tpu.vector_store %arg4[%c0_6, %c0_7], %13 {strides = array<i32>} : memref<128x16xbf16, #tpu.memory_space<vmem>>, vector<128x16xbf16>,
    return
  }
  func.func @transform_0(%arg0: i32) -> (i32, i32) {
    %c0_i32 = arith.constant 0 : i32
    %c0_i32_0 = arith.constant 0 : i32
    return %arg0, %c0_i32 : i32, i32
  }
  func.func @transform_1(%arg0: i32) -> (i32, i32) {
    %c0_i32 = arith.constant 0 : i32
    %c0_i32_0 = arith.constant 0 : i32
    %c0_i32_1 = arith.constant 0 : i32
    return %c0_i32, %c0_i32_0 : i32, i32
  }
  func.func @transform_2(%arg0: i32) -> (i32, i32) {
    %c0_i32 = arith.constant 0 : i32
    %c0_i32_0 = arith.constant 0 : i32
    %c0_i32_1 = arith.constant 0 : i32
    return %c0_i32, %c0_i32_0 : i32, i32
  }
  func.func @transform_3(%arg0: i32) -> (i32, i32) {
    %c0_i32 = arith.constant 0 : i32
    %c0_i32_0 = arith.constant 0 : i32
    return %arg0, %c0_i32 : i32, i32
  }
}

module attributes {stable_mosaic.version = 11 : i64} {
  func.func @_bn_lrelu_kernel(%arg0: i32, %arg1: memref<32x32xbf16, #tpu.memory_space<vmem>>, %arg2: memref<1x32xf32, #tpu.memory_space<vmem>>, %arg3: memref<1x32xf32, #tpu.memory_space<vmem>>, %arg4: memref<32x32xbf16, #tpu.memory_space<vmem>>) attributes {dimension_semantics = [#tpu.dimension_semantics<parallel>], iteration_bounds = array<i64: 1>, scalar_prefetch = 0 : i64, scratch_operands = 0 : i64, tpu.core_type = #tpu.core_type<tc>, window_params = [{transform_indices = @transform_0, window_bounds = array<i64: 32, 32>}, {pipeline_mode = #tpu.pipeline_mode<synchronous>, transform_indices = @transform_1, window_bounds = array<i64: 1, 32>}, {pipeline_mode = #tpu.pipeline_mode<synchronous>, transform_indices = @transform_2, window_bounds = array<i64: 1, 32>}, {transform_indices = @transform_3, window_bounds = array<i64: 32, 32>}]} {
    %c0 = arith.constant 0 : index
    %c0_0 = arith.constant 0 : index
    %0 = vector.load %arg1[%c0, %c0_0] : memref<32x32xbf16, #tpu.memory_space<vmem>>, vector<32x32xbf16>
    %1 = arith.extf %0 : vector<32x32xbf16> to vector<32x32xf32>
    %c0_1 = arith.constant 0 : index
    %c0_2 = arith.constant 0 : index
    %2 = vector.load %arg2[%c0_1, %c0_2] : memref<1x32xf32, #tpu.memory_space<vmem>>, vector<1x32xf32>
    %3 = vector.broadcast %2 : vector<1x32xf32> to vector<32x32xf32>
    %4 = arith.mulf %1, %3 : vector<32x32xf32>
    %c0_3 = arith.constant 0 : index
    %c0_4 = arith.constant 0 : index
    %5 = vector.load %arg3[%c0_3, %c0_4] : memref<1x32xf32, #tpu.memory_space<vmem>>, vector<1x32xf32>
    %6 = vector.broadcast %5 : vector<1x32xf32> to vector<32x32xf32>
    %7 = arith.addf %4, %6 : vector<32x32xf32>
    %cst = arith.constant 0.000000e+00 : f32
    %8 = vector.broadcast %cst : f32 to vector<32x32xf32>
    %9 = arith.cmpf oge, %7, %8 : vector<32x32xf32>
    %cst_5 = arith.constant 2.000000e-01 : f32
    %10 = vector.broadcast %cst_5 : f32 to vector<32x32xf32>
    %11 = arith.mulf %10, %7 : vector<32x32xf32>
    %12 = arith.select %9, %7, %11 : vector<32x32xi1>, vector<32x32xf32>
    %13 = arith.truncf %12 : vector<32x32xf32> to vector<32x32xbf16>
    %c0_6 = arith.constant 0 : index
    %c0_7 = arith.constant 0 : index
    %14 = vector.load %arg4[%c0_6, %c0_7] : memref<32x32xbf16, #tpu.memory_space<vmem>>, vector<32x32xbf16>
    tpu.vector_store %arg4[%c0_6, %c0_7], %13 {strides = array<i32>} : memref<32x32xbf16, #tpu.memory_space<vmem>>, vector<32x32xbf16>,
    return
  }
  func.func @transform_0(%arg0: i32) -> (i32, i32) {
    %c0_i32 = arith.constant 0 : i32
    %c0_i32_0 = arith.constant 0 : i32
    return %arg0, %c0_i32 : i32, i32
  }
  func.func @transform_1(%arg0: i32) -> (i32, i32) {
    %c0_i32 = arith.constant 0 : i32
    %c0_i32_0 = arith.constant 0 : i32
    %c0_i32_1 = arith.constant 0 : i32
    return %c0_i32, %c0_i32_0 : i32, i32
  }
  func.func @transform_2(%arg0: i32) -> (i32, i32) {
    %c0_i32 = arith.constant 0 : i32
    %c0_i32_0 = arith.constant 0 : i32
    %c0_i32_1 = arith.constant 0 : i32
    return %c0_i32, %c0_i32_0 : i32, i32
  }
  func.func @transform_3(%arg0: i32) -> (i32, i32) {
    %c0_i32 = arith.constant 0 : i32
    %c0_i32_0 = arith.constant 0 : i32
    return %arg0, %c0_i32 : i32, i32
  }
}

module attributes {stable_mosaic.version = 11 : i64} {
  func.func @_conv_act_kernel(%arg0: i32, %arg1: memref<2x512xbf16, #tpu.memory_space<vmem>>, %arg2: memref<512x1xbf16, #tpu.memory_space<vmem>>, %arg3: memref<1x1xf32, #tpu.memory_space<vmem>>, %arg4: memref<2x1xf32, #tpu.memory_space<vmem>>) attributes {dimension_semantics = [#tpu.dimension_semantics<parallel>], iteration_bounds = array<i64: 1>, scalar_prefetch = 0 : i64, scratch_operands = 0 : i64, tpu.core_type = #tpu.core_type<tc>, window_params = [{transform_indices = @transform_0, window_bounds = array<i64: 2, 512>}, {pipeline_mode = #tpu.pipeline_mode<synchronous>, transform_indices = @transform_1, window_bounds = array<i64: 512, 1>}, {pipeline_mode = #tpu.pipeline_mode<synchronous>, transform_indices = @transform_2, window_bounds = array<i64: 1, 1>}, {transform_indices = @transform_3, window_bounds = array<i64: 2, 1>}]} {
    %c0 = arith.constant 0 : index
    %c0_0 = arith.constant 0 : index
    %0 = vector.load %arg1[%c0, %c0_0] : memref<2x512xbf16, #tpu.memory_space<vmem>>, vector<2x512xbf16>
    %c0_1 = arith.constant 0 : index
    %c0_2 = arith.constant 0 : index
    %1 = vector.load %arg2[%c0_1, %c0_2] : memref<512x1xbf16, #tpu.memory_space<vmem>>, vector<512x1xbf16>
    %cst = arith.constant dense<0.000000e+00> : vector<2x1xf32>
    %2 = tpu.matmul %0, %1, %cst {dimension_numbers = #tpu.dot_dimension_numbers<[1], [0], [0], [1], [0, 0, 1, 1], [], []>} : vector<2x512xbf16>, vector<512x1xbf16>, vector<2x1xf32> -> vector<2x1xf32>
    %c0_3 = arith.constant 0 : index
    %c0_4 = arith.constant 0 : index
    %3 = vector.load %arg3[%c0_3, %c0_4] : memref<1x1xf32, #tpu.memory_space<vmem>>, vector<1x1xf32>
    %4 = vector.broadcast %3 : vector<1x1xf32> to vector<2x1xf32>
    %5 = arith.addf %2, %4 : vector<2x1xf32>
    %cst_5 = arith.constant 0.000000e+00 : f32
    %6 = vector.broadcast %cst_5 : f32 to vector<2x1xf32>
    %7 = arith.subf %6, %5 : vector<2x1xf32>
    %8 = math.exp %7 : vector<2x1xf32>
    %cst_6 = arith.constant 1.000000e+00 : f32
    %9 = vector.broadcast %cst_6 : f32 to vector<2x1xf32>
    %10 = arith.addf %9, %8 : vector<2x1xf32>
    %11 = tpu.reciprocal %10 {approx = true} : vector<2x1xf32> -> vector<2x1xf32>
    %cst_7 = arith.constant 0.000000e+00 : f32
    %cst_8 = arith.constant 1.000000e+00 : f32
    %12 = vector.broadcast %cst_7 : f32 to vector<2x1xf32>
    %13 = arith.maximumf %12, %11 : vector<2x1xf32>
    %14 = vector.broadcast %cst_8 : f32 to vector<2x1xf32>
    %15 = arith.minimumf %14, %13 : vector<2x1xf32>
    %c0_9 = arith.constant 0 : index
    %c0_10 = arith.constant 0 : index
    %16 = vector.load %arg4[%c0_9, %c0_10] : memref<2x1xf32, #tpu.memory_space<vmem>>, vector<2x1xf32>
    tpu.vector_store %arg4[%c0_9, %c0_10], %15 {strides = array<i32>} : memref<2x1xf32, #tpu.memory_space<vmem>>, vector<2x1xf32>,
    return
  }
  func.func @transform_0(%arg0: i32) -> (i32, i32) {
    %c0_i32 = arith.constant 0 : i32
    %c0_i32_0 = arith.constant 0 : i32
    return %arg0, %c0_i32 : i32, i32
  }
  func.func @transform_1(%arg0: i32) -> (i32, i32) {
    %c0_i32 = arith.constant 0 : i32
    %c0_i32_0 = arith.constant 0 : i32
    %c0_i32_1 = arith.constant 0 : i32
    return %c0_i32, %c0_i32_0 : i32, i32
  }
  func.func @transform_2(%arg0: i32) -> (i32, i32) {
    %c0_i32 = arith.constant 0 : i32
    %c0_i32_0 = arith.constant 0 : i32
    %c0_i32_1 = arith.constant 0 : i32
    return %c0_i32, %c0_i32_0 : i32, i32
  }
  func.func @transform_3(%arg0: i32) -> (i32, i32) {
    %c0_i32 = arith.constant 0 : i32
    %c0_i32_0 = arith.constant 0 : i32
    return %arg0, %c0_i32 : i32, i32
  }
}

module attributes {stable_mosaic.version = 11 : i64} {
  func.func @_conv_stats_kernel(%arg0: i32, %arg1: memref<32x256xbf16, #tpu.memory_space<vmem>>, %arg2: memref<256x32xbf16, #tpu.memory_space<vmem>>, %arg3: memref<1x32xf32, #tpu.memory_space<vmem>>, %arg4: memref<32x32xbf16, #tpu.memory_space<vmem>>, %arg5: memref<1x2x32xf32, #tpu.memory_space<vmem>>) attributes {dimension_semantics = [#tpu.dimension_semantics<parallel>], iteration_bounds = array<i64: 1>, scalar_prefetch = 0 : i64, scratch_operands = 0 : i64, tpu.core_type = #tpu.core_type<tc>, window_params = [{transform_indices = @transform_0, window_bounds = array<i64: 32, 256>}, {pipeline_mode = #tpu.pipeline_mode<synchronous>, transform_indices = @transform_1, window_bounds = array<i64: 256, 32>}, {pipeline_mode = #tpu.pipeline_mode<synchronous>, transform_indices = @transform_2, window_bounds = array<i64: 1, 32>}, {transform_indices = @transform_3, window_bounds = array<i64: 32, 32>}, {transform_indices = @transform_4, window_bounds = array<i64: 1, 2, 32>}]} {
    %c0 = arith.constant 0 : index
    %c0_0 = arith.constant 0 : index
    %0 = vector.load %arg1[%c0, %c0_0] : memref<32x256xbf16, #tpu.memory_space<vmem>>, vector<32x256xbf16>
    %c0_1 = arith.constant 0 : index
    %c0_2 = arith.constant 0 : index
    %1 = vector.load %arg2[%c0_1, %c0_2] : memref<256x32xbf16, #tpu.memory_space<vmem>>, vector<256x32xbf16>
    %cst = arith.constant dense<0.000000e+00> : vector<32x32xf32>
    %2 = tpu.matmul %0, %1, %cst {dimension_numbers = #tpu.dot_dimension_numbers<[1], [0], [0], [1], [0, 0, 1, 1], [], []>} : vector<32x256xbf16>, vector<256x32xbf16>, vector<32x32xf32> -> vector<32x32xf32>
    %c0_3 = arith.constant 0 : index
    %c0_4 = arith.constant 0 : index
    %3 = vector.load %arg3[%c0_3, %c0_4] : memref<1x32xf32, #tpu.memory_space<vmem>>, vector<1x32xf32>
    %4 = vector.broadcast %3 : vector<1x32xf32> to vector<32x32xf32>
    %5 = arith.addf %2, %4 : vector<32x32xf32>
    %6 = arith.truncf %5 : vector<32x32xf32> to vector<32x32xbf16>
    %c0_5 = arith.constant 0 : index
    %c0_6 = arith.constant 0 : index
    %7 = vector.load %arg4[%c0_5, %c0_6] : memref<32x32xbf16, #tpu.memory_space<vmem>>, vector<32x32xbf16>
    tpu.vector_store %arg4[%c0_5, %c0_6], %6 {strides = array<i32>} : memref<32x32xbf16, #tpu.memory_space<vmem>>, vector<32x32xbf16>,
    %c32_i32 = arith.constant 32 : i32
    %8 = arith.muli %arg0, %c32_i32 : i32
    %9 = tpu.iota {dimensions = array<i32: 0>} : vector<32x32xi32>
    %10 = vector.broadcast %8 : i32 to vector<32x32xi32>
    %11 = arith.addi %10, %9 : vector<32x32xi32>
    %c32_i32_7 = arith.constant 32 : i32
    %12 = vector.broadcast %c32_i32_7 : i32 to vector<32x32xi32>
    %13 = arith.cmpi slt, %11, %12 : vector<32x32xi32>
    %cst_8 = arith.constant 0.000000e+00 : f32
    %14 = vector.broadcast %cst_8 : f32 to vector<32x32xf32>
    %15 = arith.select %13, %5, %14 : vector<32x32xi1>, vector<32x32xf32>
    %cst_9 = arith.constant dense<0.000000e+00> : vector<32xf32>
    %16 = vector.multi_reduction <add>, %15, %cst_9 [0] : vector<32x32xf32> to vector<32xf32>
    %17 = vector.shape_cast %16 : vector<32xf32> to vector<1x32xf32>
    %18 = arith.mulf %15, %15 : vector<32x32xf32>
    %cst_10 = arith.constant dense<0.000000e+00> : vector<32xf32>
    %19 = vector.multi_reduction <add>, %18, %cst_10 [0] : vector<32x32xf32> to vector<32xf32>
    %20 = vector.shape_cast %19 : vector<32xf32> to vector<1x32xf32>
    %21 = tpu.concatenate %17, %20 in 0 : vector<1x32xf32>, vector<1x32xf32> -> vector<2x32xf32>
    %22 = vector.shape_cast %21 : vector<2x32xf32> to vector<1x2x32xf32>
    %c0_11 = arith.constant 0 : index
    %c0_12 = arith.constant 0 : index
    %c0_13 = arith.constant 0 : index
    %23 = vector.load %arg5[%c0_11, %c0_12, %c0_13] : memref<1x2x32xf32, #tpu.memory_space<vmem>>, vector<1x2x32xf32>
    tpu.vector_store %arg5[%c0_11, %c0_12, %c0_13], %22 {strides = array<i32>} : memref<1x2x32xf32, #tpu.memory_space<vmem>>, vector<1x2x32xf32>,
    return
  }
  func.func @transform_0(%arg0: i32) -> (i32, i32) {
    %c0_i32 = arith.constant 0 : i32
    %c0_i32_0 = arith.constant 0 : i32
    return %arg0, %c0_i32 : i32, i32
  }
  func.func @transform_1(%arg0: i32) -> (i32, i32) {
    %c0_i32 = arith.constant 0 : i32
    %c0_i32_0 = arith.constant 0 : i32
    %c0_i32_1 = arith.constant 0 : i32
    return %c0_i32, %c0_i32_0 : i32, i32
  }
  func.func @transform_2(%arg0: i32) -> (i32, i32) {
    %c0_i32 = arith.constant 0 : i32
    %c0_i32_0 = arith.constant 0 : i32
    %c0_i32_1 = arith.constant 0 : i32
    return %c0_i32, %c0_i32_0 : i32, i32
  }
  func.func @transform_3(%arg0: i32) -> (i32, i32) {
    %c0_i32 = arith.constant 0 : i32
    %c0_i32_0 = arith.constant 0 : i32
    return %arg0, %c0_i32 : i32, i32
  }
  func.func @transform_4(%arg0: i32) -> (i32, i32, i32) {
    %c0_i32 = arith.constant 0 : i32
    %c0_i32_0 = arith.constant 0 : i32
    %c0_i32_1 = arith.constant 0 : i32
    return %arg0, %c0_i32, %c0_i32_0 : i32, i32, i32
  }
}

</mosaic_0001>

<llo_original>
// kernel: dc_discriminator_forward.8
$region0: #{dc_discriminator_forward.8}
  #allocation0 [shape = 'u32[]', space=smem, size = 0x4, offset = 0x4, fixed_abs, tag = 'smem constant byte address 0x4 - core index']
  #allocation1 [shape = 'u32[72,128]{1,0:T(1,128)}', space=vmem, size = 0x9000, scoped, tag = 'internal scratch']
  %s0 = inlined_call_operand.vmem [shape: bf16[2048,16], index: 0, kind: input, shape index: {}]
  %s1 = inlined_call_operand.vmem [shape: bf16[16,4], index: 1, kind: input, shape index: {}]
  %s2 = inlined_call_operand.vmem [shape: f32[1,4], index: 2, kind: input, shape index: {}]
  %s3 = inlined_call_operand.vmem [shape: bf16[2048,4], index: 3, kind: output, shape index: {}]
  %s4 = sld [smem:[#allocation0]]
  $region45: #{dc_discriminator_forward.8} parent=0
    _
  %s6 = ssub.s32 1, %s4
  %s7 = scalar_select 0, %s6, %s4
  loop: start=0, step=1, limit=6
  $region2: #{dc_discriminator_forward.8} parent=0 // loop_pre_header
    _
  $region3: #{dc_discriminator_forward.8} parent=0 // loop_header
    %s9 = sphi 0, %s13
    %p10 = scmp.ge.s32.totalorder %s9, 6
    %s19 = sphi 0, %s21
    %s22 = sphi 0, %s19
    %s23 = sphi 0, %s22
    %s39 = sphi 0, %s23
    %s43 = sphi 0, %s43
    %s45 = sphi 0, %s43
    %s46 = sphi 0, %s45
    %s60 = sphi 0, %s46
    %s64 = sphi 0, %s64
    %s66 = sphi 0, %s64
    %s67 = sphi 0, %s66
    %s81 = sphi 0, %s67
    %s87 = sphi 0, %s89
    %s90 = sphi 0, %s87
    %s91 = sphi 0, %s90
    %s107 = sphi 0, %s91
  $region4: #{dc_discriminator_forward.8} parent=0 // loop_header_branch
    %12 = sbr.rel (%p10) target = $region8
  $region5: #{dc_discriminator_forward.8} parent=0 // loop_body
    %s14 = ssub.s32 %s9, 1
    %s15 = ssub.s32 %s9, 2
    %s16 = sadd.s32 %s9, 1
    %s17 = ssub.s32 %s9, %s16
    %p18 = scmp.eq.s32.totalorder %s17, 0
    %s20 = sadd.s32 %s19, 1
    %s21 = scalar_select %p18, %s19, %s20
    %p24 = pneg %p18
    %p25 = scmp.eq.s32.totalorder %s9, 3
    %p26 = por %p24, %p25
    %p27 = scmp.ne.s32.totalorder %s19, %s22
    %p28 = scmp.eq.s32.totalorder %s9, 0
    %p29 = por %p27, %p28
    %p30 = scmp.ne.s32.totalorder %s19, %s22
    %p31 = scmp.eq.s32.totalorder %s14, 3
    %p32 = por %p30, %p31
    %p33 = scmp.ne.s32.totalorder %s22, %s23
    %p34 = scmp.eq.s32.totalorder %s14, 0
    %p35 = por %p33, %p34
    %p36 = scmp.ne.s32.totalorder %s22, %s23
    %p37 = scmp.eq.s32.totalorder %s15, 3
    %p38 = por %p36, %p37
    %p40 = scmp.ne.s32.totalorder %s23, %s39
    %p41 = scmp.eq.s32.totalorder %s15, 0
    %p42 = por %p40, %p41
    %s44 = sadd.s32 %s43, 1
    %p47 = scmp.eq.s32.totalorder %s9, 3
    %p48 = scmp.ne.s32.totalorder %s43, %s45
    %p49 = scmp.eq.s32.totalorder %s9, 0
    %p50 = por %p48, %p49
    %p51 = scmp.ne.s32.totalorder %s43, %s45
    %p52 = scmp.eq.s32.totalorder %s14, 3
    %p53 = por %p51, %p52
    %p54 = scmp.ne.s32.totalorder %s45, %s46
    %p55 = scmp.eq.s32.totalorder %s14, 0
    %p56 = por %p54, %p55
    %p57 = scmp.ne.s32.totalorder %s45, %s46
    %p58 = scmp.eq.s32.totalorder %s15, 3
    %p59 = por %p57, %p58
    %p61 = scmp.ne.s32.totalorder %s46, %s60
    %p62 = scmp.eq.s32.totalorder %s15, 0
    %p63 = por %p61, %p62
    %s65 = sadd.s32 %s64, 1
    %p68 = scmp.eq.s32.totalorder %s9, 3
    %p69 = scmp.ne.s32.totalorder %s64, %s66
    %p70 = scmp.eq.s32.totalorder %s9, 0
    %p71 = por %p69, %p70
    %p72 = scmp.ne.s32.totalorder %s64, %s66
    %p73 = scmp.eq.s32.totalorder %s14, 3
    %p74 = por %p72, %p73
    %p75 = scmp.ne.s32.totalorder %s66, %s67
    %p76 = scmp.eq.s32.totalorder %s14, 0
    %p77 = por %p75, %p76
    %p78 = scmp.ne.s32.totalorder %s66, %s67
    %p79 = scmp.eq.s32.totalorder %s15, 3
    %p80 = por %p78, %p79
    %p82 = scmp.ne.s32.totalorder %s67, %s81
    %p83 = scmp.eq.s32.totalorder %s15, 0
    %p84 = por %p82, %p83
    %s85 = ssub.s32 %s9, %s16
    %p86 = scmp.eq.s32.totalorder %s85, 0
    %s88 = sadd.s32 %s87, 1
    %s89 = scalar_select %p86, %s87, %s88
    %p92 = pneg %p86
    %p93 = scmp.eq.s32.totalorder %s9, 3
    %p94 = por %p92, %p93
    %p95 = scmp.ne.s32.totalorder %s87, %s90
    %p96 = scmp.eq.s32.totalorder %s9, 0
    %p97 = por %p95, %p96
    %p98 = scmp.ne.s32.totalorder %s87, %s90
    %p99 = scmp.eq.s32.totalorder %s14, 3
    %p100 = por %p98, %p99
    %p101 = scmp.ne.s32.totalorder %s90, %s91
    %p102 = scmp.eq.s32.totalorder %s14, 0
    %p103 = por %p101, %p102
    %p104 = scmp.ne.s32.totalorder %s90, %s91
    %p105 = scmp.eq.s32.totalorder %s15, 3
    %p106 = por %p104, %p105
    %p108 = scmp.ne.s32.totalorder %s91, %s107
    %p109 = scmp.eq.s32.totalorder %s15, 0
    %p110 = por %p108, %p109
    %p111 = scmp.le.s32.totalorder 1, %s9
    %p112 = scmp.lt.s32.totalorder %s9, 5
    %p113 = pnand %p111, %p112
    %p114 = pneg %p113
    // Predicated region
    $region9: #{dc_discriminator_forward.8} parent=5 // pred_check
      _
    $region10: #{dc_discriminator_forward.8} parent=5 // pred_check_branch
      %116 = sbr.rel (%p113) target = $region12
    $region11: #{dc_discriminator_forward.8} parent=5 // pred_region
      %s117 = ssub.s32 %s9, 1
      // Predicated region
      $region13: #{dc_discriminator_forward.8} parent=11 // pred_check
        %p118 = pneg %p56
      $region14: #{dc_discriminator_forward.8} parent=11 // pred_check_branch
        %120 = sbr.rel (%p118) target = $region16
      $region15: #{dc_discriminator_forward.8} parent=11 // pred_region
        _
      $region16: #{dc_discriminator_forward.8} parent=11 // pred_fallthru
        _
      // Predicated region
      $region17: #{dc_discriminator_forward.8} parent=11 // pred_check
        %p121 = pneg %p77
      $region18: #{dc_discriminator_forward.8} parent=11 // pred_check_branch
        %123 = sbr.rel (%p121) target = $region20
      $region19: #{dc_discriminator_forward.8} parent=11 // pred_region
        _
      $region20: #{dc_discriminator_forward.8} parent=11 // pred_fallthru
        _
    $region12: #{dc_discriminator_forward.8} parent=5 // pred_fallthru
      _
    %p124 = scmp.lt.s32.totalorder %s9, 4
    // Predicated region
    $region21: #{dc_discriminator_forward.8} parent=5 // pred_check
      %p125 = pneg %p124
    $region22: #{dc_discriminator_forward.8} parent=5 // pred_check_branch
      %127 = sbr.rel (%p125) target = $region24
    $region23: #{dc_discriminator_forward.8} parent=5 // pred_region
      // Predicated region
      $region25: #{dc_discriminator_forward.8} parent=23 // pred_check
        %p128 = pneg %p29
      $region26: #{dc_discriminator_forward.8} parent=23 // pred_check_branch
        %130 = sbr.rel (%p128) target = $region28
      $region27: #{dc_discriminator_forward.8} parent=23 // pred_region
        %s131 = smul.u32 64, %s9
        %p132 = scmp.lt.s32.totalorder %s131, 255
        %s133 = scalar_select %p132, %s131, 255
        %s134 = smul.addr %s133, 4
        %s135 = scalar_lea.vmem %s0, %s134
        %s136 = smul.u32 64, %s9
      $region28: #{dc_discriminator_forward.8} parent=23 // pred_fallthru
        _
    $region24: #{dc_discriminator_forward.8} parent=5 // pred_fallthru
      _
    %p137 = scmp.le.s32.totalorder 1, %s9
    %p138 = scmp.lt.s32.totalorder %s9, 5
    %p139 = pnand %p137, %p138
    %p140 = pneg %p139
    // Predicated region
    $region29: #{dc_discriminator_forward.8} parent=5 // pred_check
      _
    $region30: #{dc_discriminator_forward.8} parent=5 // pred_check_branch
      %142 = sbr.rel (%p139) target = $region32
    $region31: #{dc_discriminator_forward.8} parent=5 // pred_region
      %s143 = ssub.s32 %s9, 1
      %s144 = smul.u32 64, %s14
      %p145 = scmp.lt.s32.totalorder %s144, 255
      %s146 = scalar_select %p145, %s144, 255
      %s147 = smul.addr %s146, 4
      %s148 = scalar_lea.vmem %s0, %s147
      %p149 = pneg %p35
      %p150 = pneg %p32
      %p151 = pneg %p56
      %p152 = pneg %p53
      %p153 = pneg %p77
      %p154 = pneg %p74
      %p155 = pneg %p103
      %p156 = pneg %p100
      %s157 = smul.u32 64, %s14
      %p158 = scmp.lt.s32.totalorder %s157, 255
      %s159 = scalar_select %p158, %s157, 255
      %s160 = smul.addr %s159, 4
      %s161 = scalar_lea.vmem %s3, %s160
      %s162 = smul.u32 64, %s14
      %p163 = scmp.lt.s32.totalorder %s162, 255
      %s164 = scalar_select %p163, %s162, 255
      %s165 = smul.addr %s164, 4
      %s166 = scalar_lea.vmem %s0, %s165
      %s167 = smul.u32 64, %s14
      %s168 = smul.u32 64, %s14
      %p169 = scmp.lt.s32.totalorder %s168, 255
      %s170 = scalar_select %p169, %s168, 255
      %s171 = smul.addr %s170, 4
      %s172 = scalar_lea.vmem %s3, %s171
      %s173 = smul.u32 64, %s14
      %v175 = vld [vmem:[%s166] sm:$0xf]
      %v176 = vld [vmem:[%s166 + $0x4] sm:$0xf]
      %v177 = vld [vmem:[%s166 + $0x8] sm:$0xf]
      %v178 = vld [vmem:[%s166 + $0xc] sm:$0xf]
      %v179 = vld [vmem:[%s166 + $0x10] sm:$0xf]
      %v180 = vld [vmem:[%s166 + $0x14] sm:$0xf]
      %v181 = vld [vmem:[%s166 + $0x18] sm:$0xf]
      %v182 = vld [vmem:[%s166 + $0x1c] sm:$0xf]
      %v183 = vld [vmem:[%s166 + $0x20] sm:$0xf]
      %v184 = vld [vmem:[%s166 + $0x24] sm:$0xf]
      %v185 = vld [vmem:[%s166 + $0x28] sm:$0xf]
      %v186 = vld [vmem:[%s166 + $0x2c] sm:$0xf]
      %v187 = vld [vmem:[%s166 + $0x30] sm:$0xf]
      %v188 = vld [vmem:[%s166 + $0x34] sm:$0xf]
      %v189 = vld [vmem:[%s166 + $0x38] sm:$0xf]
      %v190 = vld [vmem:[%s166 + $0x3c] sm:$0xf]
      %v191 = vld [vmem:[%s166 + $0x40] sm:$0xf]
      %v192 = vld [vmem:[%s166 + $0x44] sm:$0xf]
      %v193 = vld [vmem:[%s166 + $0x48] sm:$0xf]
      %v194 = vld [vmem:[%s166 + $0x4c] sm:$0xf]
      %v195 = vld [vmem:[%s166 + $0x50] sm:$0xf]
      %v196 = vld [vmem:[%s166 + $0x54] sm:$0xf]
      %v197 = vld [vmem:[%s166 + $0x58] sm:$0xf]
      %v198 = vld [vmem:[%s166 + $0x5c] sm:$0xf]
      %v199 = vld [vmem:[%s166 + $0x60] sm:$0xf]
      %v200 = vld [vmem:[%s166 + $0x64] sm:$0xf]
      %v201 = vld [vmem:[%s166 + $0x68] sm:$0xf]
      %v202 = vld [vmem:[%s166 + $0x6c] sm:$0xf]
      %v203 = vld [vmem:[%s166 + $0x70] sm:$0xf]
      %v204 = vld [vmem:[%s166 + $0x74] sm:$0xf]
      %v205 = vld [vmem:[%s166 + $0x78] sm:$0xf]
      %v206 = vld [vmem:[%s166 + $0x7c] sm:$0xf]
      %v207 = vld [vmem:[%s166 + $0x80] sm:$0xf]
      %v208 = vld [vmem:[%s166 + $0x84] sm:$0xf]
      %v209 = vld [vmem:[%s166 + $0x88] sm:$0xf]
      %v210 = vld [vmem:[%s166 + $0x8c] sm:$0xf]
      %v211 = vld [vmem:[%s166 + $0x90] sm:$0xf]
      %v212 = vld [vmem:[%s166 + $0x94] sm:$0xf]
      %v213 = vld [vmem:[%s166 + $0x98] sm:$0xf]
      %v214 = vld [vmem:[%s166 + $0x9c] sm:$0xf]
      %v215 = vld [vmem:[%s166 + $0xa0] sm:$0xf]
      %v216 = vld [vmem:[%s166 + $0xa4] sm:$0xf]
      %v217 = vld [vmem:[%s166 + $0xa8] sm:$0xf]
      %v218 = vld [vmem:[%s166 + $0xac] sm:$0xf]
      %v219 = vld [vmem:[%s166 + $0xb0] sm:$0xf]
      %v220 = vld [vmem:[%s166 + $0xb4] sm:$0xf]
      %v221 = vld [vmem:[%s166 + $0xb8] sm:$0xf]
      %v222 = vld [vmem:[%s166 + $0xbc] sm:$0xf]
      %v223 = vld [vmem:[%s166 + $0xc0] sm:$0xf]
      %v224 = vld [vmem:[%s166 + $0xc4] sm:$0xf]
      %v225 = vld [vmem:[%s166 + $0xc8] sm:$0xf]
      %v226 = vld [vmem:[%s166 + $0xcc] sm:$0xf]
      %v227 = vld [vmem:[%s166 + $0xd0] sm:$0xf]
      %v228 = vld [vmem:[%s166 + $0xd4] sm:$0xf]
      %v229 = vld [vmem:[%s166 + $0xd8] sm:$0xf]
      %v230 = vld [vmem:[%s166 + $0xdc] sm:$0xf]
      %v231 = vld [vmem:[%s166 + $0xe0] sm:$0xf]
      %v232 = vld [vmem:[%s166 + $0xe4] sm:$0xf]
      %v233 = vld [vmem:[%s166 + $0xe8] sm:$0xf]
      %v234 = vld [vmem:[%s166 + $0xec] sm:$0xf]
      %v235 = vld [vmem:[%s166 + $0xf0] sm:$0xf]
      %v236 = vld [vmem:[%s166 + $0xf4] sm:$0xf]
      %v237 = vld [vmem:[%s166 + $0xf8] sm:$0xf]
      %v238 = vld [vmem:[%s166 + $0xfc] sm:$0xf]
      %v239 = vld [vmem:[%s1] sm:$0xf]
      %v240 = vld [vmem:[%s1 + $0x4] sm:$0xf]
      %v241 = vld [vmem:[%s2] sm:$0x1]
      %v243 = vperm.slane %v241, 0
      %v309 = vunpack.c.l.b16 %v175
      %v310 = vunpack.c.l.b16 %v176
      %v311 = vunpack.c.l.b16 %v177
      %v312 = vunpack.c.l.b16 %v178
      %v313 = vunpack.c.l.b16 %v179
      %v314 = vunpack.c.l.b16 %v180
      %v315 = vunpack.c.l.b16 %v181
      %v316 = vunpack.c.l.b16 %v182
      %v317 = vunpack.c.l.b16 %v183
      %v318 = vunpack.c.l.b16 %v184
      %v319 = vunpack.c.l.b16 %v185
      %v320 = vunpack.c.l.b16 %v186
      %v321 = vunpack.c.l.b16 %v187
      %v322 = vunpack.c.l.b16 %v188
      %v323 = vunpack.c.l.b16 %v189
      %v324 = vunpack.c.l.b16 %v190
      %v325 = vunpack.c.l.b16 %v191
      %v326 = vunpack.c.l.b16 %v192
      %v327 = vunpack.c.l.b16 %v193
      %v328 = vunpack.c.l.b16 %v194
      %v329 = vunpack.c.l.b16 %v195
      %v330 = vunpack.c.l.b16 %v196
      %v331 = vunpack.c.l.b16 %v197
      %v332 = vunpack.c.l.b16 %v198
      %v333 = vunpack.c.l.b16 %v199
      %v334 = vunpack.c.l.b16 %v200
      %v335 = vunpack.c.l.b16 %v201
      %v336 = vunpack.c.l.b16 %v202
      %v337 = vunpack.c.l.b16 %v203
      %v338 = vunpack.c.l.b16 %v204
      %v339 = vunpack.c.l.b16 %v205
      %v340 = vunpack.c.l.b16 %v206
      %v341 = vunpack.c.l.b16 %v207
      %v342 = vunpack.c.l.b16 %v208
      %v343 = vunpack.c.l.b16 %v209
      %v344 = vunpack.c.l.b16 %v210
      %v345 = vunpack.c.l.b16 %v211
      %v346 = vunpack.c.l.b16 %v212
      %v347 = vunpack.c.l.b16 %v213
      %v348 = vunpack.c.l.b16 %v214
      %v349 = vunpack.c.l.b16 %v215
      %v350 = vunpack.c.l.b16 %v216
      %v351 = vunpack.c.l.b16 %v217
      %v352 = vunpack.c.l.b16 %v218
      %v353 = vunpack.c.l.b16 %v219
      %v354 = vunpack.c.l.b16 %v220
      %v355 = vunpack.c.l.b16 %v221
      %v356 = vunpack.c.l.b16 %v222
      %v357 = vunpack.c.l.b16 %v223
      %v358 = vunpack.c.l.b16 %v224
      %v359 = vunpack.c.l.b16 %v225
      %v360 = vunpack.c.l.b16 %v226
      %v361 = vunpack.c.l.b16 %v227
      %v362 = vunpack.c.l.b16 %v228
      %v363 = vunpack.c.l.b16 %v229
      %v364 = vunpack.c.l.b16 %v230
      %v365 = vunpack.c.l.b16 %v231
      %v366 = vunpack.c.l.b16 %v232
      %v367 = vunpack.c.l.b16 %v233
      %v368 = vunpack.c.l.b16 %v234
      %v369 = vunpack.c.l.b16 %v235
      %v370 = vunpack.c.l.b16 %v236
      %v371 = vunpack.c.l.b16 %v237
      %v372 = vunpack.c.l.b16 %v238
      %v373 = vpack.c.b16 %v310, %v309
      %v374 = vpack.c.b16 %v312, %v311
      %v375 = vpack.c.b16 %v314, %v313
      %v376 = vpack.c.b16 %v316, %v315
      %v377 = vpack.c.b16 %v318, %v317
      %v378 = vpack.c.b16 %v320, %v319
      %v379 = vpack.c.b16 %v322, %v321
      %v380 = vpack.c.b16 %v324, %v323
      %v381 = vpack.c.b16 %v326, %v325
      %v382 = vpack.c.b16 %v328, %v327
      %v383 = vpack.c.b16 %v330, %v329
      %v384 = vpack.c.b16 %v332, %v331
      %v385 = vpack.c.b16 %v334, %v333
      %v386 = vpack.c.b16 %v336, %v335
      %v387 = vpack.c.b16 %v338, %v337
      %v388 = vpack.c.b16 %v340, %v339
      %v389 = vpack.c.b16 %v342, %v341
      %v390 = vpack.c.b16 %v344, %v343
      %v391 = vpack.c.b16 %v346, %v345
      %v392 = vpack.c.b16 %v348, %v347
      %v393 = vpack.c.b16 %v350, %v349
      %v394 = vpack.c.b16 %v352, %v351
      %v395 = vpack.c.b16 %v354, %v353
      %v396 = vpack.c.b16 %v356, %v355
      %v397 = vpack.c.b16 %v358, %v357
      %v398 = vpack.c.b16 %v360, %v359
      %v399 = vpack.c.b16 %v362, %v361
      %v400 = vpack.c.b16 %v364, %v363
      %v401 = vpack.c.b16 %v366, %v365
      %v402 = vpack.c.b16 %v368, %v367
      %v403 = vpack.c.b16 %v370, %v369
      %v404 = vpack.c.b16 %v372, %v371
      %v407 = vunpack.c.l.b16 %v239
      %v408 = vunpack.c.l.b16 %v240
      %v409 = vpack.c.b16 %v408, %v407
      %vm411 = vcmask 130048
      %v413 = vsel %vm411, %v373, 0
      %v416 = vsel %vm411, %v374, 0
      %v419 = vsel %vm411, %v375, 0
      %v422 = vsel %vm411, %v376, 0
      %v425 = vsel %vm411, %v377, 0
      %v428 = vsel %vm411, %v378, 0
      %v431 = vsel %vm411, %v379, 0
      %v434 = vsel %vm411, %v380, 0
      %v437 = vsel %vm411, %v381, 0
      %v440 = vsel %vm411, %v382, 0
      %v443 = vsel %vm411, %v383, 0
      %v446 = vsel %vm411, %v384, 0
      %v449 = vsel %vm411, %v385, 0
      %v452 = vsel %vm411, %v386, 0
      %v455 = vsel %vm411, %v387, 0
      %v458 = vsel %vm411, %v388, 0
      %v461 = vsel %vm411, %v389, 0
      %v464 = vsel %vm411, %v390, 0
      %v467 = vsel %vm411, %v391, 0
      %v470 = vsel %vm411, %v392, 0
      %v473 = vsel %vm411, %v393, 0
      %v476 = vsel %vm411, %v394, 0
      %v479 = vsel %vm411, %v395, 0
      %v482 = vsel %vm411, %v396, 0
      %v485 = vsel %vm411, %v397, 0
      %v488 = vsel %vm411, %v398, 0
      %v491 = vsel %vm411, %v399, 0
      %v494 = vsel %vm411, %v400, 0
      %v497 = vsel %vm411, %v401, 0
      %v500 = vsel %vm411, %v402, 0
      %v503 = vsel %vm411, %v403, 0
      %v506 = vsel %vm411, %v404, 0
      %508 = vmatpush.bf16.msra.mxu0 0
      %509 = vmatpush.bf16.msra.mxu0 0
      %510 = vmatpush.bf16.msra.mxu0 0
      %511 = vmatpush.bf16.msra.mxu0 0
      %512 = vmatpush.bf16.msra.mxu0 0
      %513 = vmatpush.bf16.msra.mxu0 0
      %514 = vmatpush.bf16.msra.mxu0 0
      %515 = vmatpush.bf16.msra.mxu0 %v409
      %516 = vmatmul.bf16.gmra.mxu0 %v413
      %v517 = vpop.f32.mrf.mxu0
      %v518 = vadd.f32 %v243, %v517
      %v519 = vpop.f32.mrf.mxu0
      %v520 = vadd.f32 %v243, %v519
      %521 = vmatmul.bf16.gmra.mxu0 %v416
      %v522 = vpop.f32.mrf.mxu0
      %v523 = vadd.f32 %v243, %v522
      %v524 = vpop.f32.mrf.mxu0
      %v525 = vadd.f32 %v243, %v524
      %526 = vmatmul.bf16.gmra.mxu0 %v419
      %v527 = vpop.f32.mrf.mxu0
      %v528 = vadd.f32 %v243, %v527
      %v529 = vpop.f32.mrf.mxu0
      %v530 = vadd.f32 %v243, %v529
      %531 = vmatmul.bf16.gmra.mxu0 %v422
      %v532 = vpop.f32.mrf.mxu0
      %v533 = vadd.f32 %v243, %v532
      %v534 = vpop.f32.mrf.mxu0
      %v535 = vadd.f32 %v243, %v534
      %536 = vmatmul.bf16.gmra.mxu0 %v425
      %v537 = vpop.f32.mrf.mxu0
      %v538 = vadd.f32 %v243, %v537
      %v539 = vpop.f32.mrf.mxu0
      %v540 = vadd.f32 %v243, %v539
      %541 = vmatmul.bf16.gmra.mxu0 %v428
      %v542 = vpop.f32.mrf.mxu0
      %v543 = vadd.f32 %v243, %v542
      %v544 = vpop.f32.mrf.mxu0
      %v545 = vadd.f32 %v243, %v544
      %546 = vmatmul.bf16.gmra.mxu0 %v431
      %v547 = vpop.f32.mrf.mxu0
      %v548 = vadd.f32 %v243, %v547
      %v549 = vpop.f32.mrf.mxu0
      %v550 = vadd.f32 %v243, %v549
      %551 = vmatmul.bf16.gmra.mxu0 %v434
      %v552 = vpop.f32.mrf.mxu0
      %v553 = vadd.f32 %v243, %v552
      %v554 = vpop.f32.mrf.mxu0
      %v555 = vadd.f32 %v243, %v554
      %556 = vmatmul.bf16.gmra.mxu0 %v437
      %v557 = vpop.f32.mrf.mxu0
      %v558 = vadd.f32 %v243, %v557
      %v559 = vpop.f32.mrf.mxu0
      %v560 = vadd.f32 %v243, %v559
      %561 = vmatmul.bf16.gmra.mxu0 %v440
      %v562 = vpop.f32.mrf.mxu0
      %v563 = vadd.f32 %v243, %v562
      %v564 = vpop.f32.mrf.mxu0
      %v565 = vadd.f32 %v243, %v564
      %566 = vmatmul.bf16.gmra.mxu0 %v443
      %v567 = vpop.f32.mrf.mxu0
      %v568 = vadd.f32 %v243, %v567
      %v569 = vpop.f32.mrf.mxu0
      %v570 = vadd.f32 %v243, %v569
      %571 = vmatmul.bf16.gmra.mxu0 %v446
      %v572 = vpop.f32.mrf.mxu0
      %v573 = vadd.f32 %v243, %v572
      %v574 = vpop.f32.mrf.mxu0
      %v575 = vadd.f32 %v243, %v574
      %576 = vmatmul.bf16.gmra.mxu0 %v449
      %v577 = vpop.f32.mrf.mxu0
      %v578 = vadd.f32 %v243, %v577
      %v579 = vpop.f32.mrf.mxu0
      %v580 = vadd.f32 %v243, %v579
      %581 = vmatmul.bf16.gmra.mxu0 %v452
      %v582 = vpop.f32.mrf.mxu0
      %v583 = vadd.f32 %v243, %v582
      %v584 = vpop.f32.mrf.mxu0
      %v585 = vadd.f32 %v243, %v584
      %586 = vmatmul.bf16.gmra.mxu0 %v455
      %v587 = vpop.f32.mrf.mxu0
      %v588 = vadd.f32 %v243, %v587
      %v589 = vpop.f32.mrf.mxu0
      %v590 = vadd.f32 %v243, %v589
      %591 = vmatmul.bf16.gmra.mxu0 %v458
      %v592 = vpop.f32.mrf.mxu0
      %v593 = vadd.f32 %v243, %v592
      %v594 = vpop.f32.mrf.mxu0
      %v595 = vadd.f32 %v243, %v594
      %596 = vmatmul.bf16.gmra.mxu0 %v461
      %v597 = vpop.f32.mrf.mxu0
      %v598 = vadd.f32 %v243, %v597
      %v599 = vpop.f32.mrf.mxu0
      %v600 = vadd.f32 %v243, %v599
      %601 = vmatmul.bf16.gmra.mxu0 %v464
      %v602 = vpop.f32.mrf.mxu0
      %v603 = vadd.f32 %v243, %v602
      %v604 = vpop.f32.mrf.mxu0
      %v605 = vadd.f32 %v243, %v604
      %606 = vmatmul.bf16.gmra.mxu0 %v467
      %v607 = vpop.f32.mrf.mxu0
      %v608 = vadd.f32 %v243, %v607
      %v609 = vpop.f32.mrf.mxu0
      %v610 = vadd.f32 %v243, %v609
      %611 = vmatmul.bf16.gmra.mxu0 %v470
      %v612 = vpop.f32.mrf.mxu0
      %v613 = vadd.f32 %v243, %v612
      %v614 = vpop.f32.mrf.mxu0
      %v615 = vadd.f32 %v243, %v614
      %616 = vmatmul.bf16.gmra.mxu0 %v473
      %v617 = vpop.f32.mrf.mxu0
      %v618 = vadd.f32 %v243, %v617
      %v619 = vpop.f32.mrf.mxu0
      %v620 = vadd.f32 %v243, %v619
      %621 = vmatmul.bf16.gmra.mxu0 %v476
      %v622 = vpop.f32.mrf.mxu0
      %v623 = vadd.f32 %v243, %v622
      %v624 = vpop.f32.mrf.mxu0
      %v625 = vadd.f32 %v243, %v624
      %626 = vmatmul.bf16.gmra.mxu0 %v479
      %v627 = vpop.f32.mrf.mxu0
      %v628 = vadd.f32 %v243, %v627
      %v629 = vpop.f32.mrf.mxu0
      %v630 = vadd.f32 %v243, %v629
      %631 = vmatmul.bf16.gmra.mxu0 %v482
      %v632 = vpop.f32.mrf.mxu0
      %v633 = vadd.f32 %v243, %v632
      %v634 = vpop.f32.mrf.mxu0
      %v635 = vadd.f32 %v243, %v634
      %636 = vmatmul.bf16.gmra.mxu0 %v485
      %v637 = vpop.f32.mrf.mxu0
      %v638 = vadd.f32 %v243, %v637
      %v639 = vpop.f32.mrf.mxu0
      %v640 = vadd.f32 %v243, %v639
      %641 = vmatmul.bf16.gmra.mxu0 %v488
      %v642 = vpop.f32.mrf.mxu0
      %v643 = vadd.f32 %v243, %v642
      %v644 = vpop.f32.mrf.mxu0
      %v645 = vadd.f32 %v243, %v644
      %646 = vmatmul.bf16.gmra.mxu0 %v491
      %v647 = vpop.f32.mrf.mxu0
      %v648 = vadd.f32 %v243, %v647
      %v649 = vpop.f32.mrf.mxu0
      %v650 = vadd.f32 %v243, %v649
      %651 = vmatmul.bf16.gmra.mxu0 %v494
      %v652 = vpop.f32.mrf.mxu0
      %v653 = vadd.f32 %v243, %v652
      %v654 = vpop.f32.mrf.mxu0
      %v655 = vadd.f32 %v243, %v654
      %656 = vmatmul.bf16.gmra.mxu0 %v497
      %v657 = vpop.f32.mrf.mxu0
      %v658 = vadd.f32 %v243, %v657
      %v659 = vpop.f32.mrf.mxu0
      %v660 = vadd.f32 %v243, %v659
      %661 = vmatmul.bf16.gmra.mxu0 %v500
      %v662 = vpop.f32.mrf.mxu0
      %v663 = vadd.f32 %v243, %v662
      %v664 = vpop.f32.mrf.mxu0
      %v665 = vadd.f32 %v243, %v664
      %666 = vmatmul.bf16.gmra.mxu0 %v503
      %v667 = vpop.f32.mrf.mxu0
      %v668 = vadd.f32 %v243, %v667
      %v669 = vpop.f32.mrf.mxu0
      %v670 = vadd.f32 %v243, %v669
      %671 = vmatmul.bf16.gmra.mxu0 %v506
      %v672 = vpop.f32.mrf.mxu0
      %v673 = vadd.f32 %v243, %v672
      %v674 = vpop.f32.mrf.mxu0
      %v675 = vadd.f32 %v243, %v674
      %676 = vdwg.mxu0
      %vm677 = vcmp.ge.f32.partialorder %v518, 0.0
      %vm678 = vcmp.ge.f32.partialorder %v520, 0.0
      %vm679 = vcmp.ge.f32.partialorder %v523, 0.0
      %vm680 = vcmp.ge.f32.partialorder %v525, 0.0
      %vm681 = vcmp.ge.f32.partialorder %v528, 0.0
      %vm682 = vcmp.ge.f32.partialorder %v530, 0.0
      %vm683 = vcmp.ge.f32.partialorder %v533, 0.0
      %vm684 = vcmp.ge.f32.partialorder %v535, 0.0
      %vm685 = vcmp.ge.f32.partialorder %v538, 0.0
      %vm686 = vcmp.ge.f32.partialorder %v540, 0.0
      %vm687 = vcmp.ge.f32.partialorder %v543, 0.0
      %vm688 = vcmp.ge.f32.partialorder %v545, 0.0
      %vm689 = vcmp.ge.f32.partialorder %v548, 0.0
      %vm690 = vcmp.ge.f32.partialorder %v550, 0.0
      %vm691 = vcmp.ge.f32.partialorder %v553, 0.0
      %vm692 = vcmp.ge.f32.partialorder %v555, 0.0
      %vm693 = vcmp.ge.f32.partialorder %v558, 0.0
      %vm694 = vcmp.ge.f32.partialorder %v560, 0.0
      %vm695 = vcmp.ge.f32.partialorder %v563, 0.0
      %vm696 = vcmp.ge.f32.partialorder %v565, 0.0
      %vm697 = vcmp.ge.f32.partialorder %v568, 0.0
      %vm698 = vcmp.ge.f32.partialorder %v570, 0.0
      %vm699 = vcmp.ge.f32.partialorder %v573, 0.0
      %vm700 = vcmp.ge.f32.partialorder %v575, 0.0
      %vm701 = vcmp.ge.f32.partialorder %v578, 0.0
      %vm702 = vcmp.ge.f32.partialorder %v580, 0.0
      %vm703 = vcmp.ge.f32.partialorder %v583, 0.0
      %vm704 = vcmp.ge.f32.partialorder %v585, 0.0
      %vm705 = vcmp.ge.f32.partialorder %v588, 0.0
      %vm706 = vcmp.ge.f32.partialorder %v590, 0.0
      %vm707 = vcmp.ge.f32.partialorder %v593, 0.0
      %vm708 = vcmp.ge.f32.partialorder %v595, 0.0
      %vm709 = vcmp.ge.f32.partialorder %v598, 0.0
      %vm710 = vcmp.ge.f32.partialorder %v600, 0.0
      %vm711 = vcmp.ge.f32.partialorder %v603, 0.0
      %vm712 = vcmp.ge.f32.partialorder %v605, 0.0
      %vm713 = vcmp.ge.f32.partialorder %v608, 0.0
      %vm714 = vcmp.ge.f32.partialorder %v610, 0.0
      %vm715 = vcmp.ge.f32.partialorder %v613, 0.0
      %vm716 = vcmp.ge.f32.partialorder %v615, 0.0
      %vm717 = vcmp.ge.f32.partialorder %v618, 0.0
      %vm718 = vcmp.ge.f32.partialorder %v620, 0.0
      %vm719 = vcmp.ge.f32.partialorder %v623, 0.0
      %vm720 = vcmp.ge.f32.partialorder %v625, 0.0
      %vm721 = vcmp.ge.f32.partialorder %v628, 0.0
      %vm722 = vcmp.ge.f32.partialorder %v630, 0.0
      %vm723 = vcmp.ge.f32.partialorder %v633, 0.0
      %vm724 = vcmp.ge.f32.partialorder %v635, 0.0
      %vm725 = vcmp.ge.f32.partialorder %v638, 0.0
      %vm726 = vcmp.ge.f32.partialorder %v640, 0.0
      %vm727 = vcmp.ge.f32.partialorder %v643, 0.0
      %vm728 = vcmp.ge.f32.partialorder %v645, 0.0
      %vm729 = vcmp.ge.f32.partialorder %v648, 0.0
      %vm730 = vcmp.ge.f32.partialorder %v650, 0.0
      %vm731 = vcmp.ge.f32.partialorder %v653, 0.0
      %vm732 = vcmp.ge.f32.partialorder %v655, 0.0
      %vm733 = vcmp.ge.f32.partialorder %v658, 0.0
      %vm734 = vcmp.ge.f32.partialorder %v660, 0.0
      %vm735 = vcmp.ge.f32.partialorder %v663, 0.0
      %vm736 = vcmp.ge.f32.partialorder %v665, 0.0
      %vm737 = vcmp.ge.f32.partialorder %v668, 0.0
      %vm738 = vcmp.ge.f32.partialorder %v670, 0.0
      %vm739 = vcmp.ge.f32.partialorder %v673, 0.0
      %vm740 = vcmp.ge.f32.partialorder %v675, 0.0
      %v741 = vmul.f32 %v518, 0.2
      %v742 = vmul.f32 %v520, 0.2
      %v743 = vmul.f32 %v523, 0.2
      %v744 = vmul.f32 %v525, 0.2
      %v745 = vmul.f32 %v528, 0.2
      %v746 = vmul.f32 %v530, 0.2
      %v747 = vmul.f32 %v533, 0.2
      %v748 = vmul.f32 %v535, 0.2
      %v749 = vmul.f32 %v538, 0.2
      %v750 = vmul.f32 %v540, 0.2
      %v751 = vmul.f32 %v543, 0.2
      %v752 = vmul.f32 %v545, 0.2
      %v753 = vmul.f32 %v548, 0.2
      %v754 = vmul.f32 %v550, 0.2
      %v755 = vmul.f32 %v553, 0.2
      %v756 = vmul.f32 %v555, 0.2
      %v757 = vmul.f32 %v558, 0.2
      %v758 = vmul.f32 %v560, 0.2
      %v759 = vmul.f32 %v563, 0.2
      %v760 = vmul.f32 %v565, 0.2
      %v761 = vmul.f32 %v568, 0.2
      %v762 = vmul.f32 %v570, 0.2
      %v763 = vmul.f32 %v573, 0.2
      %v764 = vmul.f32 %v575, 0.2
      %v765 = vmul.f32 %v578, 0.2
      %v766 = vmul.f32 %v580, 0.2
      %v767 = vmul.f32 %v583, 0.2
      %v768 = vmul.f32 %v585, 0.2
      %v769 = vmul.f32 %v588, 0.2
      %v770 = vmul.f32 %v590, 0.2
      %v771 = vmul.f32 %v593, 0.2
      %v772 = vmul.f32 %v595, 0.2
      %v773 = vmul.f32 %v598, 0.2
      %v774 = vmul.f32 %v600, 0.2
      %v775 = vmul.f32 %v603, 0.2
      %v776 = vmul.f32 %v605, 0.2
      %v777 = vmul.f32 %v608, 0.2
      %v778 = vmul.f32 %v610, 0.2
      %v779 = vmul.f32 %v613, 0.2
      %v780 = vmul.f32 %v615, 0.2
      %v781 = vmul.f32 %v618, 0.2
      %v782 = vmul.f32 %v620, 0.2
      %v783 = vmul.f32 %v623, 0.2
      %v784 = vmul.f32 %v625, 0.2
      %v785 = vmul.f32 %v628, 0.2
      %v786 = vmul.f32 %v630, 0.2
      %v787 = vmul.f32 %v633, 0.2
      %v788 = vmul.f32 %v635, 0.2
      %v789 = vmul.f32 %v638, 0.2
      %v790 = vmul.f32 %v640, 0.2
      %v791 = vmul.f32 %v643, 0.2
      %v792 = vmul.f32 %v645, 0.2
      %v793 = vmul.f32 %v648, 0.2
      %v794 = vmul.f32 %v650, 0.2
      %v795 = vmul.f32 %v653, 0.2
      %v796 = vmul.f32 %v655, 0.2
      %v797 = vmul.f32 %v658, 0.2
      %v798 = vmul.f32 %v660, 0.2
      %v799 = vmul.f32 %v663, 0.2
      %v800 = vmul.f32 %v665, 0.2
      %v801 = vmul.f32 %v668, 0.2
      %v802 = vmul.f32 %v670, 0.2
      %v803 = vmul.f32 %v673, 0.2
      %v804 = vmul.f32 %v675, 0.2
      %v805 = vsel %vm677, %v518, %v741
      %v806 = vsel %vm678, %v520, %v742
      %v807 = vsel %vm679, %v523, %v743
      %v808 = vsel %vm680, %v525, %v744
      %v809 = vsel %vm681, %v528, %v745
      %v810 = vsel %vm682, %v530, %v746
      %v811 = vsel %vm683, %v533, %v747
      %v812 = vsel %vm684, %v535, %v748
      %v813 = vsel %vm685, %v538, %v749
      %v814 = vsel %vm686, %v540, %v750
      %v815 = vsel %vm687, %v543, %v751
      %v816 = vsel %vm688, %v545, %v752
      %v817 = vsel %vm689, %v548, %v753
      %v818 = vsel %vm690, %v550, %v754
      %v819 = vsel %vm691, %v553, %v755
      %v820 = vsel %vm692, %v555, %v756
      %v821 = vsel %vm693, %v558, %v757
      %v822 = vsel %vm694, %v560, %v758
      %v823 = vsel %vm695, %v563, %v759
      %v824 = vsel %vm696, %v565, %v760
      %v825 = vsel %vm697, %v568, %v761
      %v826 = vsel %vm698, %v570, %v762
      %v827 = vsel %vm699, %v573, %v763
      %v828 = vsel %vm700, %v575, %v764
      %v829 = vsel %vm701, %v578, %v765
      %v830 = vsel %vm702, %v580, %v766
      %v831 = vsel %vm703, %v583, %v767
      %v832 = vsel %vm704, %v585, %v768
      %v833 = vsel %vm705, %v588, %v769
      %v834 = vsel %vm706, %v590, %v770
      %v835 = vsel %vm707, %v593, %v771
      %v836 = vsel %vm708, %v595, %v772
      %v837 = vsel %vm709, %v598, %v773
      %v838 = vsel %vm710, %v600, %v774
      %v839 = vsel %vm711, %v603, %v775
      %v840 = vsel %vm712, %v605, %v776
      %v841 = vsel %vm713, %v608, %v777
      %v842 = vsel %vm714, %v610, %v778
      %v843 = vsel %vm715, %v613, %v779
      %v844 = vsel %vm716, %v615, %v780
      %v845 = vsel %vm717, %v618, %v781
      %v846 = vsel %vm718, %v620, %v782
      %v847 = vsel %vm719, %v623, %v783
      %v848 = vsel %vm720, %v625, %v784
      %v849 = vsel %vm721, %v628, %v785
      %v850 = vsel %vm722, %v630, %v786
      %v851 = vsel %vm723, %v633, %v787
      %v852 = vsel %vm724, %v635, %v788
      %v853 = vsel %vm725, %v638, %v789
      %v854 = vsel %vm726, %v640, %v790
      %v855 = vsel %vm727, %v643, %v791
      %v856 = vsel %vm728, %v645, %v792
      %v857 = vsel %vm729, %v648, %v793
      %v858 = vsel %vm730, %v650, %v794
      %v859 = vsel %vm731, %v653, %v795
      %v860 = vsel %vm732, %v655, %v796
      %v861 = vsel %vm733, %v658, %v797
      %v862 = vsel %vm734, %v660, %v798
      %v863 = vsel %vm735, %v663, %v799
      %v864 = vsel %vm736, %v665, %v800
      %v865 = vsel %vm737, %v668, %v801
      %v866 = vsel %vm738, %v670, %v802
      %v867 = vsel %vm739, %v673, %v803
      %v868 = vsel %vm740, %v675, %v804
      %v869 = vpack.c.bf16 %v805, %v805
      %v870 = vpack.c.bf16 %v806, %v806
      %v871 = vpack.c.bf16 %v807, %v807
      %v872 = vpack.c.bf16 %v808, %v808
      %v873 = vpack.c.bf16 %v809, %v809
      %v874 = vpack.c.bf16 %v810, %v810
      %v875 = vpack.c.bf16 %v811, %v811
      %v876 = vpack.c.bf16 %v812, %v812
      %v877 = vpack.c.bf16 %v813, %v813
      %v878 = vpack.c.bf16 %v814, %v814
      %v879 = vpack.c.bf16 %v815, %v815
      %v880 = vpack.c.bf16 %v816, %v816
      %v881 = vpack.c.bf16 %v817, %v817
      %v882 = vpack.c.bf16 %v818, %v818
      %v883 = vpack.c.bf16 %v819, %v819
      %v884 = vpack.c.bf16 %v820, %v820
      %v885 = vpack.c.bf16 %v821, %v821
      %v886 = vpack.c.bf16 %v822, %v822
      %v887 = vpack.c.bf16 %v823, %v823
      %v888 = vpack.c.bf16 %v824, %v824
      %v889 = vpack.c.bf16 %v825, %v825
      %v890 = vpack.c.bf16 %v826, %v826
      %v891 = vpack.c.bf16 %v827, %v827
      %v892 = vpack.c.bf16 %v828, %v828
      %v893 = vpack.c.bf16 %v829, %v829
      %v894 = vpack.c.bf16 %v830, %v830
      %v895 = vpack.c.bf16 %v831, %v831
      %v896 = vpack.c.bf16 %v832, %v832
      %v897 = vpack.c.bf16 %v833, %v833
      %v898 = vpack.c.bf16 %v834, %v834
      %v899 = vpack.c.bf16 %v835, %v835
      %v900 = vpack.c.bf16 %v836, %v836
      %v901 = vpack.c.bf16 %v837, %v837
      %v902 = vpack.c.bf16 %v838, %v838
      %v903 = vpack.c.bf16 %v839, %v839
      %v904 = vpack.c.bf16 %v840, %v840
      %v905 = vpack.c.bf16 %v841, %v841
      %v906 = vpack.c.bf16 %v842, %v842
      %v907 = vpack.c.bf16 %v843, %v843
      %v908 = vpack.c.bf16 %v844, %v844
      %v909 = vpack.c.bf16 %v845, %v845
      %v910 = vpack.c.bf16 %v846, %v846
      %v911 = vpack.c.bf16 %v847, %v847
      %v912 = vpack.c.bf16 %v848, %v848
      %v913 = vpack.c.bf16 %v849, %v849
      %v914 = vpack.c.bf16 %v850, %v850
      %v915 = vpack.c.bf16 %v851, %v851
      %v916 = vpack.c.bf16 %v852, %v852
      %v917 = vpack.c.bf16 %v853, %v853
      %v918 = vpack.c.bf16 %v854, %v854
      %v919 = vpack.c.bf16 %v855, %v855
      %v920 = vpack.c.bf16 %v856, %v856
      %v921 = vpack.c.bf16 %v857, %v857
      %v922 = vpack.c.bf16 %v858, %v858
      %v923 = vpack.c.bf16 %v859, %v859
      %v924 = vpack.c.bf16 %v860, %v860
      %v925 = vpack.c.bf16 %v861, %v861
      %v926 = vpack.c.bf16 %v862, %v862
      %v927 = vpack.c.bf16 %v863, %v863
      %v928 = vpack.c.bf16 %v864, %v864
      %v929 = vpack.c.bf16 %v865, %v865
      %v930 = vpack.c.bf16 %v866, %v866
      %v931 = vpack.c.bf16 %v867, %v867
      %v932 = vpack.c.bf16 %v868, %v868
      %vm933 = vcmask 27648
      %934 = vst.msk [vmem:[%s172] sm:$0xf] %vm933, %v869
      %935 = vst.msk [vmem:[%s172 + $0x4] sm:$0xf] %vm933, %v870
      %936 = vst.msk [vmem:[%s172 + $0x8] sm:$0xf] %vm933, %v871
      %937 = vst.msk [vmem:[%s172 + $0xc] sm:$0xf] %vm933, %v872
      %938 = vst.msk [vmem:[%s172 + $0x10] sm:$0xf] %vm933, %v873
      %939 = vst.msk [vmem:[%s172 + $0x14] sm:$0xf] %vm933, %v874
      %940 = vst.msk [vmem:[%s172 + $0x18] sm:$0xf] %vm933, %v875
      %941 = vst.msk [vmem:[%s172 + $0x1c] sm:$0xf] %vm933, %v876
      %942 = vst.msk [vmem:[%s172 + $0x20] sm:$0xf] %vm933, %v877
      %943 = vst.msk [vmem:[%s172 + $0x24] sm:$0xf] %vm933, %v878
      %944 = vst.msk [vmem:[%s172 + $0x28] sm:$0xf] %vm933, %v879
      %945 = vst.msk [vmem:[%s172 + $0x2c] sm:$0xf] %vm933, %v880
      %946 = vst.msk [vmem:[%s172 + $0x30] sm:$0xf] %vm933, %v881
      %947 = vst.msk [vmem:[%s172 + $0x34] sm:$0xf] %vm933, %v882
      %948 = vst.msk [vmem:[%s172 + $0x38] sm:$0xf] %vm933, %v883
      %949 = vst.msk [vmem:[%s172 + $0x3c] sm:$0xf] %vm933, %v884
      %950 = vst.msk [vmem:[%s172 + $0x40] sm:$0xf] %vm933, %v885
      %951 = vst.msk [vmem:[%s172 + $0x44] sm:$0xf] %vm933, %v886
      %952 = vst.msk [vmem:[%s172 + $0x48] sm:$0xf] %vm933, %v887
      %953 = vst.msk [vmem:[%s172 + $0x4c] sm:$0xf] %vm933, %v888
      %954 = vst.msk [vmem:[%s172 + $0x50] sm:$0xf] %vm933, %v889
      %955 = vst.msk [vmem:[%s172 + $0x54] sm:$0xf] %vm933, %v890
      %956 = vst.msk [vmem:[%s172 + $0x58] sm:$0xf] %vm933, %v891
      %957 = vst.msk [vmem:[%s172 + $0x5c] sm:$0xf] %vm933, %v892
      %958 = vst.msk [vmem:[%s172 + $0x60] sm:$0xf] %vm933, %v893
      %959 = vst.msk [vmem:[%s172 + $0x64] sm:$0xf] %vm933, %v894
      %960 = vst.msk [vmem:[%s172 + $0x68] sm:$0xf] %vm933, %v895
      %961 = vst.msk [vmem:[%s172 + $0x6c] sm:$0xf] %vm933, %v896
      %962 = vst.msk [vmem:[%s172 + $0x70] sm:$0xf] %vm933, %v897
      %963 = vst.msk [vmem:[%s172 + $0x74] sm:$0xf] %vm933, %v898
      %964 = vst.msk [vmem:[%s172 + $0x78] sm:$0xf] %vm933, %v899
      %965 = vst.msk [vmem:[%s172 + $0x7c] sm:$0xf] %vm933, %v900
      %966 = vst.msk [vmem:[%s172 + $0x80] sm:$0xf] %vm933, %v901
      %967 = vst.msk [vmem:[%s172 + $0x84] sm:$0xf] %vm933, %v902
      %968 = vst.msk [vmem:[%s172 + $0x88] sm:$0xf] %vm933, %v903
      %969 = vst.msk [vmem:[%s172 + $0x8c] sm:$0xf] %vm933, %v904
      %970 = vst.msk [vmem:[%s172 + $0x90] sm:$0xf] %vm933, %v905
      %971 = vst.msk [vmem:[%s172 + $0x94] sm:$0xf] %vm933, %v906
      %972 = vst.msk [vmem:[%s172 + $0x98] sm:$0xf] %vm933, %v907
      %973 = vst.msk [vmem:[%s172 + $0x9c] sm:$0xf] %vm933, %v908
      %974 = vst.msk [vmem:[%s172 + $0xa0] sm:$0xf] %vm933, %v909
      %975 = vst.msk [vmem:[%s172 + $0xa4] sm:$0xf] %vm933, %v910
      %976 = vst.msk [vmem:[%s172 + $0xa8] sm:$0xf] %vm933, %v911
      %977 = vst.msk [vmem:[%s172 + $0xac] sm:$0xf] %vm933, %v912
      %978 = vst.msk [vmem:[%s172 + $0xb0] sm:$0xf] %vm933, %v913
      %979 = vst.msk [vmem:[%s172 + $0xb4] sm:$0xf] %vm933, %v914
      %980 = vst.msk [vmem:[%s172 + $0xb8] sm:$0xf] %vm933, %v915
      %981 = vst.msk [vmem:[%s172 + $0xbc] sm:$0xf] %vm933, %v916
      %982 = vst.msk [vmem:[%s172 + $0xc0] sm:$0xf] %vm933, %v917
      %983 = vst.msk [vmem:[%s172 + $0xc4] sm:$0xf] %vm933, %v918
      %984 = vst.msk [vmem:[%s172 + $0xc8] sm:$0xf] %vm933, %v919
      %985 = vst.msk [vmem:[%s172 + $0xcc] sm:$0xf] %vm933, %v920
      %986 = vst.msk [vmem:[%s172 + $0xd0] sm:$0xf] %vm933, %v921
      %987 = vst.msk [vmem:[%s172 + $0xd4] sm:$0xf] %vm933, %v922
      %988 = vst.msk [vmem:[%s172 + $0xd8] sm:$0xf] %vm933, %v923
      %989 = vst.msk [vmem:[%s172 + $0xdc] sm:$0xf] %vm933, %v924
      %990 = vst.msk [vmem:[%s172 + $0xe0] sm:$0xf] %vm933, %v925
      %991 = vst.msk [vmem:[%s172 + $0xe4] sm:$0xf] %vm933, %v926
      %992 = vst.msk [vmem:[%s172 + $0xe8] sm:$0xf] %vm933, %v927
      %993 = vst.msk [vmem:[%s172 + $0xec] sm:$0xf] %vm933, %v928
      %994 = vst.msk [vmem:[%s172 + $0xf0] sm:$0xf] %vm933, %v929
      %995 = vst.msk [vmem:[%s172 + $0xf4] sm:$0xf] %vm933, %v930
      %996 = vst.msk [vmem:[%s172 + $0xf8] sm:$0xf] %vm933, %v931
      %997 = vst.msk [vmem:[%s172 + $0xfc] sm:$0xf] %vm933, %v932
      %s998 = smul.u32 64, %s14
      %p999 = scmp.lt.s32.totalorder %s998, 255
      %s1000 = scalar_select %p999, %s998, 255
      %s1001 = smul.addr %s1000, 4
      %s1002 = scalar_lea.vmem %s3, %s1001
      // Predicated region
      $region33: #{dc_discriminator_forward.8} parent=31 // pred_check
        %p1003 = pneg %p100
      $region34: #{dc_discriminator_forward.8} parent=31 // pred_check_branch
        %1005 = sbr.rel (%p1003) target = $region36
      $region35: #{dc_discriminator_forward.8} parent=31 // pred_region
        %s1006 = smul.u32 64, %s14
      $region36: #{dc_discriminator_forward.8} parent=31 // pred_fallthru
        _
    $region32: #{dc_discriminator_forward.8} parent=5 // pred_fallthru
      _
    %p1007 = scmp.le.s32.totalorder 2, %s9
    // Predicated region
    $region37: #{dc_discriminator_forward.8} parent=5 // pred_check
      %p1008 = pneg %p1007
    $region38: #{dc_discriminator_forward.8} parent=5 // pred_check_branch
      %1010 = sbr.rel (%p1008) target = $region40
    $region39: #{dc_discriminator_forward.8} parent=5 // pred_region
      %s1011 = ssub.s32 %s9, 2
      // Predicated region
      $region41: #{dc_discriminator_forward.8} parent=39 // pred_check
        %p1012 = pneg %p106
      $region42: #{dc_discriminator_forward.8} parent=39 // pred_check_branch
        %1014 = sbr.rel (%p1012) target = $region44
      $region43: #{dc_discriminator_forward.8} parent=39 // pred_region
        %s1015 = smul.u32 64, %s15
        %p1016 = scmp.lt.s32.totalorder %s1015, 255
        %s1017 = scalar_select %p1016, %s1015, 255
        %s1018 = smul.addr %s1017, 4
        %s1019 = scalar_lea.vmem %s3, %s1018
      $region44: #{dc_discriminator_forward.8} parent=39 // pred_fallthru
        _
    $region40: #{dc_discriminator_forward.8} parent=5 // pred_fallthru
      _
  $region6: #{dc_discriminator_forward.8} parent=0 // loop_footer
    %s13 = sadd.s32 1, %s9
  $region7: #{dc_discriminator_forward.8} parent=0 // loop_footer_branch
    %8 = sbr.rel target = $region3
  $region8: #{dc_discriminator_forward.8} parent=0 // loop_exit
    _

// kernel: dc_discriminator_forward.10
$region0: #{dc_discriminator_forward.10}
  #allocation0 [shape = 'u32[]', space=smem, size = 0x4, offset = 0x4, fixed_abs, tag = 'smem constant byte address 0x4 - core index']
  #allocation1 [shape = 'u32[72,128]{1,0:T(1,128)}', space=vmem, size = 0x9000, scoped, tag = 'internal scratch']
  %s0 = inlined_call_operand.vmem [shape: bf16[512,8], index: 0, kind: input, shape index: {}]
  %s1 = inlined_call_operand.vmem [shape: f32[1,8], index: 1, kind: input, shape index: {}]
  %s2 = inlined_call_operand.vmem [shape: f32[1,8], index: 2, kind: input, shape index: {}]
  %s3 = inlined_call_operand.vmem [shape: bf16[512,8], index: 3, kind: output, shape index: {}]
  %s4 = sld [smem:[#allocation0]]
  $region22: #{dc_discriminator_forward.10} parent=0
    _
  %s6 = ssub.s32 1, %s4
  %s7 = scalar_select 0, %s6, %s4
  // Predicated region
  $region2: #{dc_discriminator_forward.10} parent=0 // pred_check
    _
  $region3: #{dc_discriminator_forward.10} parent=0 // pred_check_branch
    %9 = sbr.rel (0) target = $region5
  $region4: #{dc_discriminator_forward.10} parent=0 // pred_region
    _
  $region5: #{dc_discriminator_forward.10} parent=0 // pred_fallthru
    _
  // Predicated region
  $region6: #{dc_discriminator_forward.10} parent=0 // pred_check
    _
  $region7: #{dc_discriminator_forward.10} parent=0 // pred_check_branch
    %11 = sbr.rel (0) target = $region9
  $region8: #{dc_discriminator_forward.10} parent=0 // pred_region
    _
  $region9: #{dc_discriminator_forward.10} parent=0 // pred_fallthru
    _
  // Predicated region
  $region10: #{dc_discriminator_forward.10} parent=0 // pred_check
    _
  $region11: #{dc_discriminator_forward.10} parent=0 // pred_check_branch
    %13 = sbr.rel (0) target = $region13
  $region12: #{dc_discriminator_forward.10} parent=0 // pred_region
    _
  $region13: #{dc_discriminator_forward.10} parent=0 // pred_fallthru
    _
  %v14 = vld [vmem:[%s0] sm:$0xf]
  %v15 = vld [vmem:[%s0 + $0x4] sm:$0xf]
  %v16 = vld [vmem:[%s0 + $0x8] sm:$0xf]
  %v17 = vld [vmem:[%s0 + $0xc] sm:$0xf]
  %v18 = vld [vmem:[%s0 + $0x10] sm:$0xf]
  %v19 = vld [vmem:[%s0 + $0x14] sm:$0xf]
  %v20 = vld [vmem:[%s0 + $0x18] sm:$0xf]
  %v21 = vld [vmem:[%s0 + $0x1c] sm:$0xf]
  %v22 = vld [vmem:[%s0 + $0x20] sm:$0xf]
  %v23 = vld [vmem:[%s0 + $0x24] sm:$0xf]
  %v24 = vld [vmem:[%s0 + $0x28] sm:$0xf]
  %v25 = vld [vmem:[%s0 + $0x2c] sm:$0xf]
  %v26 = vld [vmem:[%s0 + $0x30] sm:$0xf]
  %v27 = vld [vmem:[%s0 + $0x34] sm:$0xf]
  %v28 = vld [vmem:[%s0 + $0x38] sm:$0xf]
  %v29 = vld [vmem:[%s0 + $0x3c] sm:$0xf]
  %v30 = vld [vmem:[%s0 + $0x40] sm:$0xf]
  %v31 = vld [vmem:[%s0 + $0x44] sm:$0xf]
  %v32 = vld [vmem:[%s0 + $0x48] sm:$0xf]
  %v33 = vld [vmem:[%s0 + $0x4c] sm:$0xf]
  %v34 = vld [vmem:[%s0 + $0x50] sm:$0xf]
  %v35 = vld [vmem:[%s0 + $0x54] sm:$0xf]
  %v36 = vld [vmem:[%s0 + $0x58] sm:$0xf]
  %v37 = vld [vmem:[%s0 + $0x5c] sm:$0xf]
  %v38 = vld [vmem:[%s0 + $0x60] sm:$0xf]
  %v39 = vld [vmem:[%s0 + $0x64] sm:$0xf]
  %v40 = vld [vmem:[%s0 + $0x68] sm:$0xf]
  %v41 = vld [vmem:[%s0 + $0x6c] sm:$0xf]
  %v42 = vld [vmem:[%s0 + $0x70] sm:$0xf]
  %v43 = vld [vmem:[%s0 + $0x74] sm:$0xf]
  %v44 = vld [vmem:[%s0 + $0x78] sm:$0xf]
  %v45 = vld [vmem:[%s0 + $0x7c] sm:$0xf]
  %v46 = vld [vmem:[%s0 + $0x80] sm:$0xf]
  %v47 = vld [vmem:[%s0 + $0x84] sm:$0xf]
  %v48 = vld [vmem:[%s0 + $0x88] sm:$0xf]
  %v49 = vld [vmem:[%s0 + $0x8c] sm:$0xf]
  %v50 = vld [vmem:[%s0 + $0x90] sm:$0xf]
  %v51 = vld [vmem:[%s0 + $0x94] sm:$0xf]
  %v52 = vld [vmem:[%s0 + $0x98] sm:$0xf]
  %v53 = vld [vmem:[%s0 + $0x9c] sm:$0xf]
  %v54 = vld [vmem:[%s0 + $0xa0] sm:$0xf]
  %v55 = vld [vmem:[%s0 + $0xa4] sm:$0xf]
  %v56 = vld [vmem:[%s0 + $0xa8] sm:$0xf]
  %v57 = vld [vmem:[%s0 + $0xac] sm:$0xf]
  %v58 = vld [vmem:[%s0 + $0xb0] sm:$0xf]
  %v59 = vld [vmem:[%s0 + $0xb4] sm:$0xf]
  %v60 = vld [vmem:[%s0 + $0xb8] sm:$0xf]
  %v61 = vld [vmem:[%s0 + $0xbc] sm:$0xf]
  %v62 = vld [vmem:[%s0 + $0xc0] sm:$0xf]
  %v63 = vld [vmem:[%s0 + $0xc4] sm:$0xf]
  %v64 = vld [vmem:[%s0 + $0xc8] sm:$0xf]
  %v65 = vld [vmem:[%s0 + $0xcc] sm:$0xf]
  %v66 = vld [vmem:[%s0 + $0xd0] sm:$0xf]
  %v67 = vld [vmem:[%s0 + $0xd4] sm:$0xf]
  %v68 = vld [vmem:[%s0 + $0xd8] sm:$0xf]
  %v69 = vld [vmem:[%s0 + $0xdc] sm:$0xf]
  %v70 = vld [vmem:[%s0 + $0xe0] sm:$0xf]
  %v71 = vld [vmem:[%s0 + $0xe4] sm:$0xf]
  %v72 = vld [vmem:[%s0 + $0xe8] sm:$0xf]
  %v73 = vld [vmem:[%s0 + $0xec] sm:$0xf]
  %v74 = vld [vmem:[%s0 + $0xf0] sm:$0xf]
  %v75 = vld [vmem:[%s0 + $0xf4] sm:$0xf]
  %v76 = vld [vmem:[%s0 + $0xf8] sm:$0xf]
  %v77 = vld [vmem:[%s0 + $0xfc] sm:$0xf]
  %v78 = vunpack.c.l.bf16 %v14
  %v79 = vunpack.c.l.bf16 %v15
  %v80 = vunpack.c.l.bf16 %v16
  %v81 = vunpack.c.l.bf16 %v17
  %v82 = vunpack.c.l.bf16 %v18
  %v83 = vunpack.c.l.bf16 %v19
  %v84 = vunpack.c.l.bf16 %v20
  %v85 = vunpack.c.l.bf16 %v21
  %v86 = vunpack.c.l.bf16 %v22
  %v87 = vunpack.c.l.bf16 %v23
  %v88 = vunpack.c.l.bf16 %v24
  %v89 = vunpack.c.l.bf16 %v25
  %v90 = vunpack.c.l.bf16 %v26
  %v91 = vunpack.c.l.bf16 %v27
  %v92 = vunpack.c.l.bf16 %v28
  %v93 = vunpack.c.l.bf16 %v29
  %v94 = vunpack.c.l.bf16 %v30
  %v95 = vunpack.c.l.bf16 %v31
  %v96 = vunpack.c.l.bf16 %v32
  %v97 = vunpack.c.l.bf16 %v33
  %v98 = vunpack.c.l.bf16 %v34
  %v99 = vunpack.c.l.bf16 %v35
  %v100 = vunpack.c.l.bf16 %v36
  %v101 = vunpack.c.l.bf16 %v37
  %v102 = vunpack.c.l.bf16 %v38
  %v103 = vunpack.c.l.bf16 %v39
  %v104 = vunpack.c.l.bf16 %v40
  %v105 = vunpack.c.l.bf16 %v41
  %v106 = vunpack.c.l.bf16 %v42
  %v107 = vunpack.c.l.bf16 %v43
  %v108 = vunpack.c.l.bf16 %v44
  %v109 = vunpack.c.l.bf16 %v45
  %v110 = vunpack.c.l.bf16 %v46
  %v111 = vunpack.c.l.bf16 %v47
  %v112 = vunpack.c.l.bf16 %v48
  %v113 = vunpack.c.l.bf16 %v49
  %v114 = vunpack.c.l.bf16 %v50
  %v115 = vunpack.c.l.bf16 %v51
  %v116 = vunpack.c.l.bf16 %v52
  %v117 = vunpack.c.l.bf16 %v53
  %v118 = vunpack.c.l.bf16 %v54
  %v119 = vunpack.c.l.bf16 %v55
  %v120 = vunpack.c.l.bf16 %v56
  %v121 = vunpack.c.l.bf16 %v57
  %v122 = vunpack.c.l.bf16 %v58
  %v123 = vunpack.c.l.bf16 %v59
  %v124 = vunpack.c.l.bf16 %v60
  %v125 = vunpack.c.l.bf16 %v61
  %v126 = vunpack.c.l.bf16 %v62
  %v127 = vunpack.c.l.bf16 %v63
  %v128 = vunpack.c.l.bf16 %v64
  %v129 = vunpack.c.l.bf16 %v65
  %v130 = vunpack.c.l.bf16 %v66
  %v131 = vunpack.c.l.bf16 %v67
  %v132 = vunpack.c.l.bf16 %v68
  %v133 = vunpack.c.l.bf16 %v69
  %v134 = vunpack.c.l.bf16 %v70
  %v135 = vunpack.c.l.bf16 %v71
  %v136 = vunpack.c.l.bf16 %v72
  %v137 = vunpack.c.l.bf16 %v73
  %v138 = vunpack.c.l.bf16 %v74
  %v139 = vunpack.c.l.bf16 %v75
  %v140 = vunpack.c.l.bf16 %v76
  %v141 = vunpack.c.l.bf16 %v77
  %v142 = vld [vmem:[%s1] sm:$0x1]
  %v144 = vperm.slane %v142, 0
  %v146 = vmul.f32 %v78, %v144
  %v147 = vmul.f32 %v79, %v144
  %v148 = vmul.f32 %v80, %v144
  %v149 = vmul.f32 %v81, %v144
  %v150 = vmul.f32 %v82, %v144
  %v151 = vmul.f32 %v83, %v144
  %v152 = vmul.f32 %v84, %v144
  %v153 = vmul.f32 %v85, %v144
  %v154 = vmul.f32 %v86, %v144
  %v155 = vmul.f32 %v87, %v144
  %v156 = vmul.f32 %v88, %v144
  %v157 = vmul.f32 %v89, %v144
  %v158 = vmul.f32 %v90, %v144
  %v159 = vmul.f32 %v91, %v144
  %v160 = vmul.f32 %v92, %v144
  %v161 = vmul.f32 %v93, %v144
  %v162 = vmul.f32 %v94, %v144
  %v163 = vmul.f32 %v95, %v144
  %v164 = vmul.f32 %v96, %v144
  %v165 = vmul.f32 %v97, %v144
  %v166 = vmul.f32 %v98, %v144
  %v167 = vmul.f32 %v99, %v144
  %v168 = vmul.f32 %v100, %v144
  %v169 = vmul.f32 %v101, %v144
  %v170 = vmul.f32 %v102, %v144
  %v171 = vmul.f32 %v103, %v144
  %v172 = vmul.f32 %v104, %v144
  %v173 = vmul.f32 %v105, %v144
  %v174 = vmul.f32 %v106, %v144
  %v175 = vmul.f32 %v107, %v144
  %v176 = vmul.f32 %v108, %v144
  %v177 = vmul.f32 %v109, %v144
  %v178 = vmul.f32 %v110, %v144
  %v179 = vmul.f32 %v111, %v144
  %v180 = vmul.f32 %v112, %v144
  %v181 = vmul.f32 %v113, %v144
  %v182 = vmul.f32 %v114, %v144
  %v183 = vmul.f32 %v115, %v144
  %v184 = vmul.f32 %v116, %v144
  %v185 = vmul.f32 %v117, %v144
  %v186 = vmul.f32 %v118, %v144
  %v187 = vmul.f32 %v119, %v144
  %v188 = vmul.f32 %v120, %v144
  %v189 = vmul.f32 %v121, %v144
  %v190 = vmul.f32 %v122, %v144
  %v191 = vmul.f32 %v123, %v144
  %v192 = vmul.f32 %v124, %v144
  %v193 = vmul.f32 %v125, %v144
  %v194 = vmul.f32 %v126, %v144
  %v195 = vmul.f32 %v127, %v144
  %v196 = vmul.f32 %v128, %v144
  %v197 = vmul.f32 %v129, %v144
  %v198 = vmul.f32 %v130, %v144
  %v199 = vmul.f32 %v131, %v144
  %v200 = vmul.f32 %v132, %v144
  %v201 = vmul.f32 %v133, %v144
  %v202 = vmul.f32 %v134, %v144
  %v203 = vmul.f32 %v135, %v144
  %v204 = vmul.f32 %v136, %v144
  %v205 = vmul.f32 %v137, %v144
  %v206 = vmul.f32 %v138, %v144
  %v207 = vmul.f32 %v139, %v144
  %v208 = vmul.f32 %v140, %v144
  %v209 = vmul.f32 %v141, %v144
  %v210 = vld [vmem:[%s2] sm:$0x1]
  %v212 = vperm.slane %v210, 0
  %v214 = vadd.f32 %v146, %v212
  %v215 = vadd.f32 %v147, %v212
  %v216 = vadd.f32 %v148, %v212
  %v217 = vadd.f32 %v149, %v212
  %v218 = vadd.f32 %v150, %v212
  %v219 = vadd.f32 %v151, %v212
  %v220 = vadd.f32 %v152, %v212
  %v221 = vadd.f32 %v153, %v212
  %v222 = vadd.f32 %v154, %v212
  %v223 = vadd.f32 %v155, %v212
  %v224 = vadd.f32 %v156, %v212
  %v225 = vadd.f32 %v157, %v212
  %v226 = vadd.f32 %v158, %v212
  %v227 = vadd.f32 %v159, %v212
  %v228 = vadd.f32 %v160, %v212
  %v229 = vadd.f32 %v161, %v212
  %v230 = vadd.f32 %v162, %v212
  %v231 = vadd.f32 %v163, %v212
  %v232 = vadd.f32 %v164, %v212
  %v233 = vadd.f32 %v165, %v212
  %v234 = vadd.f32 %v166, %v212
  %v235 = vadd.f32 %v167, %v212
  %v236 = vadd.f32 %v168, %v212
  %v237 = vadd.f32 %v169, %v212
  %v238 = vadd.f32 %v170, %v212
  %v239 = vadd.f32 %v171, %v212
  %v240 = vadd.f32 %v172, %v212
  %v241 = vadd.f32 %v173, %v212
  %v242 = vadd.f32 %v174, %v212
  %v243 = vadd.f32 %v175, %v212
  %v244 = vadd.f32 %v176, %v212
  %v245 = vadd.f32 %v177, %v212
  %v246 = vadd.f32 %v178, %v212
  %v247 = vadd.f32 %v179, %v212
  %v248 = vadd.f32 %v180, %v212
  %v249 = vadd.f32 %v181, %v212
  %v250 = vadd.f32 %v182, %v212
  %v251 = vadd.f32 %v183, %v212
  %v252 = vadd.f32 %v184, %v212
  %v253 = vadd.f32 %v185, %v212
  %v254 = vadd.f32 %v186, %v212
  %v255 = vadd.f32 %v187, %v212
  %v256 = vadd.f32 %v188, %v212
  %v257 = vadd.f32 %v189, %v212
  %v258 = vadd.f32 %v190, %v212
  %v259 = vadd.f32 %v191, %v212
  %v260 = vadd.f32 %v192, %v212
  %v261 = vadd.f32 %v193, %v212
  %v262 = vadd.f32 %v194, %v212
  %v263 = vadd.f32 %v195, %v212
  %v264 = vadd.f32 %v196, %v212
  %v265 = vadd.f32 %v197, %v212
  %v266 = vadd.f32 %v198, %v212
  %v267 = vadd.f32 %v199, %v212
  %v268 = vadd.f32 %v200, %v212
  %v269 = vadd.f32 %v201, %v212
  %v270 = vadd.f32 %v202, %v212
  %v271 = vadd.f32 %v203, %v212
  %v272 = vadd.f32 %v204, %v212
  %v273 = vadd.f32 %v205, %v212
  %v274 = vadd.f32 %v206, %v212
  %v275 = vadd.f32 %v207, %v212
  %v276 = vadd.f32 %v208, %v212
  %v277 = vadd.f32 %v209, %v212
  %vm278 = vcmp.ge.f32.partialorder %v214, 0.0
  %vm279 = vcmp.ge.f32.partialorder %v215, 0.0
  %vm280 = vcmp.ge.f32.partialorder %v216, 0.0
  %vm281 = vcmp.ge.f32.partialorder %v217, 0.0
  %vm282 = vcmp.ge.f32.partialorder %v218, 0.0
  %vm283 = vcmp.ge.f32.partialorder %v219, 0.0
  %vm284 = vcmp.ge.f32.partialorder %v220, 0.0
  %vm285 = vcmp.ge.f32.partialorder %v221, 0.0
  %vm286 = vcmp.ge.f32.partialorder %v222, 0.0
  %vm287 = vcmp.ge.f32.partialorder %v223, 0.0
  %vm288 = vcmp.ge.f32.partialorder %v224, 0.0
  %vm289 = vcmp.ge.f32.partialorder %v225, 0.0
  %vm290 = vcmp.ge.f32.partialorder %v226, 0.0
  %vm291 = vcmp.ge.f32.partialorder %v227, 0.0
  %vm292 = vcmp.ge.f32.partialorder %v228, 0.0
  %vm293 = vcmp.ge.f32.partialorder %v229, 0.0
  %vm294 = vcmp.ge.f32.partialorder %v230, 0.0
  %vm295 = vcmp.ge.f32.partialorder %v231, 0.0
  %vm296 = vcmp.ge.f32.partialorder %v232, 0.0
  %vm297 = vcmp.ge.f32.partialorder %v233, 0.0
  %vm298 = vcmp.ge.f32.partialorder %v234, 0.0
  %vm299 = vcmp.ge.f32.partialorder %v235, 0.0
  %vm300 = vcmp.ge.f32.partialorder %v236, 0.0
  %vm301 = vcmp.ge.f32.partialorder %v237, 0.0
  %vm302 = vcmp.ge.f32.partialorder %v238, 0.0
  %vm303 = vcmp.ge.f32.partialorder %v239, 0.0
  %vm304 = vcmp.ge.f32.partialorder %v240, 0.0
  %vm305 = vcmp.ge.f32.partialorder %v241, 0.0
  %vm306 = vcmp.ge.f32.partialorder %v242, 0.0
  %vm307 = vcmp.ge.f32.partialorder %v243, 0.0
  %vm308 = vcmp.ge.f32.partialorder %v244, 0.0
  %vm309 = vcmp.ge.f32.partialorder %v245, 0.0
  %vm310 = vcmp.ge.f32.partialorder %v246, 0.0
  %vm311 = vcmp.ge.f32.partialorder %v247, 0.0
  %vm312 = vcmp.ge.f32.partialorder %v248, 0.0
  %vm313 = vcmp.ge.f32.partialorder %v249, 0.0
  %vm314 = vcmp.ge.f32.partialorder %v250, 0.0
  %vm315 = vcmp.ge.f32.partialorder %v251, 0.0
  %vm316 = vcmp.ge.f32.partialorder %v252, 0.0
  %vm317 = vcmp.ge.f32.partialorder %v253, 0.0
  %vm318 = vcmp.ge.f32.partialorder %v254, 0.0
  %vm319 = vcmp.ge.f32.partialorder %v255, 0.0
  %vm320 = vcmp.ge.f32.partialorder %v256, 0.0
  %vm321 = vcmp.ge.f32.partialorder %v257, 0.0
  %vm322 = vcmp.ge.f32.partialorder %v258, 0.0
  %vm323 = vcmp.ge.f32.partialorder %v259, 0.0
  %vm324 = vcmp.ge.f32.partialorder %v260, 0.0
  %vm325 = vcmp.ge.f32.partialorder %v261, 0.0
  %vm326 = vcmp.ge.f32.partialorder %v262, 0.0
  %vm327 = vcmp.ge.f32.partialorder %v263, 0.0
  %vm328 = vcmp.ge.f32.partialorder %v264, 0.0
  %vm329 = vcmp.ge.f32.partialorder %v265, 0.0
  %vm330 = vcmp.ge.f32.partialorder %v266, 0.0
  %vm331 = vcmp.ge.f32.partialorder %v267, 0.0
  %vm332 = vcmp.ge.f32.partialorder %v268, 0.0
  %vm333 = vcmp.ge.f32.partialorder %v269, 0.0
  %vm334 = vcmp.ge.f32.partialorder %v270, 0.0
  %vm335 = vcmp.ge.f32.partialorder %v271, 0.0
  %vm336 = vcmp.ge.f32.partialorder %v272, 0.0
  %vm337 = vcmp.ge.f32.partialorder %v273, 0.0
  %vm338 = vcmp.ge.f32.partialorder %v274, 0.0
  %vm339 = vcmp.ge.f32.partialorder %v275, 0.0
  %vm340 = vcmp.ge.f32.partialorder %v276, 0.0
  %vm341 = vcmp.ge.f32.partialorder %v277, 0.0
  %v342 = vmul.f32 %v214, 0.2
  %v343 = vmul.f32 %v215, 0.2
  %v344 = vmul.f32 %v216, 0.2
  %v345 = vmul.f32 %v217, 0.2
  %v346 = vmul.f32 %v218, 0.2
  %v347 = vmul.f32 %v219, 0.2
  %v348 = vmul.f32 %v220, 0.2
  %v349 = vmul.f32 %v221, 0.2
  %v350 = vmul.f32 %v222, 0.2
  %v351 = vmul.f32 %v223, 0.2
  %v352 = vmul.f32 %v224, 0.2
  %v353 = vmul.f32 %v225, 0.2
  %v354 = vmul.f32 %v226, 0.2
  %v355 = vmul.f32 %v227, 0.2
  %v356 = vmul.f32 %v228, 0.2
  %v357 = vmul.f32 %v229, 0.2
  %v358 = vmul.f32 %v230, 0.2
  %v359 = vmul.f32 %v231, 0.2
  %v360 = vmul.f32 %v232, 0.2
  %v361 = vmul.f32 %v233, 0.2
  %v362 = vmul.f32 %v234, 0.2
  %v363 = vmul.f32 %v235, 0.2
  %v364 = vmul.f32 %v236, 0.2
  %v365 = vmul.f32 %v237, 0.2
  %v366 = vmul.f32 %v238, 0.2
  %v367 = vmul.f32 %v239, 0.2
  %v368 = vmul.f32 %v240, 0.2
  %v369 = vmul.f32 %v241, 0.2
  %v370 = vmul.f32 %v242, 0.2
  %v371 = vmul.f32 %v243, 0.2
  %v372 = vmul.f32 %v244, 0.2
  %v373 = vmul.f32 %v245, 0.2
  %v374 = vmul.f32 %v246, 0.2
  %v375 = vmul.f32 %v247, 0.2
  %v376 = vmul.f32 %v248, 0.2
  %v377 = vmul.f32 %v249, 0.2
  %v378 = vmul.f32 %v250, 0.2
  %v379 = vmul.f32 %v251, 0.2
  %v380 = vmul.f32 %v252, 0.2
  %v381 = vmul.f32 %v253, 0.2
  %v382 = vmul.f32 %v254, 0.2
  %v383 = vmul.f32 %v255, 0.2
  %v384 = vmul.f32 %v256, 0.2
  %v385 = vmul.f32 %v257, 0.2
  %v386 = vmul.f32 %v258, 0.2
  %v387 = vmul.f32 %v259, 0.2
  %v388 = vmul.f32 %v260, 0.2
  %v389 = vmul.f32 %v261, 0.2
  %v390 = vmul.f32 %v262, 0.2
  %v391 = vmul.f32 %v263, 0.2
  %v392 = vmul.f32 %v264, 0.2
  %v393 = vmul.f32 %v265, 0.2
  %v394 = vmul.f32 %v266, 0.2
  %v395 = vmul.f32 %v267, 0.2
  %v396 = vmul.f32 %v268, 0.2
  %v397 = vmul.f32 %v269, 0.2
  %v398 = vmul.f32 %v270, 0.2
  %v399 = vmul.f32 %v271, 0.2
  %v400 = vmul.f32 %v272, 0.2
  %v401 = vmul.f32 %v273, 0.2
  %v402 = vmul.f32 %v274, 0.2
  %v403 = vmul.f32 %v275, 0.2
  %v404 = vmul.f32 %v276, 0.2
  %v405 = vmul.f32 %v277, 0.2
  %v406 = vsel %vm278, %v214, %v342
  %v407 = vsel %vm279, %v215, %v343
  %v408 = vsel %vm280, %v216, %v344
  %v409 = vsel %vm281, %v217, %v345
  %v410 = vsel %vm282, %v218, %v346
  %v411 = vsel %vm283, %v219, %v347
  %v412 = vsel %vm284, %v220, %v348
  %v413 = vsel %vm285, %v221, %v349
  %v414 = vsel %vm286, %v222, %v350
  %v415 = vsel %vm287, %v223, %v351
  %v416 = vsel %vm288, %v224, %v352
  %v417 = vsel %vm289, %v225, %v353
  %v418 = vsel %vm290, %v226, %v354
  %v419 = vsel %vm291, %v227, %v355
  %v420 = vsel %vm292, %v228, %v356
  %v421 = vsel %vm293, %v229, %v357
  %v422 = vsel %vm294, %v230, %v358
  %v423 = vsel %vm295, %v231, %v359
  %v424 = vsel %vm296, %v232, %v360
  %v425 = vsel %vm297, %v233, %v361
  %v426 = vsel %vm298, %v234, %v362
  %v427 = vsel %vm299, %v235, %v363
  %v428 = vsel %vm300, %v236, %v364
  %v429 = vsel %vm301, %v237, %v365
  %v430 = vsel %vm302, %v238, %v366
  %v431 = vsel %vm303, %v239, %v367
  %v432 = vsel %vm304, %v240, %v368
  %v433 = vsel %vm305, %v241, %v369
  %v434 = vsel %vm306, %v242, %v370
  %v435 = vsel %vm307, %v243, %v371
  %v436 = vsel %vm308, %v244, %v372
  %v437 = vsel %vm309, %v245, %v373
  %v438 = vsel %vm310, %v246, %v374
  %v439 = vsel %vm311, %v247, %v375
  %v440 = vsel %vm312, %v248, %v376
  %v441 = vsel %vm313, %v249, %v377
  %v442 = vsel %vm314, %v250, %v378
  %v443 = vsel %vm315, %v251, %v379
  %v444 = vsel %vm316, %v252, %v380
  %v445 = vsel %vm317, %v253, %v381
  %v446 = vsel %vm318, %v254, %v382
  %v447 = vsel %vm319, %v255, %v383
  %v448 = vsel %vm320, %v256, %v384
  %v449 = vsel %vm321, %v257, %v385
  %v450 = vsel %vm322, %v258, %v386
  %v451 = vsel %vm323, %v259, %v387
  %v452 = vsel %vm324, %v260, %v388
  %v453 = vsel %vm325, %v261, %v389
  %v454 = vsel %vm326, %v262, %v390
  %v455 = vsel %vm327, %v263, %v391
  %v456 = vsel %vm328, %v264, %v392
  %v457 = vsel %vm329, %v265, %v393
  %v458 = vsel %vm330, %v266, %v394
  %v459 = vsel %vm331, %v267, %v395
  %v460 = vsel %vm332, %v268, %v396
  %v461 = vsel %vm333, %v269, %v397
  %v462 = vsel %vm334, %v270, %v398
  %v463 = vsel %vm335, %v271, %v399
  %v464 = vsel %vm336, %v272, %v400
  %v465 = vsel %vm337, %v273, %v401
  %v466 = vsel %vm338, %v274, %v402
  %v467 = vsel %vm339, %v275, %v403
  %v468 = vsel %vm340, %v276, %v404
  %v469 = vsel %vm341, %v277, %v405
  %v470 = vpack.c.bf16 %v406, %v406
  %v471 = vpack.c.bf16 %v407, %v407
  %v472 = vpack.c.bf16 %v408, %v408
  %v473 = vpack.c.bf16 %v409, %v409
  %v474 = vpack.c.bf16 %v410, %v410
  %v475 = vpack.c.bf16 %v411, %v411
  %v476 = vpack.c.bf16 %v412, %v412
  %v477 = vpack.c.bf16 %v413, %v413
  %v478 = vpack.c.bf16 %v414, %v414
  %v479 = vpack.c.bf16 %v415, %v415
  %v480 = vpack.c.bf16 %v416, %v416
  %v481 = vpack.c.bf16 %v417, %v417
  %v482 = vpack.c.bf16 %v418, %v418
  %v483 = vpack.c.bf16 %v419, %v419
  %v484 = vpack.c.bf16 %v420, %v420
  %v485 = vpack.c.bf16 %v421, %v421
  %v486 = vpack.c.bf16 %v422, %v422
  %v487 = vpack.c.bf16 %v423, %v423
  %v488 = vpack.c.bf16 %v424, %v424
  %v489 = vpack.c.bf16 %v425, %v425
  %v490 = vpack.c.bf16 %v426, %v426
  %v491 = vpack.c.bf16 %v427, %v427
  %v492 = vpack.c.bf16 %v428, %v428
  %v493 = vpack.c.bf16 %v429, %v429
  %v494 = vpack.c.bf16 %v430, %v430
  %v495 = vpack.c.bf16 %v431, %v431
  %v496 = vpack.c.bf16 %v432, %v432
  %v497 = vpack.c.bf16 %v433, %v433
  %v498 = vpack.c.bf16 %v434, %v434
  %v499 = vpack.c.bf16 %v435, %v435
  %v500 = vpack.c.bf16 %v436, %v436
  %v501 = vpack.c.bf16 %v437, %v437
  %v502 = vpack.c.bf16 %v438, %v438
  %v503 = vpack.c.bf16 %v439, %v439
  %v504 = vpack.c.bf16 %v440, %v440
  %v505 = vpack.c.bf16 %v441, %v441
  %v506 = vpack.c.bf16 %v442, %v442
  %v507 = vpack.c.bf16 %v443, %v443
  %v508 = vpack.c.bf16 %v444, %v444
  %v509 = vpack.c.bf16 %v445, %v445
  %v510 = vpack.c.bf16 %v446, %v446
  %v511 = vpack.c.bf16 %v447, %v447
  %v512 = vpack.c.bf16 %v448, %v448
  %v513 = vpack.c.bf16 %v449, %v449
  %v514 = vpack.c.bf16 %v450, %v450
  %v515 = vpack.c.bf16 %v451, %v451
  %v516 = vpack.c.bf16 %v452, %v452
  %v517 = vpack.c.bf16 %v453, %v453
  %v518 = vpack.c.bf16 %v454, %v454
  %v519 = vpack.c.bf16 %v455, %v455
  %v520 = vpack.c.bf16 %v456, %v456
  %v521 = vpack.c.bf16 %v457, %v457
  %v522 = vpack.c.bf16 %v458, %v458
  %v523 = vpack.c.bf16 %v459, %v459
  %v524 = vpack.c.bf16 %v460, %v460
  %v525 = vpack.c.bf16 %v461, %v461
  %v526 = vpack.c.bf16 %v462, %v462
  %v527 = vpack.c.bf16 %v463, %v463
  %v528 = vpack.c.bf16 %v464, %v464
  %v529 = vpack.c.bf16 %v465, %v465
  %v530 = vpack.c.bf16 %v466, %v466
  %v531 = vpack.c.bf16 %v467, %v467
  %v532 = vpack.c.bf16 %v468, %v468
  %v533 = vpack.c.bf16 %v469, %v469
  %vm534 = vcmask 60416
  %535 = vst.msk [vmem:[%s3] sm:$0xf] %vm534, %v470
  %536 = vst.msk [vmem:[%s3 + $0x4] sm:$0xf] %vm534, %v471
  %537 = vst.msk [vmem:[%s3 + $0x8] sm:$0xf] %vm534, %v472
  %538 = vst.msk [vmem:[%s3 + $0xc] sm:$0xf] %vm534, %v473
  %539 = vst.msk [vmem:[%s3 + $0x10] sm:$0xf] %vm534, %v474
  %540 = vst.msk [vmem:[%s3 + $0x14] sm:$0xf] %vm534, %v475
  %541 = vst.msk [vmem:[%s3 + $0x18] sm:$0xf] %vm534, %v476
  %542 = vst.msk [vmem:[%s3 + $0x1c] sm:$0xf] %vm534, %v477
  %543 = vst.msk [vmem:[%s3 + $0x20] sm:$0xf] %vm534, %v478
  %544 = vst.msk [vmem:[%s3 + $0x24] sm:$0xf] %vm534, %v479
  %545 = vst.msk [vmem:[%s3 + $0x28] sm:$0xf] %vm534, %v480
  %546 = vst.msk [vmem:[%s3 + $0x2c] sm:$0xf] %vm534, %v481
  %547 = vst.msk [vmem:[%s3 + $0x30] sm:$0xf] %vm534, %v482
  %548 = vst.msk [vmem:[%s3 + $0x34] sm:$0xf] %vm534, %v483
  %549 = vst.msk [vmem:[%s3 + $0x38] sm:$0xf] %vm534, %v484
  %550 = vst.msk [vmem:[%s3 + $0x3c] sm:$0xf] %vm534, %v485
  %551 = vst.msk [vmem:[%s3 + $0x40] sm:$0xf] %vm534, %v486
  %552 = vst.msk [vmem:[%s3 + $0x44] sm:$0xf] %vm534, %v487
  %553 = vst.msk [vmem:[%s3 + $0x48] sm:$0xf] %vm534, %v488
  %554 = vst.msk [vmem:[%s3 + $0x4c] sm:$0xf] %vm534, %v489
  %555 = vst.msk [vmem:[%s3 + $0x50] sm:$0xf] %vm534, %v490
  %556 = vst.msk [vmem:[%s3 + $0x54] sm:$0xf] %vm534, %v491
  %557 = vst.msk [vmem:[%s3 + $0x58] sm:$0xf] %vm534, %v492
  %558 = vst.msk [vmem:[%s3 + $0x5c] sm:$0xf] %vm534, %v493
  %559 = vst.msk [vmem:[%s3 + $0x60] sm:$0xf] %vm534, %v494
  %560 = vst.msk [vmem:[%s3 + $0x64] sm:$0xf] %vm534, %v495
  %561 = vst.msk [vmem:[%s3 + $0x68] sm:$0xf] %vm534, %v496
  %562 = vst.msk [vmem:[%s3 + $0x6c] sm:$0xf] %vm534, %v497
  %563 = vst.msk [vmem:[%s3 + $0x70] sm:$0xf] %vm534, %v498
  %564 = vst.msk [vmem:[%s3 + $0x74] sm:$0xf] %vm534, %v499
  %565 = vst.msk [vmem:[%s3 + $0x78] sm:$0xf] %vm534, %v500
  %566 = vst.msk [vmem:[%s3 + $0x7c] sm:$0xf] %vm534, %v501
  %567 = vst.msk [vmem:[%s3 + $0x80] sm:$0xf] %vm534, %v502
  %568 = vst.msk [vmem:[%s3 + $0x84] sm:$0xf] %vm534, %v503
  %569 = vst.msk [vmem:[%s3 + $0x88] sm:$0xf] %vm534, %v504
  %570 = vst.msk [vmem:[%s3 + $0x8c] sm:$0xf] %vm534, %v505
  %571 = vst.msk [vmem:[%s3 + $0x90] sm:$0xf] %vm534, %v506
  %572 = vst.msk [vmem:[%s3 + $0x94] sm:$0xf] %vm534, %v507
  %573 = vst.msk [vmem:[%s3 + $0x98] sm:$0xf] %vm534, %v508
  %574 = vst.msk [vmem:[%s3 + $0x9c] sm:$0xf] %vm534, %v509
  %575 = vst.msk [vmem:[%s3 + $0xa0] sm:$0xf] %vm534, %v510
  %576 = vst.msk [vmem:[%s3 + $0xa4] sm:$0xf] %vm534, %v511
  %577 = vst.msk [vmem:[%s3 + $0xa8] sm:$0xf] %vm534, %v512
  %578 = vst.msk [vmem:[%s3 + $0xac] sm:$0xf] %vm534, %v513
  %579 = vst.msk [vmem:[%s3 + $0xb0] sm:$0xf] %vm534, %v514
  %580 = vst.msk [vmem:[%s3 + $0xb4] sm:$0xf] %vm534, %v515
  %581 = vst.msk [vmem:[%s3 + $0xb8] sm:$0xf] %vm534, %v516
  %582 = vst.msk [vmem:[%s3 + $0xbc] sm:$0xf] %vm534, %v517
  %583 = vst.msk [vmem:[%s3 + $0xc0] sm:$0xf] %vm534, %v518
  %584 = vst.msk [vmem:[%s3 + $0xc4] sm:$0xf] %vm534, %v519
  %585 = vst.msk [vmem:[%s3 + $0xc8] sm:$0xf] %vm534, %v520
  %586 = vst.msk [vmem:[%s3 + $0xcc] sm:$0xf] %vm534, %v521
  %587 = vst.msk [vmem:[%s3 + $0xd0] sm:$0xf] %vm534, %v522
  %588 = vst.msk [vmem:[%s3 + $0xd4] sm:$0xf] %vm534, %v523
  %589 = vst.msk [vmem:[%s3 + $0xd8] sm:$0xf] %vm534, %v524
  %590 = vst.msk [vmem:[%s3 + $0xdc] sm:$0xf] %vm534, %v525
  %591 = vst.msk [vmem:[%s3 + $0xe0] sm:$0xf] %vm534, %v526
  %592 = vst.msk [vmem:[%s3 + $0xe4] sm:$0xf] %vm534, %v527
  %593 = vst.msk [vmem:[%s3 + $0xe8] sm:$0xf] %vm534, %v528
  %594 = vst.msk [vmem:[%s3 + $0xec] sm:$0xf] %vm534, %v529
  %595 = vst.msk [vmem:[%s3 + $0xf0] sm:$0xf] %vm534, %v530
  %596 = vst.msk [vmem:[%s3 + $0xf4] sm:$0xf] %vm534, %v531
  %597 = vst.msk [vmem:[%s3 + $0xf8] sm:$0xf] %vm534, %v532
  %598 = vst.msk [vmem:[%s3 + $0xfc] sm:$0xf] %vm534, %v533
  // Predicated region
  $region14: #{dc_discriminator_forward.10} parent=0 // pred_check
    _
  $region15: #{dc_discriminator_forward.10} parent=0 // pred_check_branch
    %600 = sbr.rel (0) target = $region17
  $region16: #{dc_discriminator_forward.10} parent=0 // pred_region
    _
  $region17: #{dc_discriminator_forward.10} parent=0 // pred_fallthru
    _
  // Predicated region
  $region18: #{dc_discriminator_forward.10} parent=0 // pred_check
    _
  $region19: #{dc_discriminator_forward.10} parent=0 // pred_check_branch
    %602 = sbr.rel (0) target = $region21
  $region20: #{dc_discriminator_forward.10} parent=0 // pred_region
    _
  $region21: #{dc_discriminator_forward.10} parent=0 // pred_fallthru
    _

// kernel: dc_discriminator_forward.9
$region0: #{dc_discriminator_forward.9}
  #allocation0 [shape = 'u32[]', space=smem, size = 0x4, offset = 0x4, fixed_abs, tag = 'smem constant byte address 0x4 - core index']
  #allocation1 [shape = 'u32[72,128]{1,0:T(1,128)}', space=vmem, size = 0x9000, scoped, tag = 'internal scratch']
  %s0 = inlined_call_operand.vmem [shape: bf16[512,64], index: 0, kind: input, shape index: {}]
  %s1 = inlined_call_operand.vmem [shape: bf16[64,8], index: 1, kind: input, shape index: {}]
  %s2 = inlined_call_operand.vmem [shape: f32[1,8], index: 2, kind: input, shape index: {}]
  %s3 = inlined_call_operand.vmem [shape: bf16[512,8], index: 3, kind: output, shape index: {0}]
  %s4 = inlined_call_operand.vmem [shape: f32[1,2,8], index: 4, kind: output, shape index: {1}]
  %5 = xla_tuple %s3, %s4
  %s6 = sld [smem:[#allocation0]]
  $region30: #{dc_discriminator_forward.9} parent=0
    _
  %s8 = ssub.s32 1, %s6
  %s9 = scalar_select 0, %s8, %s6
  // Predicated region
  $region2: #{dc_discriminator_forward.9} parent=0 // pred_check
    _
  $region3: #{dc_discriminator_forward.9} parent=0 // pred_check_branch
    %11 = sbr.rel (0) target = $region5
  $region4: #{dc_discriminator_forward.9} parent=0 // pred_region
    _
  $region5: #{dc_discriminator_forward.9} parent=0 // pred_fallthru
    _
  // Predicated region
  $region6: #{dc_discriminator_forward.9} parent=0 // pred_check
    _
  $region7: #{dc_discriminator_forward.9} parent=0 // pred_check_branch
    %13 = sbr.rel (0) target = $region9
  $region8: #{dc_discriminator_forward.9} parent=0 // pred_region
    _
  $region9: #{dc_discriminator_forward.9} parent=0 // pred_fallthru
    _
  // Predicated region
  $region10: #{dc_discriminator_forward.9} parent=0 // pred_check
    _
  $region11: #{dc_discriminator_forward.9} parent=0 // pred_check_branch
    %15 = sbr.rel (0) target = $region13
  $region12: #{dc_discriminator_forward.9} parent=0 // pred_region
    _
  $region13: #{dc_discriminator_forward.9} parent=0 // pred_fallthru
    _
  %v17 = vld [vmem:[%s0] sm:$0xf]
  %v18 = vld [vmem:[%s0 + $0x4] sm:$0xf]
  %v19 = vld [vmem:[%s0 + $0x8] sm:$0xf]
  %v20 = vld [vmem:[%s0 + $0xc] sm:$0xf]
  %v21 = vld [vmem:[%s0 + $0x10] sm:$0xf]
  %v22 = vld [vmem:[%s0 + $0x14] sm:$0xf]
  %v23 = vld [vmem:[%s0 + $0x18] sm:$0xf]
  %v24 = vld [vmem:[%s0 + $0x1c] sm:$0xf]
  %v25 = vld [vmem:[%s0 + $0x20] sm:$0xf]
  %v26 = vld [vmem:[%s0 + $0x24] sm:$0xf]
  %v27 = vld [vmem:[%s0 + $0x28] sm:$0xf]
  %v28 = vld [vmem:[%s0 + $0x2c] sm:$0xf]
  %v29 = vld [vmem:[%s0 + $0x30] sm:$0xf]
  %v30 = vld [vmem:[%s0 + $0x34] sm:$0xf]
  %v31 = vld [vmem:[%s0 + $0x38] sm:$0xf]
  %v32 = vld [vmem:[%s0 + $0x3c] sm:$0xf]
  %v33 = vld [vmem:[%s0 + $0x40] sm:$0xf]
  %v34 = vld [vmem:[%s0 + $0x44] sm:$0xf]
  %v35 = vld [vmem:[%s0 + $0x48] sm:$0xf]
  %v36 = vld [vmem:[%s0 + $0x4c] sm:$0xf]
  %v37 = vld [vmem:[%s0 + $0x50] sm:$0xf]
  %v38 = vld [vmem:[%s0 + $0x54] sm:$0xf]
  %v39 = vld [vmem:[%s0 + $0x58] sm:$0xf]
  %v40 = vld [vmem:[%s0 + $0x5c] sm:$0xf]
  %v41 = vld [vmem:[%s0 + $0x60] sm:$0xf]
  %v42 = vld [vmem:[%s0 + $0x64] sm:$0xf]
  %v43 = vld [vmem:[%s0 + $0x68] sm:$0xf]
  %v44 = vld [vmem:[%s0 + $0x6c] sm:$0xf]
  %v45 = vld [vmem:[%s0 + $0x70] sm:$0xf]
  %v46 = vld [vmem:[%s0 + $0x74] sm:$0xf]
  %v47 = vld [vmem:[%s0 + $0x78] sm:$0xf]
  %v48 = vld [vmem:[%s0 + $0x7c] sm:$0xf]
  %v49 = vld [vmem:[%s0 + $0x80] sm:$0xf]
  %v50 = vld [vmem:[%s0 + $0x84] sm:$0xf]
  %v51 = vld [vmem:[%s0 + $0x88] sm:$0xf]
  %v52 = vld [vmem:[%s0 + $0x8c] sm:$0xf]
  %v53 = vld [vmem:[%s0 + $0x90] sm:$0xf]
  %v54 = vld [vmem:[%s0 + $0x94] sm:$0xf]
  %v55 = vld [vmem:[%s0 + $0x98] sm:$0xf]
  %v56 = vld [vmem:[%s0 + $0x9c] sm:$0xf]
  %v57 = vld [vmem:[%s0 + $0xa0] sm:$0xf]
  %v58 = vld [vmem:[%s0 + $0xa4] sm:$0xf]
  %v59 = vld [vmem:[%s0 + $0xa8] sm:$0xf]
  %v60 = vld [vmem:[%s0 + $0xac] sm:$0xf]
  %v61 = vld [vmem:[%s0 + $0xb0] sm:$0xf]
  %v62 = vld [vmem:[%s0 + $0xb4] sm:$0xf]
  %v63 = vld [vmem:[%s0 + $0xb8] sm:$0xf]
  %v64 = vld [vmem:[%s0 + $0xbc] sm:$0xf]
  %v65 = vld [vmem:[%s0 + $0xc0] sm:$0xf]
  %v66 = vld [vmem:[%s0 + $0xc4] sm:$0xf]
  %v67 = vld [vmem:[%s0 + $0xc8] sm:$0xf]
  %v68 = vld [vmem:[%s0 + $0xcc] sm:$0xf]
  %v69 = vld [vmem:[%s0 + $0xd0] sm:$0xf]
  %v70 = vld [vmem:[%s0 + $0xd4] sm:$0xf]
  %v71 = vld [vmem:[%s0 + $0xd8] sm:$0xf]
  %v72 = vld [vmem:[%s0 + $0xdc] sm:$0xf]
  %v73 = vld [vmem:[%s0 + $0xe0] sm:$0xf]
  %v74 = vld [vmem:[%s0 + $0xe4] sm:$0xf]
  %v75 = vld [vmem:[%s0 + $0xe8] sm:$0xf]
  %v76 = vld [vmem:[%s0 + $0xec] sm:$0xf]
  %v77 = vld [vmem:[%s0 + $0xf0] sm:$0xf]
  %v78 = vld [vmem:[%s0 + $0xf4] sm:$0xf]
  %v79 = vld [vmem:[%s0 + $0xf8] sm:$0xf]
  %v80 = vld [vmem:[%s0 + $0xfc] sm:$0xf]
  %v81 = vld [vmem:[%s1] sm:$0xf]
  %v82 = vld [vmem:[%s1 + $0x4] sm:$0xf]
  %v83 = vld [vmem:[%s1 + $0x8] sm:$0xf]
  %v84 = vld [vmem:[%s1 + $0xc] sm:$0xf]
  %v85 = vld [vmem:[%s1 + $0x10] sm:$0xf]
  %v86 = vld [vmem:[%s1 + $0x14] sm:$0xf]
  %v87 = vld [vmem:[%s1 + $0x18] sm:$0xf]
  %v88 = vld [vmem:[%s1 + $0x1c] sm:$0xf]
  %v89 = vld [vmem:[%s2] sm:$0x1]
  %v91 = vperm.slane %v89, 0
  %v157 = vunpack.c.l.b16 %v17
  %v158 = vunpack.c.l.b16 %v18
  %v159 = vunpack.c.l.b16 %v19
  %v160 = vunpack.c.l.b16 %v20
  %v161 = vunpack.c.l.b16 %v21
  %v162 = vunpack.c.l.b16 %v22
  %v163 = vunpack.c.l.b16 %v23
  %v164 = vunpack.c.l.b16 %v24
  %v165 = vunpack.c.l.b16 %v25
  %v166 = vunpack.c.l.b16 %v26
  %v167 = vunpack.c.l.b16 %v27
  %v168 = vunpack.c.l.b16 %v28
  %v169 = vunpack.c.l.b16 %v29
  %v170 = vunpack.c.l.b16 %v30
  %v171 = vunpack.c.l.b16 %v31
  %v172 = vunpack.c.l.b16 %v32
  %v173 = vunpack.c.l.b16 %v33
  %v174 = vunpack.c.l.b16 %v34
  %v175 = vunpack.c.l.b16 %v35
  %v176 = vunpack.c.l.b16 %v36
  %v177 = vunpack.c.l.b16 %v37
  %v178 = vunpack.c.l.b16 %v38
  %v179 = vunpack.c.l.b16 %v39
  %v180 = vunpack.c.l.b16 %v40
  %v181 = vunpack.c.l.b16 %v41
  %v182 = vunpack.c.l.b16 %v42
  %v183 = vunpack.c.l.b16 %v43
  %v184 = vunpack.c.l.b16 %v44
  %v185 = vunpack.c.l.b16 %v45
  %v186 = vunpack.c.l.b16 %v46
  %v187 = vunpack.c.l.b16 %v47
  %v188 = vunpack.c.l.b16 %v48
  %v189 = vunpack.c.l.b16 %v49
  %v190 = vunpack.c.l.b16 %v50
  %v191 = vunpack.c.l.b16 %v51
  %v192 = vunpack.c.l.b16 %v52
  %v193 = vunpack.c.l.b16 %v53
  %v194 = vunpack.c.l.b16 %v54
  %v195 = vunpack.c.l.b16 %v55
  %v196 = vunpack.c.l.b16 %v56
  %v197 = vunpack.c.l.b16 %v57
  %v198 = vunpack.c.l.b16 %v58
  %v199 = vunpack.c.l.b16 %v59
  %v200 = vunpack.c.l.b16 %v60
  %v201 = vunpack.c.l.b16 %v61
  %v202 = vunpack.c.l.b16 %v62
  %v203 = vunpack.c.l.b16 %v63
  %v204 = vunpack.c.l.b16 %v64
  %v205 = vunpack.c.l.b16 %v65
  %v206 = vunpack.c.l.b16 %v66
  %v207 = vunpack.c.l.b16 %v67
  %v208 = vunpack.c.l.b16 %v68
  %v209 = vunpack.c.l.b16 %v69
  %v210 = vunpack.c.l.b16 %v70
  %v211 = vunpack.c.l.b16 %v71
  %v212 = vunpack.c.l.b16 %v72
  %v213 = vunpack.c.l.b16 %v73
  %v214 = vunpack.c.l.b16 %v74
  %v215 = vunpack.c.l.b16 %v75
  %v216 = vunpack.c.l.b16 %v76
  %v217 = vunpack.c.l.b16 %v77
  %v218 = vunpack.c.l.b16 %v78
  %v219 = vunpack.c.l.b16 %v79
  %v220 = vunpack.c.l.b16 %v80
  %v221 = vpack.c.b16 %v158, %v157
  %v222 = vpack.c.b16 %v160, %v159
  %v223 = vpack.c.b16 %v162, %v161
  %v224 = vpack.c.b16 %v164, %v163
  %v225 = vpack.c.b16 %v166, %v165
  %v226 = vpack.c.b16 %v168, %v167
  %v227 = vpack.c.b16 %v170, %v169
  %v228 = vpack.c.b16 %v172, %v171
  %v229 = vpack.c.b16 %v174, %v173
  %v230 = vpack.c.b16 %v176, %v175
  %v231 = vpack.c.b16 %v178, %v177
  %v232 = vpack.c.b16 %v180, %v179
  %v233 = vpack.c.b16 %v182, %v181
  %v234 = vpack.c.b16 %v184, %v183
  %v235 = vpack.c.b16 %v186, %v185
  %v236 = vpack.c.b16 %v188, %v187
  %v237 = vpack.c.b16 %v190, %v189
  %v238 = vpack.c.b16 %v192, %v191
  %v239 = vpack.c.b16 %v194, %v193
  %v240 = vpack.c.b16 %v196, %v195
  %v241 = vpack.c.b16 %v198, %v197
  %v242 = vpack.c.b16 %v200, %v199
  %v243 = vpack.c.b16 %v202, %v201
  %v244 = vpack.c.b16 %v204, %v203
  %v245 = vpack.c.b16 %v206, %v205
  %v246 = vpack.c.b16 %v208, %v207
  %v247 = vpack.c.b16 %v210, %v209
  %v248 = vpack.c.b16 %v212, %v211
  %v249 = vpack.c.b16 %v214, %v213
  %v250 = vpack.c.b16 %v216, %v215
  %v251 = vpack.c.b16 %v218, %v217
  %v252 = vpack.c.b16 %v220, %v219
  %v261 = vunpack.c.l.b16 %v81
  %v262 = vunpack.c.l.b16 %v82
  %v263 = vunpack.c.l.b16 %v83
  %v264 = vunpack.c.l.b16 %v84
  %v265 = vunpack.c.l.b16 %v85
  %v266 = vunpack.c.l.b16 %v86
  %v267 = vunpack.c.l.b16 %v87
  %v268 = vunpack.c.l.b16 %v88
  %v269 = vpack.c.b16 %v262, %v261
  %v270 = vpack.c.b16 %v264, %v263
  %v271 = vpack.c.b16 %v266, %v265
  %v272 = vpack.c.b16 %v268, %v267
  %vm277 = vcmask 523264
  %v279 = vsel %vm277, %v221, 0
  %v282 = vsel %vm277, %v222, 0
  %v285 = vsel %vm277, %v223, 0
  %v288 = vsel %vm277, %v224, 0
  %v291 = vsel %vm277, %v225, 0
  %v294 = vsel %vm277, %v226, 0
  %v297 = vsel %vm277, %v227, 0
  %v300 = vsel %vm277, %v228, 0
  %v303 = vsel %vm277, %v229, 0
  %v306 = vsel %vm277, %v230, 0
  %v309 = vsel %vm277, %v231, 0
  %v312 = vsel %vm277, %v232, 0
  %v315 = vsel %vm277, %v233, 0
  %v318 = vsel %vm277, %v234, 0
  %v321 = vsel %vm277, %v235, 0
  %v324 = vsel %vm277, %v236, 0
  %v327 = vsel %vm277, %v237, 0
  %v330 = vsel %vm277, %v238, 0
  %v333 = vsel %vm277, %v239, 0
  %v336 = vsel %vm277, %v240, 0
  %v339 = vsel %vm277, %v241, 0
  %v342 = vsel %vm277, %v242, 0
  %v345 = vsel %vm277, %v243, 0
  %v348 = vsel %vm277, %v244, 0
  %v351 = vsel %vm277, %v245, 0
  %v354 = vsel %vm277, %v246, 0
  %v357 = vsel %vm277, %v247, 0
  %v360 = vsel %vm277, %v248, 0
  %v363 = vsel %vm277, %v249, 0
  %v366 = vsel %vm277, %v250, 0
  %v369 = vsel %vm277, %v251, 0
  %v372 = vsel %vm277, %v252, 0
  %374 = vmatpush.bf16.msra.mxu0 0
  %375 = vmatpush.bf16.msra.mxu0 0
  %376 = vmatpush.bf16.msra.mxu0 0
  %377 = vmatpush.bf16.msra.mxu0 0
  %378 = vmatpush.bf16.msra.mxu0 %v272
  %379 = vmatpush.bf16.msra.mxu0 %v271
  %380 = vmatpush.bf16.msra.mxu0 %v270
  %381 = vmatpush.bf16.msra.mxu0 %v269
  %382 = vmatmul.bf16.gmra.mxu0 %v279
  %v383 = vpop.f32.mrf.mxu0
  %v384 = vadd.f32 %v91, %v383
  %v385 = vpop.f32.mrf.mxu0
  %v386 = vadd.f32 %v91, %v385
  %387 = vmatmul.bf16.gmra.mxu0 %v282
  %v388 = vpop.f32.mrf.mxu0
  %v389 = vadd.f32 %v91, %v388
  %v390 = vpop.f32.mrf.mxu0
  %v391 = vadd.f32 %v91, %v390
  %392 = vmatmul.bf16.gmra.mxu0 %v285
  %v393 = vpop.f32.mrf.mxu0
  %v394 = vadd.f32 %v91, %v393
  %v395 = vpop.f32.mrf.mxu0
  %v396 = vadd.f32 %v91, %v395
  %397 = vmatmul.bf16.gmra.mxu0 %v288
  %v398 = vpop.f32.mrf.mxu0
  %v399 = vadd.f32 %v91, %v398
  %v400 = vpop.f32.mrf.mxu0
  %v401 = vadd.f32 %v91, %v400
  %402 = vmatmul.bf16.gmra.mxu0 %v291
  %v403 = vpop.f32.mrf.mxu0
  %v404 = vadd.f32 %v91, %v403
  %v405 = vpop.f32.mrf.mxu0
  %v406 = vadd.f32 %v91, %v405
  %407 = vmatmul.bf16.gmra.mxu0 %v294
  %v408 = vpop.f32.mrf.mxu0
  %v409 = vadd.f32 %v91, %v408
  %v410 = vpop.f32.mrf.mxu0
  %v411 = vadd.f32 %v91, %v410
  %412 = vmatmul.bf16.gmra.mxu0 %v297
  %v413 = vpop.f32.mrf.mxu0
  %v414 = vadd.f32 %v91, %v413
  %v415 = vpop.f32.mrf.mxu0
  %v416 = vadd.f32 %v91, %v415
  %417 = vmatmul.bf16.gmra.mxu0 %v300
  %v418 = vpop.f32.mrf.mxu0
  %v419 = vadd.f32 %v91, %v418
  %v420 = vpop.f32.mrf.mxu0
  %v421 = vadd.f32 %v91, %v420
  %422 = vmatmul.bf16.gmra.mxu0 %v303
  %v423 = vpop.f32.mrf.mxu0
  %v424 = vadd.f32 %v91, %v423
  %v425 = vpop.f32.mrf.mxu0
  %v426 = vadd.f32 %v91, %v425
  %427 = vmatmul.bf16.gmra.mxu0 %v306
  %v428 = vpop.f32.mrf.mxu0
  %v429 = vadd.f32 %v91, %v428
  %v430 = vpop.f32.mrf.mxu0
  %v431 = vadd.f32 %v91, %v430
  %432 = vmatmul.bf16.gmra.mxu0 %v309
  %v433 = vpop.f32.mrf.mxu0
  %v434 = vadd.f32 %v91, %v433
  %v435 = vpop.f32.mrf.mxu0
  %v436 = vadd.f32 %v91, %v435
  %437 = vmatmul.bf16.gmra.mxu0 %v312
  %v438 = vpop.f32.mrf.mxu0
  %v439 = vadd.f32 %v91, %v438
  %v440 = vpop.f32.mrf.mxu0
  %v441 = vadd.f32 %v91, %v440
  %442 = vmatmul.bf16.gmra.mxu0 %v315
  %v443 = vpop.f32.mrf.mxu0
  %v444 = vadd.f32 %v91, %v443
  %v445 = vpop.f32.mrf.mxu0
  %v446 = vadd.f32 %v91, %v445
  %447 = vmatmul.bf16.gmra.mxu0 %v318
  %v448 = vpop.f32.mrf.mxu0
  %v449 = vadd.f32 %v91, %v448
  %v450 = vpop.f32.mrf.mxu0
  %v451 = vadd.f32 %v91, %v450
  %452 = vmatmul.bf16.gmra.mxu0 %v321
  %v453 = vpop.f32.mrf.mxu0
  %v454 = vadd.f32 %v91, %v453
  %v455 = vpop.f32.mrf.mxu0
  %v456 = vadd.f32 %v91, %v455
  %457 = vmatmul.bf16.gmra.mxu0 %v324
  %v458 = vpop.f32.mrf.mxu0
  %v459 = vadd.f32 %v91, %v458
  %v460 = vpop.f32.mrf.mxu0
  %v461 = vadd.f32 %v91, %v460
  %462 = vmatmul.bf16.gmra.mxu0 %v327
  %v463 = vpop.f32.mrf.mxu0
  %v464 = vadd.f32 %v91, %v463
  %v465 = vpop.f32.mrf.mxu0
  %v466 = vadd.f32 %v91, %v465
  %467 = vmatmul.bf16.gmra.mxu0 %v330
  %v468 = vpop.f32.mrf.mxu0
  %v469 = vadd.f32 %v91, %v468
  %v470 = vpop.f32.mrf.mxu0
  %v471 = vadd.f32 %v91, %v470
  %472 = vmatmul.bf16.gmra.mxu0 %v333
  %v473 = vpop.f32.mrf.mxu0
  %v474 = vadd.f32 %v91, %v473
  %v475 = vpop.f32.mrf.mxu0
  %v476 = vadd.f32 %v91, %v475
  %477 = vmatmul.bf16.gmra.mxu0 %v336
  %v478 = vpop.f32.mrf.mxu0
  %v479 = vadd.f32 %v91, %v478
  %v480 = vpop.f32.mrf.mxu0
  %v481 = vadd.f32 %v91, %v480
  %482 = vmatmul.bf16.gmra.mxu0 %v339
  %v483 = vpop.f32.mrf.mxu0
  %v484 = vadd.f32 %v91, %v483
  %v485 = vpop.f32.mrf.mxu0
  %v486 = vadd.f32 %v91, %v485
  %487 = vmatmul.bf16.gmra.mxu0 %v342
  %v488 = vpop.f32.mrf.mxu0
  %v489 = vadd.f32 %v91, %v488
  %v490 = vpop.f32.mrf.mxu0
  %v491 = vadd.f32 %v91, %v490
  %492 = vmatmul.bf16.gmra.mxu0 %v345
  %v493 = vpop.f32.mrf.mxu0
  %v494 = vadd.f32 %v91, %v493
  %v495 = vpop.f32.mrf.mxu0
  %v496 = vadd.f32 %v91, %v495
  %497 = vmatmul.bf16.gmra.mxu0 %v348
  %v498 = vpop.f32.mrf.mxu0
  %v499 = vadd.f32 %v91, %v498
  %v500 = vpop.f32.mrf.mxu0
  %v501 = vadd.f32 %v91, %v500
  %502 = vmatmul.bf16.gmra.mxu0 %v351
  %v503 = vpop.f32.mrf.mxu0
  %v504 = vadd.f32 %v91, %v503
  %v505 = vpop.f32.mrf.mxu0
  %v506 = vadd.f32 %v91, %v505
  %507 = vmatmul.bf16.gmra.mxu0 %v354
  %v508 = vpop.f32.mrf.mxu0
  %v509 = vadd.f32 %v91, %v508
  %v510 = vpop.f32.mrf.mxu0
  %v511 = vadd.f32 %v91, %v510
  %512 = vmatmul.bf16.gmra.mxu0 %v357
  %v513 = vpop.f32.mrf.mxu0
  %v514 = vadd.f32 %v91, %v513
  %v515 = vpop.f32.mrf.mxu0
  %v516 = vadd.f32 %v91, %v515
  %517 = vmatmul.bf16.gmra.mxu0 %v360
  %v518 = vpop.f32.mrf.mxu0
  %v519 = vadd.f32 %v91, %v518
  %v520 = vpop.f32.mrf.mxu0
  %v521 = vadd.f32 %v91, %v520
  %522 = vmatmul.bf16.gmra.mxu0 %v363
  %v523 = vpop.f32.mrf.mxu0
  %v524 = vadd.f32 %v91, %v523
  %v525 = vpop.f32.mrf.mxu0
  %v526 = vadd.f32 %v91, %v525
  %527 = vmatmul.bf16.gmra.mxu0 %v366
  %v528 = vpop.f32.mrf.mxu0
  %v529 = vadd.f32 %v91, %v528
  %v530 = vpop.f32.mrf.mxu0
  %v531 = vadd.f32 %v91, %v530
  %532 = vmatmul.bf16.gmra.mxu0 %v369
  %v533 = vpop.f32.mrf.mxu0
  %v534 = vadd.f32 %v91, %v533
  %v535 = vpop.f32.mrf.mxu0
  %v536 = vadd.f32 %v91, %v535
  %537 = vmatmul.bf16.gmra.mxu0 %v372
  %v538 = vpop.f32.mrf.mxu0
  %v539 = vadd.f32 %v91, %v538
  %v540 = vpop.f32.mrf.mxu0
  %v541 = vadd.f32 %v91, %v540
  %542 = vdwg.mxu0
  %v543 = vpack.c.bf16 %v384, %v384
  %v544 = vpack.c.bf16 %v386, %v386
  %v545 = vpack.c.bf16 %v389, %v389
  %v546 = vpack.c.bf16 %v391, %v391
  %v547 = vpack.c.bf16 %v394, %v394
  %v548 = vpack.c.bf16 %v396, %v396
  %v549 = vpack.c.bf16 %v399, %v399
  %v550 = vpack.c.bf16 %v401, %v401
  %v551 = vpack.c.bf16 %v404, %v404
  %v552 = vpack.c.bf16 %v406, %v406
  %v553 = vpack.c.bf16 %v409, %v409
  %v554 = vpack.c.bf16 %v411, %v411
  %v555 = vpack.c.bf16 %v414, %v414
  %v556 = vpack.c.bf16 %v416, %v416
  %v557 = vpack.c.bf16 %v419, %v419
  %v558 = vpack.c.bf16 %v421, %v421
  %v559 = vpack.c.bf16 %v424, %v424
  %v560 = vpack.c.bf16 %v426, %v426
  %v561 = vpack.c.bf16 %v429, %v429
  %v562 = vpack.c.bf16 %v431, %v431
  %v563 = vpack.c.bf16 %v434, %v434
  %v564 = vpack.c.bf16 %v436, %v436
  %v565 = vpack.c.bf16 %v439, %v439
  %v566 = vpack.c.bf16 %v441, %v441
  %v567 = vpack.c.bf16 %v444, %v444
  %v568 = vpack.c.bf16 %v446, %v446
  %v569 = vpack.c.bf16 %v449, %v449
  %v570 = vpack.c.bf16 %v451, %v451
  %v571 = vpack.c.bf16 %v454, %v454
  %v572 = vpack.c.bf16 %v456, %v456
  %v573 = vpack.c.bf16 %v459, %v459
  %v574 = vpack.c.bf16 %v461, %v461
  %v575 = vpack.c.bf16 %v464, %v464
  %v576 = vpack.c.bf16 %v466, %v466
  %v577 = vpack.c.bf16 %v469, %v469
  %v578 = vpack.c.bf16 %v471, %v471
  %v579 = vpack.c.bf16 %v474, %v474
  %v580 = vpack.c.bf16 %v476, %v476
  %v581 = vpack.c.bf16 %v479, %v479
  %v582 = vpack.c.bf16 %v481, %v481
  %v583 = vpack.c.bf16 %v484, %v484
  %v584 = vpack.c.bf16 %v486, %v486
  %v585 = vpack.c.bf16 %v489, %v489
  %v586 = vpack.c.bf16 %v491, %v491
  %v587 = vpack.c.bf16 %v494, %v494
  %v588 = vpack.c.bf16 %v496, %v496
  %v589 = vpack.c.bf16 %v499, %v499
  %v590 = vpack.c.bf16 %v501, %v501
  %v591 = vpack.c.bf16 %v504, %v504
  %v592 = vpack.c.bf16 %v506, %v506
  %v593 = vpack.c.bf16 %v509, %v509
  %v594 = vpack.c.bf16 %v511, %v511
  %v595 = vpack.c.bf16 %v514, %v514
  %v596 = vpack.c.bf16 %v516, %v516
  %v597 = vpack.c.bf16 %v519, %v519
  %v598 = vpack.c.bf16 %v521, %v521
  %v599 = vpack.c.bf16 %v524, %v524
  %v600 = vpack.c.bf16 %v526, %v526
  %v601 = vpack.c.bf16 %v529, %v529
  %v602 = vpack.c.bf16 %v531, %v531
  %v603 = vpack.c.bf16 %v534, %v534
  %v604 = vpack.c.bf16 %v536, %v536
  %v605 = vpack.c.bf16 %v539, %v539
  %v606 = vpack.c.bf16 %v541, %v541
  %vm607 = vcmask 60416
  %608 = vst.msk [vmem:[%s3] sm:$0xf] %vm607, %v543
  %609 = vst.msk [vmem:[%s3 + $0x4] sm:$0xf] %vm607, %v544
  %610 = vst.msk [vmem:[%s3 + $0x8] sm:$0xf] %vm607, %v545
  %611 = vst.msk [vmem:[%s3 + $0xc] sm:$0xf] %vm607, %v546
  %612 = vst.msk [vmem:[%s3 + $0x10] sm:$0xf] %vm607, %v547
  %613 = vst.msk [vmem:[%s3 + $0x14] sm:$0xf] %vm607, %v548
  %614 = vst.msk [vmem:[%s3 + $0x18] sm:$0xf] %vm607, %v549
  %615 = vst.msk [vmem:[%s3 + $0x1c] sm:$0xf] %vm607, %v550
  %616 = vst.msk [vmem:[%s3 + $0x20] sm:$0xf] %vm607, %v551
  %617 = vst.msk [vmem:[%s3 + $0x24] sm:$0xf] %vm607, %v552
  %618 = vst.msk [vmem:[%s3 + $0x28] sm:$0xf] %vm607, %v553
  %619 = vst.msk [vmem:[%s3 + $0x2c] sm:$0xf] %vm607, %v554
  %620 = vst.msk [vmem:[%s3 + $0x30] sm:$0xf] %vm607, %v555
  %621 = vst.msk [vmem:[%s3 + $0x34] sm:$0xf] %vm607, %v556
  %622 = vst.msk [vmem:[%s3 + $0x38] sm:$0xf] %vm607, %v557
  %623 = vst.msk [vmem:[%s3 + $0x3c] sm:$0xf] %vm607, %v558
  %624 = vst.msk [vmem:[%s3 + $0x40] sm:$0xf] %vm607, %v559
  %625 = vst.msk [vmem:[%s3 + $0x44] sm:$0xf] %vm607, %v560
  %626 = vst.msk [vmem:[%s3 + $0x48] sm:$0xf] %vm607, %v561
  %627 = vst.msk [vmem:[%s3 + $0x4c] sm:$0xf] %vm607, %v562
  %628 = vst.msk [vmem:[%s3 + $0x50] sm:$0xf] %vm607, %v563
  %629 = vst.msk [vmem:[%s3 + $0x54] sm:$0xf] %vm607, %v564
  %630 = vst.msk [vmem:[%s3 + $0x58] sm:$0xf] %vm607, %v565
  %631 = vst.msk [vmem:[%s3 + $0x5c] sm:$0xf] %vm607, %v566
  %632 = vst.msk [vmem:[%s3 + $0x60] sm:$0xf] %vm607, %v567
  %633 = vst.msk [vmem:[%s3 + $0x64] sm:$0xf] %vm607, %v568
  %634 = vst.msk [vmem:[%s3 + $0x68] sm:$0xf] %vm607, %v569
  %635 = vst.msk [vmem:[%s3 + $0x6c] sm:$0xf] %vm607, %v570
  %636 = vst.msk [vmem:[%s3 + $0x70] sm:$0xf] %vm607, %v571
  %637 = vst.msk [vmem:[%s3 + $0x74] sm:$0xf] %vm607, %v572
  %638 = vst.msk [vmem:[%s3 + $0x78] sm:$0xf] %vm607, %v573
  %639 = vst.msk [vmem:[%s3 + $0x7c] sm:$0xf] %vm607, %v574
  %640 = vst.msk [vmem:[%s3 + $0x80] sm:$0xf] %vm607, %v575
  %641 = vst.msk [vmem:[%s3 + $0x84] sm:$0xf] %vm607, %v576
  %642 = vst.msk [vmem:[%s3 + $0x88] sm:$0xf] %vm607, %v577
  %643 = vst.msk [vmem:[%s3 + $0x8c] sm:$0xf] %vm607, %v578
  %644 = vst.msk [vmem:[%s3 + $0x90] sm:$0xf] %vm607, %v579
  %645 = vst.msk [vmem:[%s3 + $0x94] sm:$0xf] %vm607, %v580
  %646 = vst.msk [vmem:[%s3 + $0x98] sm:$0xf] %vm607, %v581
  %647 = vst.msk [vmem:[%s3 + $0x9c] sm:$0xf] %vm607, %v582
  %648 = vst.msk [vmem:[%s3 + $0xa0] sm:$0xf] %vm607, %v583
  %649 = vst.msk [vmem:[%s3 + $0xa4] sm:$0xf] %vm607, %v584
  %650 = vst.msk [vmem:[%s3 + $0xa8] sm:$0xf] %vm607, %v585
  %651 = vst.msk [vmem:[%s3 + $0xac] sm:$0xf] %vm607, %v586
  %652 = vst.msk [vmem:[%s3 + $0xb0] sm:$0xf] %vm607, %v587
  %653 = vst.msk [vmem:[%s3 + $0xb4] sm:$0xf] %vm607, %v588
  %654 = vst.msk [vmem:[%s3 + $0xb8] sm:$0xf] %vm607, %v589
  %655 = vst.msk [vmem:[%s3 + $0xbc] sm:$0xf] %vm607, %v590
  %656 = vst.msk [vmem:[%s3 + $0xc0] sm:$0xf] %vm607, %v591
  %657 = vst.msk [vmem:[%s3 + $0xc4] sm:$0xf] %vm607, %v592
  %658 = vst.msk [vmem:[%s3 + $0xc8] sm:$0xf] %vm607, %v593
  %659 = vst.msk [vmem:[%s3 + $0xcc] sm:$0xf] %vm607, %v594
  %660 = vst.msk [vmem:[%s3 + $0xd0] sm:$0xf] %vm607, %v595
  %661 = vst.msk [vmem:[%s3 + $0xd4] sm:$0xf] %vm607, %v596
  %662 = vst.msk [vmem:[%s3 + $0xd8] sm:$0xf] %vm607, %v597
  %663 = vst.msk [vmem:[%s3 + $0xdc] sm:$0xf] %vm607, %v598
  %664 = vst.msk [vmem:[%s3 + $0xe0] sm:$0xf] %vm607, %v599
  %665 = vst.msk [vmem:[%s3 + $0xe4] sm:$0xf] %vm607, %v600
  %666 = vst.msk [vmem:[%s3 + $0xe8] sm:$0xf] %vm607, %v601
  %667 = vst.msk [vmem:[%s3 + $0xec] sm:$0xf] %vm607, %v602
  %668 = vst.msk [vmem:[%s3 + $0xf0] sm:$0xf] %vm607, %v603
  %669 = vst.msk [vmem:[%s3 + $0xf4] sm:$0xf] %vm607, %v604
  %670 = vst.msk [vmem:[%s3 + $0xf8] sm:$0xf] %vm607, %v605
  %671 = vst.msk [vmem:[%s3 + $0xfc] sm:$0xf] %vm607, %v606
  %s672 = smul.u32 0, 512
  %v673 = vlaneseq
  %v674 = vshrl.u32 %v673, 7
  %v675 = vadd.s32 %v674, 8
  %v676 = vadd.s32 %v674, 16
  %v677 = vadd.s32 %v674, 24
  %v678 = vadd.s32 %v674, 32
  %v679 = vadd.s32 %v674, 40
  %v680 = vadd.s32 %v674, 48
  %v681 = vadd.s32 %v674, 56
  %v682 = vadd.s32 %v674, 64
  %v683 = vadd.s32 %v674, 72
  %v684 = vadd.s32 %v674, 80
  %v685 = vadd.s32 %v674, 88
  %v686 = vadd.s32 %v674, 96
  %v687 = vadd.s32 %v674, 104
  %v688 = vadd.s32 %v674, 112
  %v689 = vadd.s32 %v674, 120
  %v690 = vadd.s32 %v674, 128
  %v691 = vadd.s32 %v674, 136
  %v692 = vadd.s32 %v674, 144
  %v693 = vadd.s32 %v674, 152
  %v694 = vadd.s32 %v674, 160
  %v695 = vadd.s32 %v674, 168
  %v696 = vadd.s32 %v674, 176
  %v697 = vadd.s32 %v674, 184
  %v698 = vadd.s32 %v674, 192
  %v699 = vadd.s32 %v674, 200
  %v700 = vadd.s32 %v674, 208
  %v701 = vadd.s32 %v674, 216
  %v702 = vadd.s32 %v674, 224
  %v703 = vadd.s32 %v674, 232
  %v704 = vadd.s32 %v674, 240
  %v705 = vadd.s32 %v674, 248
  %v706 = vadd.s32 %v674, 256
  %v707 = vadd.s32 %v674, 264
  %v708 = vadd.s32 %v674, 272
  %v709 = vadd.s32 %v674, 280
  %v710 = vadd.s32 %v674, 288
  %v711 = vadd.s32 %v674, 296
  %v712 = vadd.s32 %v674, 304
  %v713 = vadd.s32 %v674, 312
  %v714 = vadd.s32 %v674, 320
  %v715 = vadd.s32 %v674, 328
  %v716 = vadd.s32 %v674, 336
  %v717 = vadd.s32 %v674, 344
  %v718 = vadd.s32 %v674, 352
  %v719 = vadd.s32 %v674, 360
  %v720 = vadd.s32 %v674, 368
  %v721 = vadd.s32 %v674, 376
  %v722 = vadd.s32 %v674, 384
  %v723 = vadd.s32 %v674, 392
  %v724 = vadd.s32 %v674, 400
  %v725 = vadd.s32 %v674, 408
  %v726 = vadd.s32 %v674, 416
  %v727 = vadd.s32 %v674, 424
  %v728 = vadd.s32 %v674, 432
  %v729 = vadd.s32 %v674, 440
  %v730 = vadd.s32 %v674, 448
  %v731 = vadd.s32 %v674, 456
  %v732 = vadd.s32 %v674, 464
  %v733 = vadd.s32 %v674, 472
  %v734 = vadd.s32 %v674, 480
  %v735 = vadd.s32 %v674, 488
  %v736 = vadd.s32 %v674, 496
  %v737 = vadd.s32 %v674, 504
  %v738 = vstv %s672
  %v739 = vadd.s32 %v738, %v674
  %v740 = vadd.s32 %v738, %v675
  %v741 = vadd.s32 %v738, %v676
  %v742 = vadd.s32 %v738, %v677
  %v743 = vadd.s32 %v738, %v678
  %v744 = vadd.s32 %v738, %v679
  %v745 = vadd.s32 %v738, %v680
  %v746 = vadd.s32 %v738, %v681
  %v747 = vadd.s32 %v738, %v682
  %v748 = vadd.s32 %v738, %v683
  %v749 = vadd.s32 %v738, %v684
  %v750 = vadd.s32 %v738, %v685
  %v751 = vadd.s32 %v738, %v686
  %v752 = vadd.s32 %v738, %v687
  %v753 = vadd.s32 %v738, %v688
  %v754 = vadd.s32 %v738, %v689
  %v755 = vadd.s32 %v738, %v690
  %v756 = vadd.s32 %v738, %v691
  %v757 = vadd.s32 %v738, %v692
  %v758 = vadd.s32 %v738, %v693
  %v759 = vadd.s32 %v738, %v694
  %v760 = vadd.s32 %v738, %v695
  %v761 = vadd.s32 %v738, %v696
  %v762 = vadd.s32 %v738, %v697
  %v763 = vadd.s32 %v738, %v698
  %v764 = vadd.s32 %v738, %v699
  %v765 = vadd.s32 %v738, %v700
  %v766 = vadd.s32 %v738, %v701
  %v767 = vadd.s32 %v738, %v702
  %v768 = vadd.s32 %v738, %v703
  %v769 = vadd.s32 %v738, %v704
  %v770 = vadd.s32 %v738, %v705
  %v771 = vadd.s32 %v738, %v706
  %v772 = vadd.s32 %v738, %v707
  %v773 = vadd.s32 %v738, %v708
  %v774 = vadd.s32 %v738, %v709
  %v775 = vadd.s32 %v738, %v710
  %v776 = vadd.s32 %v738, %v711
  %v777 = vadd.s32 %v738, %v712
  %v778 = vadd.s32 %v738, %v713
  %v779 = vadd.s32 %v738, %v714
  %v780 = vadd.s32 %v738, %v715
  %v781 = vadd.s32 %v738, %v716
  %v782 = vadd.s32 %v738, %v717
  %v783 = vadd.s32 %v738, %v718
  %v784 = vadd.s32 %v738, %v719
  %v785 = vadd.s32 %v738, %v720
  %v786 = vadd.s32 %v738, %v721
  %v787 = vadd.s32 %v738, %v722
  %v788 = vadd.s32 %v738, %v723
  %v789 = vadd.s32 %v738, %v724
  %v790 = vadd.s32 %v738, %v725
  %v791 = vadd.s32 %v738, %v726
  %v792 = vadd.s32 %v738, %v727
  %v793 = vadd.s32 %v738, %v728
  %v794 = vadd.s32 %v738, %v729
  %v795 = vadd.s32 %v738, %v730
  %v796 = vadd.s32 %v738, %v731
  %v797 = vadd.s32 %v738, %v732
  %v798 = vadd.s32 %v738, %v733
  %v799 = vadd.s32 %v738, %v734
  %v800 = vadd.s32 %v738, %v735
  %v801 = vadd.s32 %v738, %v736
  %v802 = vadd.s32 %v738, %v737
  %vm803 = vcmp.lt.s32.totalorder %v739, 512
  %vm804 = vcmp.lt.s32.totalorder %v740, 512
  %vm805 = vcmp.lt.s32.totalorder %v741, 512
  %vm806 = vcmp.lt.s32.totalorder %v742, 512
  %vm807 = vcmp.lt.s32.totalorder %v743, 512
  %vm808 = vcmp.lt.s32.totalorder %v744, 512
  %vm809 = vcmp.lt.s32.totalorder %v745, 512
  %vm810 = vcmp.lt.s32.totalorder %v746, 512
  %vm811 = vcmp.lt.s32.totalorder %v747, 512
  %vm812 = vcmp.lt.s32.totalorder %v748, 512
  %vm813 = vcmp.lt.s32.totalorder %v749, 512
  %vm814 = vcmp.lt.s32.totalorder %v750, 512
  %vm815 = vcmp.lt.s32.totalorder %v751, 512
  %vm816 = vcmp.lt.s32.totalorder %v752, 512
  %vm817 = vcmp.lt.s32.totalorder %v753, 512
  %vm818 = vcmp.lt.s32.totalorder %v754, 512
  %vm819 = vcmp.lt.s32.totalorder %v755, 512
  %vm820 = vcmp.lt.s32.totalorder %v756, 512
  %vm821 = vcmp.lt.s32.totalorder %v757, 512
  %vm822 = vcmp.lt.s32.totalorder %v758, 512
  %vm823 = vcmp.lt.s32.totalorder %v759, 512
  %vm824 = vcmp.lt.s32.totalorder %v760, 512
  %vm825 = vcmp.lt.s32.totalorder %v761, 512
  %vm826 = vcmp.lt.s32.totalorder %v762, 512
  %vm827 = vcmp.lt.s32.totalorder %v763, 512
  %vm828 = vcmp.lt.s32.totalorder %v764, 512
  %vm829 = vcmp.lt.s32.totalorder %v765, 512
  %vm830 = vcmp.lt.s32.totalorder %v766, 512
  %vm831 = vcmp.lt.s32.totalorder %v767, 512
  %vm832 = vcmp.lt.s32.totalorder %v768, 512
  %vm833 = vcmp.lt.s32.totalorder %v769, 512
  %vm834 = vcmp.lt.s32.totalorder %v770, 512
  %vm835 = vcmp.lt.s32.totalorder %v771, 512
  %vm836 = vcmp.lt.s32.totalorder %v772, 512
  %vm837 = vcmp.lt.s32.totalorder %v773, 512
  %vm838 = vcmp.lt.s32.totalorder %v774, 512
  %vm839 = vcmp.lt.s32.totalorder %v775, 512
  %vm840 = vcmp.lt.s32.totalorder %v776, 512
  %vm841 = vcmp.lt.s32.totalorder %v777, 512
  %vm842 = vcmp.lt.s32.totalorder %v778, 512
  %vm843 = vcmp.lt.s32.totalorder %v779, 512
  %vm844 = vcmp.lt.s32.totalorder %v780, 512
  %vm845 = vcmp.lt.s32.totalorder %v781, 512
  %vm846 = vcmp.lt.s32.totalorder %v782, 512
  %vm847 = vcmp.lt.s32.totalorder %v783, 512
  %vm848 = vcmp.lt.s32.totalorder %v784, 512
  %vm849 = vcmp.lt.s32.totalorder %v785, 512
  %vm850 = vcmp.lt.s32.totalorder %v786, 512
  %vm851 = vcmp.lt.s32.totalorder %v787, 512
  %vm852 = vcmp.lt.s32.totalorder %v788, 512
  %vm853 = vcmp.lt.s32.totalorder %v789, 512
  %vm854 = vcmp.lt.s32.totalorder %v790, 512
  %vm855 = vcmp.lt.s32.totalorder %v791, 512
  %vm856 = vcmp.lt.s32.totalorder %v792, 512
  %vm857 = vcmp.lt.s32.totalorder %v793, 512
  %vm858 = vcmp.lt.s32.totalorder %v794, 512
  %vm859 = vcmp.lt.s32.totalorder %v795, 512
  %vm860 = vcmp.lt.s32.totalorder %v796, 512
  %vm861 = vcmp.lt.s32.totalorder %v797, 512
  %vm862 = vcmp.lt.s32.totalorder %v798, 512
  %vm863 = vcmp.lt.s32.totalorder %v799, 512
  %vm864 = vcmp.lt.s32.totalorder %v800, 512
  %vm865 = vcmp.lt.s32.totalorder %v801, 512
  %vm866 = vcmp.lt.s32.totalorder %v802, 512
  %v867 = vsel %vm803, %v384, 0.0
  %v868 = vsel %vm804, %v386, 0.0
  %v869 = vsel %vm805, %v389, 0.0
  %v870 = vsel %vm806, %v391, 0.0
  %v871 = vsel %vm807, %v394, 0.0
  %v872 = vsel %vm808, %v396, 0.0
  %v873 = vsel %vm809, %v399, 0.0
  %v874 = vsel %vm810, %v401, 0.0
  %v875 = vsel %vm811, %v404, 0.0
  %v876 = vsel %vm812, %v406, 0.0
  %v877 = vsel %vm813, %v409, 0.0
  %v878 = vsel %vm814, %v411, 0.0
  %v879 = vsel %vm815, %v414, 0.0
  %v880 = vsel %vm816, %v416, 0.0
  %v881 = vsel %vm817, %v419, 0.0
  %v882 = vsel %vm818, %v421, 0.0
  %v883 = vsel %vm819, %v424, 0.0
  %v884 = vsel %vm820, %v426, 0.0
  %v885 = vsel %vm821, %v429, 0.0
  %v886 = vsel %vm822, %v431, 0.0
  %v887 = vsel %vm823, %v434, 0.0
  %v888 = vsel %vm824, %v436, 0.0
  %v889 = vsel %vm825, %v439, 0.0
  %v890 = vsel %vm826, %v441, 0.0
  %v891 = vsel %vm827, %v444, 0.0
  %v892 = vsel %vm828, %v446, 0.0
  %v893 = vsel %vm829, %v449, 0.0
  %v894 = vsel %vm830, %v451, 0.0
  %v895 = vsel %vm831, %v454, 0.0
  %v896 = vsel %vm832, %v456, 0.0
  %v897 = vsel %vm833, %v459, 0.0
  %v898 = vsel %vm834, %v461, 0.0
  %v899 = vsel %vm835, %v464, 0.0
  %v900 = vsel %vm836, %v466, 0.0
  %v901 = vsel %vm837, %v469, 0.0
  %v902 = vsel %vm838, %v471, 0.0
  %v903 = vsel %vm839, %v474, 0.0
  %v904 = vsel %vm840, %v476, 0.0
  %v905 = vsel %vm841, %v479, 0.0
  %v906 = vsel %vm842, %v481, 0.0
  %v907 = vsel %vm843, %v484, 0.0
  %v908 = vsel %vm844, %v486, 0.0
  %v909 = vsel %vm845, %v489, 0.0
  %v910 = vsel %vm846, %v491, 0.0
  %v911 = vsel %vm847, %v494, 0.0
  %v912 = vsel %vm848, %v496, 0.0
  %v913 = vsel %vm849, %v499, 0.0
  %v914 = vsel %vm850, %v501, 0.0
  %v915 = vsel %vm851, %v504, 0.0
  %v916 = vsel %vm852, %v506, 0.0
  %v917 = vsel %vm853, %v509, 0.0
  %v918 = vsel %vm854, %v511, 0.0
  %v919 = vsel %vm855, %v514, 0.0
  %v920 = vsel %vm856, %v516, 0.0
  %v921 = vsel %vm857, %v519, 0.0
  %v922 = vsel %vm858, %v521, 0.0
  %v923 = vsel %vm859, %v524, 0.0
  %v924 = vsel %vm860, %v526, 0.0
  %v925 = vsel %vm861, %v529, 0.0
  %v926 = vsel %vm862, %v531, 0.0
  %v927 = vsel %vm863, %v534, 0.0
  %v928 = vsel %vm864, %v536, 0.0
  %v929 = vsel %vm865, %v539, 0.0
  %v930 = vsel %vm866, %v541, 0.0
  %vm931 = vcmask 64512
  %v932 = vsel %vm931, %v867, 0.0
  %v933 = vsel %vm931, %v868, 0.0
  %v934 = vadd.f32 %v932, %v933
  %v935 = vsel %vm931, %v869, 0.0
  %v936 = vadd.f32 %v934, %v935
  %v937 = vsel %vm931, %v870, 0.0
  %v938 = vadd.f32 %v936, %v937
  %v939 = vsel %vm931, %v871, 0.0
  %v940 = vadd.f32 %v938, %v939
  %v941 = vsel %vm931, %v872, 0.0
  %v942 = vadd.f32 %v940, %v941
  %v943 = vsel %vm931, %v873, 0.0
  %v944 = vadd.f32 %v942, %v943
  %v945 = vsel %vm931, %v874, 0.0
  %v946 = vadd.f32 %v944, %v945
  %v947 = vsel %vm931, %v875, 0.0
  %v948 = vadd.f32 %v946, %v947
  %v949 = vsel %vm931, %v876, 0.0
  %v950 = vadd.f32 %v948, %v949
  %v951 = vsel %vm931, %v877, 0.0
  %v952 = vadd.f32 %v950, %v951
  %v953 = vsel %vm931, %v878, 0.0
  %v954 = vadd.f32 %v952, %v953
  %v955 = vsel %vm931, %v879, 0.0
  %v956 = vadd.f32 %v954, %v955
  %v957 = vsel %vm931, %v880, 0.0
  %v958 = vadd.f32 %v956, %v957
  %v959 = vsel %vm931, %v881, 0.0
  %v960 = vadd.f32 %v958, %v959
  %v961 = vsel %vm931, %v882, 0.0
  %v962 = vadd.f32 %v960, %v961
  %v963 = vsel %vm931, %v883, 0.0
  %v964 = vadd.f32 %v962, %v963
  %v965 = vsel %vm931, %v884, 0.0
  %v966 = vadd.f32 %v964, %v965
  %v967 = vsel %vm931, %v885, 0.0
  %v968 = vadd.f32 %v966, %v967
  %v969 = vsel %vm931, %v886, 0.0
  %v970 = vadd.f32 %v968, %v969
  %v971 = vsel %vm931, %v887, 0.0
  %v972 = vadd.f32 %v970, %v971
  %v973 = vsel %vm931, %v888, 0.0
  %v974 = vadd.f32 %v972, %v973
  %v975 = vsel %vm931, %v889, 0.0
  %v976 = vadd.f32 %v974, %v975
  %v977 = vsel %vm931, %v890, 0.0
  %v978 = vadd.f32 %v976, %v977
  %v979 = vsel %vm931, %v891, 0.0
  %v980 = vadd.f32 %v978, %v979
  %v981 = vsel %vm931, %v892, 0.0
  %v982 = vadd.f32 %v980, %v981
  %v983 = vsel %vm931, %v893, 0.0
  %v984 = vadd.f32 %v982, %v983
  %v985 = vsel %vm931, %v894, 0.0
  %v986 = vadd.f32 %v984, %v985
  %v987 = vsel %vm931, %v895, 0.0
  %v988 = vadd.f32 %v986, %v987
  %v989 = vsel %vm931, %v896, 0.0
  %v990 = vadd.f32 %v988, %v989
  %v991 = vsel %vm931, %v897, 0.0
  %v992 = vadd.f32 %v990, %v991
  %v993 = vsel %vm931, %v898, 0.0
  %v994 = vadd.f32 %v992, %v993
  %v995 = vsel %vm931, %v899, 0.0
  %v996 = vadd.f32 %v994, %v995
  %v997 = vsel %vm931, %v900, 0.0
  %v998 = vadd.f32 %v996, %v997
  %v999 = vsel %vm931, %v901, 0.0
  %v1000 = vadd.f32 %v998, %v999
  %v1001 = vsel %vm931, %v902, 0.0
  %v1002 = vadd.f32 %v1000, %v1001
  %v1003 = vsel %vm931, %v903, 0.0
  %v1004 = vadd.f32 %v1002, %v1003
  %v1005 = vsel %vm931, %v904, 0.0
  %v1006 = vadd.f32 %v1004, %v1005
  %v1007 = vsel %vm931, %v905, 0.0
  %v1008 = vadd.f32 %v1006, %v1007
  %v1009 = vsel %vm931, %v906, 0.0
  %v1010 = vadd.f32 %v1008, %v1009
  %v1011 = vsel %vm931, %v907, 0.0
  %v1012 = vadd.f32 %v1010, %v1011
  %v1013 = vsel %vm931, %v908, 0.0
  %v1014 = vadd.f32 %v1012, %v1013
  %v1015 = vsel %vm931, %v909, 0.0
  %v1016 = vadd.f32 %v1014, %v1015
  %v1017 = vsel %vm931, %v910, 0.0
  %v1018 = vadd.f32 %v1016, %v1017
  %v1019 = vsel %vm931, %v911, 0.0
  %v1020 = vadd.f32 %v1018, %v1019
  %v1021 = vsel %vm931, %v912, 0.0
  %v1022 = vadd.f32 %v1020, %v1021
  %v1023 = vsel %vm931, %v913, 0.0
  %v1024 = vadd.f32 %v1022, %v1023
  %v1025 = vsel %vm931, %v914, 0.0
  %v1026 = vadd.f32 %v1024, %v1025
  %v1027 = vsel %vm931, %v915, 0.0
  %v1028 = vadd.f32 %v1026, %v1027
  %v1029 = vsel %vm931, %v916, 0.0
  %v1030 = vadd.f32 %v1028, %v1029
  %v1031 = vsel %vm931, %v917, 0.0
  %v1032 = vadd.f32 %v1030, %v1031
  %v1033 = vsel %vm931, %v918, 0.0
  %v1034 = vadd.f32 %v1032, %v1033
  %v1035 = vsel %vm931, %v919, 0.0
  %v1036 = vadd.f32 %v1034, %v1035
  %v1037 = vsel %vm931, %v920, 0.0
  %v1038 = vadd.f32 %v1036, %v1037
  %v1039 = vsel %vm931, %v921, 0.0
  %v1040 = vadd.f32 %v1038, %v1039
  %v1041 = vsel %vm931, %v922, 0.0
  %v1042 = vadd.f32 %v1040, %v1041
  %v1043 = vsel %vm931, %v923, 0.0
  %v1044 = vadd.f32 %v1042, %v1043
  %v1045 = vsel %vm931, %v924, 0.0
  %v1046 = vadd.f32 %v1044, %v1045
  %v1047 = vsel %vm931, %v925, 0.0
  %v1048 = vadd.f32 %v1046, %v1047
  %v1049 = vsel %vm931, %v926, 0.0
  %v1050 = vadd.f32 %v1048, %v1049
  %v1051 = vsel %vm931, %v927, 0.0
  %v1052 = vadd.f32 %v1050, %v1051
  %v1053 = vsel %vm931, %v928, 0.0
  %v1054 = vadd.f32 %v1052, %v1053
  %v1055 = vsel %vm931, %v929, 0.0
  %v1056 = vadd.f32 %v1054, %v1055
  %v1057 = vsel %vm931, %v930, 0.0
  %v1058 = vadd.f32 %v1056, %v1057
  %v1059 = vrot.slane %v1058, 4
  %v1060 = vadd.f32 %v1058, %v1059
  %v1061 = vrot.slane %v1060, 2
  %v1062 = vadd.f32 %v1060, %v1061
  %v1063 = vrot.slane %v1062, 1
  %v1064 = vadd.f32 %v1062, %v1063
  %v1065 = vmul.f32 %v867, %v867
  %v1066 = vmul.f32 %v868, %v868
  %v1067 = vmul.f32 %v869, %v869
  %v1068 = vmul.f32 %v870, %v870
  %v1069 = vmul.f32 %v871, %v871
  %v1070 = vmul.f32 %v872, %v872
  %v1071 = vmul.f32 %v873, %v873
  %v1072 = vmul.f32 %v874, %v874
  %v1073 = vmul.f32 %v875, %v875
  %v1074 = vmul.f32 %v876, %v876
  %v1075 = vmul.f32 %v877, %v877
  %v1076 = vmul.f32 %v878, %v878
  %v1077 = vmul.f32 %v879, %v879
  %v1078 = vmul.f32 %v880, %v880
  %v1079 = vmul.f32 %v881, %v881
  %v1080 = vmul.f32 %v882, %v882
  %v1081 = vmul.f32 %v883, %v883
  %v1082 = vmul.f32 %v884, %v884
  %v1083 = vmul.f32 %v885, %v885
  %v1084 = vmul.f32 %v886, %v886
  %v1085 = vmul.f32 %v887, %v887
  %v1086 = vmul.f32 %v888, %v888
  %v1087 = vmul.f32 %v889, %v889
  %v1088 = vmul.f32 %v890, %v890
  %v1089 = vmul.f32 %v891, %v891
  %v1090 = vmul.f32 %v892, %v892
  %v1091 = vmul.f32 %v893, %v893
  %v1092 = vmul.f32 %v894, %v894
  %v1093 = vmul.f32 %v895, %v895
  %v1094 = vmul.f32 %v896, %v896
  %v1095 = vmul.f32 %v897, %v897
  %v1096 = vmul.f32 %v898, %v898
  %v1097 = vmul.f32 %v899, %v899
  %v1098 = vmul.f32 %v900, %v900
  %v1099 = vmul.f32 %v901, %v901
  %v1100 = vmul.f32 %v902, %v902
  %v1101 = vmul.f32 %v903, %v903
  %v1102 = vmul.f32 %v904, %v904
  %v1103 = vmul.f32 %v905, %v905
  %v1104 = vmul.f32 %v906, %v906
  %v1105 = vmul.f32 %v907, %v907
  %v1106 = vmul.f32 %v908, %v908
  %v1107 = vmul.f32 %v909, %v909
  %v1108 = vmul.f32 %v910, %v910
  %v1109 = vmul.f32 %v911, %v911
  %v1110 = vmul.f32 %v912, %v912
  %v1111 = vmul.f32 %v913, %v913
  %v1112 = vmul.f32 %v914, %v914
  %v1113 = vmul.f32 %v915, %v915
  %v1114 = vmul.f32 %v916, %v916
  %v1115 = vmul.f32 %v917, %v917
  %v1116 = vmul.f32 %v918, %v918
  %v1117 = vmul.f32 %v919, %v919
  %v1118 = vmul.f32 %v920, %v920
  %v1119 = vmul.f32 %v921, %v921
  %v1120 = vmul.f32 %v922, %v922
  %v1121 = vmul.f32 %v923, %v923
  %v1122 = vmul.f32 %v924, %v924
  %v1123 = vmul.f32 %v925, %v925
  %v1124 = vmul.f32 %v926, %v926
  %v1125 = vmul.f32 %v927, %v927
  %v1126 = vmul.f32 %v928, %v928
  %v1127 = vmul.f32 %v929, %v929
  %v1128 = vmul.f32 %v930, %v930
  %v1129 = vsel %vm931, %v1065, 0.0
  %v1130 = vsel %vm931, %v1066, 0.0
  %v1131 = vadd.f32 %v1129, %v1130
  %v1132 = vsel %vm931, %v1067, 0.0
  %v1133 = vadd.f32 %v1131, %v1132
  %v1134 = vsel %vm931, %v1068, 0.0
  %v1135 = vadd.f32 %v1133, %v1134
  %v1136 = vsel %vm931, %v1069, 0.0
  %v1137 = vadd.f32 %v1135, %v1136
  %v1138 = vsel %vm931, %v1070, 0.0
  %v1139 = vadd.f32 %v1137, %v1138
  %v1140 = vsel %vm931, %v1071, 0.0
  %v1141 = vadd.f32 %v1139, %v1140
  %v1142 = vsel %vm931, %v1072, 0.0
  %v1143 = vadd.f32 %v1141, %v1142
  %v1144 = vsel %vm931, %v1073, 0.0
  %v1145 = vadd.f32 %v1143, %v1144
  %v1146 = vsel %vm931, %v1074, 0.0
  %v1147 = vadd.f32 %v1145, %v1146
  %v1148 = vsel %vm931, %v1075, 0.0
  %v1149 = vadd.f32 %v1147, %v1148
  %v1150 = vsel %vm931, %v1076, 0.0
  %v1151 = vadd.f32 %v1149, %v1150
  %v1152 = vsel %vm931, %v1077, 0.0
  %v1153 = vadd.f32 %v1151, %v1152
  %v1154 = vsel %vm931, %v1078, 0.0
  %v1155 = vadd.f32 %v1153, %v1154
  %v1156 = vsel %vm931, %v1079, 0.0
  %v1157 = vadd.f32 %v1155, %v1156
  %v1158 = vsel %vm931, %v1080, 0.0
  %v1159 = vadd.f32 %v1157, %v1158
  %v1160 = vsel %vm931, %v1081, 0.0
  %v1161 = vadd.f32 %v1159, %v1160
  %v1162 = vsel %vm931, %v1082, 0.0
  %v1163 = vadd.f32 %v1161, %v1162
  %v1164 = vsel %vm931, %v1083, 0.0
  %v1165 = vadd.f32 %v1163, %v1164
  %v1166 = vsel %vm931, %v1084, 0.0
  %v1167 = vadd.f32 %v1165, %v1166
  %v1168 = vsel %vm931, %v1085, 0.0
  %v1169 = vadd.f32 %v1167, %v1168
  %v1170 = vsel %vm931, %v1086, 0.0
  %v1171 = vadd.f32 %v1169, %v1170
  %v1172 = vsel %vm931, %v1087, 0.0
  %v1173 = vadd.f32 %v1171, %v1172
  %v1174 = vsel %vm931, %v1088, 0.0
  %v1175 = vadd.f32 %v1173, %v1174
  %v1176 = vsel %vm931, %v1089, 0.0
  %v1177 = vadd.f32 %v1175, %v1176
  %v1178 = vsel %vm931, %v1090, 0.0
  %v1179 = vadd.f32 %v1177, %v1178
  %v1180 = vsel %vm931, %v1091, 0.0
  %v1181 = vadd.f32 %v1179, %v1180
  %v1182 = vsel %vm931, %v1092, 0.0
  %v1183 = vadd.f32 %v1181, %v1182
  %v1184 = vsel %vm931, %v1093, 0.0
  %v1185 = vadd.f32 %v1183, %v1184
  %v1186 = vsel %vm931, %v1094, 0.0
  %v1187 = vadd.f32 %v1185, %v1186
  %v1188 = vsel %vm931, %v1095, 0.0
  %v1189 = vadd.f32 %v1187, %v1188
  %v1190 = vsel %vm931, %v1096, 0.0
  %v1191 = vadd.f32 %v1189, %v1190
  %v1192 = vsel %vm931, %v1097, 0.0
  %v1193 = vadd.f32 %v1191, %v1192
  %v1194 = vsel %vm931, %v1098, 0.0
  %v1195 = vadd.f32 %v1193, %v1194
  %v1196 = vsel %vm931, %v1099, 0.0
  %v1197 = vadd.f32 %v1195, %v1196
  %v1198 = vsel %vm931, %v1100, 0.0
  %v1199 = vadd.f32 %v1197, %v1198
  %v1200 = vsel %vm931, %v1101, 0.0
  %v1201 = vadd.f32 %v1199, %v1200
  %v1202 = vsel %vm931, %v1102, 0.0
  %v1203 = vadd.f32 %v1201, %v1202
  %v1204 = vsel %vm931, %v1103, 0.0
  %v1205 = vadd.f32 %v1203, %v1204
  %v1206 = vsel %vm931, %v1104, 0.0
  %v1207 = vadd.f32 %v1205, %v1206
  %v1208 = vsel %vm931, %v1105, 0.0
  %v1209 = vadd.f32 %v1207, %v1208
  %v1210 = vsel %vm931, %v1106, 0.0
  %v1211 = vadd.f32 %v1209, %v1210
  %v1212 = vsel %vm931, %v1107, 0.0
  %v1213 = vadd.f32 %v1211, %v1212
  %v1214 = vsel %vm931, %v1108, 0.0
  %v1215 = vadd.f32 %v1213, %v1214
  %v1216 = vsel %vm931, %v1109, 0.0
  %v1217 = vadd.f32 %v1215, %v1216
  %v1218 = vsel %vm931, %v1110, 0.0
  %v1219 = vadd.f32 %v1217, %v1218
  %v1220 = vsel %vm931, %v1111, 0.0
  %v1221 = vadd.f32 %v1219, %v1220
  %v1222 = vsel %vm931, %v1112, 0.0
  %v1223 = vadd.f32 %v1221, %v1222
  %v1224 = vsel %vm931, %v1113, 0.0
  %v1225 = vadd.f32 %v1223, %v1224
  %v1226 = vsel %vm931, %v1114, 0.0
  %v1227 = vadd.f32 %v1225, %v1226
  %v1228 = vsel %vm931, %v1115, 0.0
  %v1229 = vadd.f32 %v1227, %v1228
  %v1230 = vsel %vm931, %v1116, 0.0
  %v1231 = vadd.f32 %v1229, %v1230
  %v1232 = vsel %vm931, %v1117, 0.0
  %v1233 = vadd.f32 %v1231, %v1232
  %v1234 = vsel %vm931, %v1118, 0.0
  %v1235 = vadd.f32 %v1233, %v1234
  %v1236 = vsel %vm931, %v1119, 0.0
  %v1237 = vadd.f32 %v1235, %v1236
  %v1238 = vsel %vm931, %v1120, 0.0
  %v1239 = vadd.f32 %v1237, %v1238
  %v1240 = vsel %vm931, %v1121, 0.0
  %v1241 = vadd.f32 %v1239, %v1240
  %v1242 = vsel %vm931, %v1122, 0.0
  %v1243 = vadd.f32 %v1241, %v1242
  %v1244 = vsel %vm931, %v1123, 0.0
  %v1245 = vadd.f32 %v1243, %v1244
  %v1246 = vsel %vm931, %v1124, 0.0
  %v1247 = vadd.f32 %v1245, %v1246
  %v1248 = vsel %vm931, %v1125, 0.0
  %v1249 = vadd.f32 %v1247, %v1248
  %v1250 = vsel %vm931, %v1126, 0.0
  %v1251 = vadd.f32 %v1249, %v1250
  %v1252 = vsel %vm931, %v1127, 0.0
  %v1253 = vadd.f32 %v1251, %v1252
  %v1254 = vsel %vm931, %v1128, 0.0
  %v1255 = vadd.f32 %v1253, %v1254
  %v1256 = vrot.slane %v1255, 4
  %v1257 = vadd.f32 %v1255, %v1256
  %v1258 = vrot.slane %v1257, 2
  %v1259 = vadd.f32 %v1257, %v1258
  %v1260 = vrot.slane %v1259, 1
  %v1261 = vadd.f32 %v1259, %v1260
  %vm1262 = vcmask 1040384
  %v1263 = vsel %vm1262, %v1064, %v1261
  %vm1264 = vcmask 58368
  %1265 = vst.msk [vmem:[%s4] sm:$0x3] %vm1264, %v1263
  // Predicated region
  $region14: #{dc_discriminator_forward.9} parent=0 // pred_check
    _
  $region15: #{dc_discriminator_forward.9} parent=0 // pred_check_branch
    %1267 = sbr.rel (0) target = $region17
  $region16: #{dc_discriminator_forward.9} parent=0 // pred_region
    _
  $region17: #{dc_discriminator_forward.9} parent=0 // pred_fallthru
    _
  // Predicated region
  $region18: #{dc_discriminator_forward.9} parent=0 // pred_check
    _
  $region19: #{dc_discriminator_forward.9} parent=0 // pred_check_branch
    %1269 = sbr.rel (0) target = $region21
  $region20: #{dc_discriminator_forward.9} parent=0 // pred_region
    _
  $region21: #{dc_discriminator_forward.9} parent=0 // pred_fallthru
    _
  // Predicated region
  $region22: #{dc_discriminator_forward.9} parent=0 // pred_check
    _
  $region23: #{dc_discriminator_forward.9} parent=0 // pred_check_branch
    %1271 = sbr.rel (0) target = $region25
  $region24: #{dc_discriminator_forward.9} parent=0 // pred_region
    _
  $region25: #{dc_discriminator_forward.9} parent=0 // pred_fallthru
    _
  // Predicated region
  $region26: #{dc_discriminator_forward.9} parent=0 // pred_check
    _
  $region27: #{dc_discriminator_forward.9} parent=0 // pred_check_branch
    %1273 = sbr.rel (0) target = $region29
  $region28: #{dc_discriminator_forward.9} parent=0 // pred_region
    _
  $region29: #{dc_discriminator_forward.9} parent=0 // pred_fallthru
    _

// kernel: dc_discriminator_forward.11
$region0: #{dc_discriminator_forward.11}
  #allocation0 [shape = 'u32[]', space=smem, size = 0x4, offset = 0x4, fixed_abs, tag = 'smem constant byte address 0x4 - core index']
  #allocation1 [shape = 'u32[72,128]{1,0:T(1,128)}', space=vmem, size = 0x9000, scoped, tag = 'internal scratch']
  %s0 = inlined_call_operand.vmem [shape: bf16[128,128], index: 0, kind: input, shape index: {}]
  %s1 = inlined_call_operand.vmem [shape: bf16[128,16], index: 1, kind: input, shape index: {}]
  %s2 = inlined_call_operand.vmem [shape: f32[1,16], index: 2, kind: input, shape index: {}]
  %s3 = inlined_call_operand.vmem [shape: bf16[128,16], index: 3, kind: output, shape index: {0}]
  %s4 = inlined_call_operand.vmem [shape: f32[1,2,16], index: 4, kind: output, shape index: {1}]
  %5 = xla_tuple %s3, %s4
  %s6 = sld [smem:[#allocation0]]
  $region30: #{dc_discriminator_forward.11} parent=0
    _
  %s8 = ssub.s32 1, %s6
  %s9 = scalar_select 0, %s8, %s6
  // Predicated region
  $region2: #{dc_discriminator_forward.11} parent=0 // pred_check
    _
  $region3: #{dc_discriminator_forward.11} parent=0 // pred_check_branch
    %11 = sbr.rel (0) target = $region5
  $region4: #{dc_discriminator_forward.11} parent=0 // pred_region
    _
  $region5: #{dc_discriminator_forward.11} parent=0 // pred_fallthru
    _
  // Predicated region
  $region6: #{dc_discriminator_forward.11} parent=0 // pred_check
    _
  $region7: #{dc_discriminator_forward.11} parent=0 // pred_check_branch
    %13 = sbr.rel (0) target = $region9
  $region8: #{dc_discriminator_forward.11} parent=0 // pred_region
    _
  $region9: #{dc_discriminator_forward.11} parent=0 // pred_fallthru
    _
  // Predicated region
  $region10: #{dc_discriminator_forward.11} parent=0 // pred_check
    _
  $region11: #{dc_discriminator_forward.11} parent=0 // pred_check_branch
    %15 = sbr.rel (0) target = $region13
  $region12: #{dc_discriminator_forward.11} parent=0 // pred_region
    _
  $region13: #{dc_discriminator_forward.11} parent=0 // pred_fallthru
    _
  %v16 = vld [vmem:[%s0] sm:$0xf]
  %v17 = vld [vmem:[%s0 + $0x4] sm:$0xf]
  %v18 = vld [vmem:[%s0 + $0x8] sm:$0xf]
  %v19 = vld [vmem:[%s0 + $0xc] sm:$0xf]
  %v20 = vld [vmem:[%s0 + $0x10] sm:$0xf]
  %v21 = vld [vmem:[%s0 + $0x14] sm:$0xf]
  %v22 = vld [vmem:[%s0 + $0x18] sm:$0xf]
  %v23 = vld [vmem:[%s0 + $0x1c] sm:$0xf]
  %v24 = vld [vmem:[%s0 + $0x20] sm:$0xf]
  %v25 = vld [vmem:[%s0 + $0x24] sm:$0xf]
  %v26 = vld [vmem:[%s0 + $0x28] sm:$0xf]
  %v27 = vld [vmem:[%s0 + $0x2c] sm:$0xf]
  %v28 = vld [vmem:[%s0 + $0x30] sm:$0xf]
  %v29 = vld [vmem:[%s0 + $0x34] sm:$0xf]
  %v30 = vld [vmem:[%s0 + $0x38] sm:$0xf]
  %v31 = vld [vmem:[%s0 + $0x3c] sm:$0xf]
  %v32 = vld [vmem:[%s1] sm:$0xf]
  %v33 = vld [vmem:[%s1 + $0x4] sm:$0xf]
  %v34 = vld [vmem:[%s1 + $0x8] sm:$0xf]
  %v35 = vld [vmem:[%s1 + $0xc] sm:$0xf]
  %v36 = vld [vmem:[%s1 + $0x10] sm:$0xf]
  %v37 = vld [vmem:[%s1 + $0x14] sm:$0xf]
  %v38 = vld [vmem:[%s1 + $0x18] sm:$0xf]
  %v39 = vld [vmem:[%s1 + $0x1c] sm:$0xf]
  %v40 = vld [vmem:[%s1 + $0x20] sm:$0xf]
  %v41 = vld [vmem:[%s1 + $0x24] sm:$0xf]
  %v42 = vld [vmem:[%s1 + $0x28] sm:$0xf]
  %v43 = vld [vmem:[%s1 + $0x2c] sm:$0xf]
  %v44 = vld [vmem:[%s1 + $0x30] sm:$0xf]
  %v45 = vld [vmem:[%s1 + $0x34] sm:$0xf]
  %v46 = vld [vmem:[%s1 + $0x38] sm:$0xf]
  %v47 = vld [vmem:[%s1 + $0x3c] sm:$0xf]
  %v48 = vld [vmem:[%s2] sm:$0x1]
  %v50 = vperm.slane %v48, 0
  %v68 = vunpack.c.l.b16 %v16
  %v69 = vunpack.c.l.b16 %v17
  %v70 = vunpack.c.l.b16 %v18
  %v71 = vunpack.c.l.b16 %v19
  %v72 = vunpack.c.l.b16 %v20
  %v73 = vunpack.c.l.b16 %v21
  %v74 = vunpack.c.l.b16 %v22
  %v75 = vunpack.c.l.b16 %v23
  %v76 = vunpack.c.l.b16 %v24
  %v77 = vunpack.c.l.b16 %v25
  %v78 = vunpack.c.l.b16 %v26
  %v79 = vunpack.c.l.b16 %v27
  %v80 = vunpack.c.l.b16 %v28
  %v81 = vunpack.c.l.b16 %v29
  %v82 = vunpack.c.l.b16 %v30
  %v83 = vunpack.c.l.b16 %v31
  %v84 = vpack.c.b16 %v69, %v68
  %v85 = vpack.c.b16 %v71, %v70
  %v86 = vpack.c.b16 %v73, %v72
  %v87 = vpack.c.b16 %v75, %v74
  %v88 = vpack.c.b16 %v77, %v76
  %v89 = vpack.c.b16 %v79, %v78
  %v90 = vpack.c.b16 %v81, %v80
  %v91 = vpack.c.b16 %v83, %v82
  %v116 = vunpack.c.l.b16 %v32
  %v117 = vunpack.c.l.b16 %v33
  %v118 = vunpack.c.l.b16 %v34
  %v119 = vunpack.c.l.b16 %v35
  %v120 = vunpack.c.l.b16 %v36
  %v121 = vunpack.c.l.b16 %v37
  %v122 = vunpack.c.l.b16 %v38
  %v123 = vunpack.c.l.b16 %v39
  %v124 = vunpack.c.l.b16 %v40
  %v125 = vunpack.c.l.b16 %v41
  %v126 = vunpack.c.l.b16 %v42
  %v127 = vunpack.c.l.b16 %v43
  %v128 = vunpack.c.l.b16 %v44
  %v129 = vunpack.c.l.b16 %v45
  %v130 = vunpack.c.l.b16 %v46
  %v131 = vunpack.c.l.b16 %v47
  %v132 = vpack.c.b16 %v117, %v116
  %v133 = vpack.c.b16 %v119, %v118
  %v134 = vpack.c.b16 %v121, %v120
  %v135 = vpack.c.b16 %v123, %v122
  %v136 = vpack.c.b16 %v125, %v124
  %v137 = vpack.c.b16 %v127, %v126
  %v138 = vpack.c.b16 %v129, %v128
  %v139 = vpack.c.b16 %v131, %v130
  %148 = vmatpush.bf16.msra.mxu0 %v139
  %149 = vmatpush.bf16.msra.mxu0 %v138
  %150 = vmatpush.bf16.msra.mxu0 %v137
  %151 = vmatpush.bf16.msra.mxu0 %v136
  %152 = vmatpush.bf16.msra.mxu0 %v135
  %153 = vmatpush.bf16.msra.mxu0 %v134
  %154 = vmatpush.bf16.msra.mxu0 %v133
  %155 = vmatpush.bf16.msra.mxu0 %v132
  %156 = vmatmul.bf16.gmra.mxu0 %v84
  %v157 = vpop.f32.mrf.mxu0
  %v158 = vadd.f32 %v50, %v157
  %v159 = vpop.f32.mrf.mxu0
  %v160 = vadd.f32 %v50, %v159
  %161 = vmatmul.bf16.gmra.mxu0 %v85
  %v162 = vpop.f32.mrf.mxu0
  %v163 = vadd.f32 %v50, %v162
  %v164 = vpop.f32.mrf.mxu0
  %v165 = vadd.f32 %v50, %v164
  %166 = vmatmul.bf16.gmra.mxu0 %v86
  %v167 = vpop.f32.mrf.mxu0
  %v168 = vadd.f32 %v50, %v167
  %v169 = vpop.f32.mrf.mxu0
  %v170 = vadd.f32 %v50, %v169
  %171 = vmatmul.bf16.gmra.mxu0 %v87
  %v172 = vpop.f32.mrf.mxu0
  %v173 = vadd.f32 %v50, %v172
  %v174 = vpop.f32.mrf.mxu0
  %v175 = vadd.f32 %v50, %v174
  %176 = vmatmul.bf16.gmra.mxu0 %v88
  %v177 = vpop.f32.mrf.mxu0
  %v178 = vadd.f32 %v50, %v177
  %v179 = vpop.f32.mrf.mxu0
  %v180 = vadd.f32 %v50, %v179
  %181 = vmatmul.bf16.gmra.mxu0 %v89
  %v182 = vpop.f32.mrf.mxu0
  %v183 = vadd.f32 %v50, %v182
  %v184 = vpop.f32.mrf.mxu0
  %v185 = vadd.f32 %v50, %v184
  %186 = vmatmul.bf16.gmra.mxu0 %v90
  %v187 = vpop.f32.mrf.mxu0
  %v188 = vadd.f32 %v50, %v187
  %v189 = vpop.f32.mrf.mxu0
  %v190 = vadd.f32 %v50, %v189
  %191 = vmatmul.bf16.gmra.mxu0 %v91
  %v192 = vpop.f32.mrf.mxu0
  %v193 = vadd.f32 %v50, %v192
  %v194 = vpop.f32.mrf.mxu0
  %v195 = vadd.f32 %v50, %v194
  %196 = vdwg.mxu0
  %v197 = vpack.c.bf16 %v158, %v158
  %v198 = vpack.c.bf16 %v160, %v160
  %v199 = vpack.c.bf16 %v163, %v163
  %v200 = vpack.c.bf16 %v165, %v165
  %v201 = vpack.c.bf16 %v168, %v168
  %v202 = vpack.c.bf16 %v170, %v170
  %v203 = vpack.c.bf16 %v173, %v173
  %v204 = vpack.c.bf16 %v175, %v175
  %v205 = vpack.c.bf16 %v178, %v178
  %v206 = vpack.c.bf16 %v180, %v180
  %v207 = vpack.c.bf16 %v183, %v183
  %v208 = vpack.c.bf16 %v185, %v185
  %v209 = vpack.c.bf16 %v188, %v188
  %v210 = vpack.c.bf16 %v190, %v190
  %v211 = vpack.c.bf16 %v193, %v193
  %v212 = vpack.c.bf16 %v195, %v195
  %vm213 = vcmask 125952
  %214 = vst.msk [vmem:[%s3] sm:$0xf] %vm213, %v197
  %215 = vst.msk [vmem:[%s3 + $0x4] sm:$0xf] %vm213, %v198
  %216 = vst.msk [vmem:[%s3 + $0x8] sm:$0xf] %vm213, %v199
  %217 = vst.msk [vmem:[%s3 + $0xc] sm:$0xf] %vm213, %v200
  %218 = vst.msk [vmem:[%s3 + $0x10] sm:$0xf] %vm213, %v201
  %219 = vst.msk [vmem:[%s3 + $0x14] sm:$0xf] %vm213, %v202
  %220 = vst.msk [vmem:[%s3 + $0x18] sm:$0xf] %vm213, %v203
  %221 = vst.msk [vmem:[%s3 + $0x1c] sm:$0xf] %vm213, %v204
  %222 = vst.msk [vmem:[%s3 + $0x20] sm:$0xf] %vm213, %v205
  %223 = vst.msk [vmem:[%s3 + $0x24] sm:$0xf] %vm213, %v206
  %224 = vst.msk [vmem:[%s3 + $0x28] sm:$0xf] %vm213, %v207
  %225 = vst.msk [vmem:[%s3 + $0x2c] sm:$0xf] %vm213, %v208
  %226 = vst.msk [vmem:[%s3 + $0x30] sm:$0xf] %vm213, %v209
  %227 = vst.msk [vmem:[%s3 + $0x34] sm:$0xf] %vm213, %v210
  %228 = vst.msk [vmem:[%s3 + $0x38] sm:$0xf] %vm213, %v211
  %229 = vst.msk [vmem:[%s3 + $0x3c] sm:$0xf] %vm213, %v212
  %s230 = smul.u32 0, 128
  %v231 = vlaneseq
  %v232 = vshrl.u32 %v231, 7
  %v233 = vadd.s32 %v232, 8
  %v234 = vadd.s32 %v232, 16
  %v235 = vadd.s32 %v232, 24
  %v236 = vadd.s32 %v232, 32
  %v237 = vadd.s32 %v232, 40
  %v238 = vadd.s32 %v232, 48
  %v239 = vadd.s32 %v232, 56
  %v240 = vadd.s32 %v232, 64
  %v241 = vadd.s32 %v232, 72
  %v242 = vadd.s32 %v232, 80
  %v243 = vadd.s32 %v232, 88
  %v244 = vadd.s32 %v232, 96
  %v245 = vadd.s32 %v232, 104
  %v246 = vadd.s32 %v232, 112
  %v247 = vadd.s32 %v232, 120
  %v248 = vstv %s230
  %v249 = vadd.s32 %v248, %v232
  %v250 = vadd.s32 %v248, %v233
  %v251 = vadd.s32 %v248, %v234
  %v252 = vadd.s32 %v248, %v235
  %v253 = vadd.s32 %v248, %v236
  %v254 = vadd.s32 %v248, %v237
  %v255 = vadd.s32 %v248, %v238
  %v256 = vadd.s32 %v248, %v239
  %v257 = vadd.s32 %v248, %v240
  %v258 = vadd.s32 %v248, %v241
  %v259 = vadd.s32 %v248, %v242
  %v260 = vadd.s32 %v248, %v243
  %v261 = vadd.s32 %v248, %v244
  %v262 = vadd.s32 %v248, %v245
  %v263 = vadd.s32 %v248, %v246
  %v264 = vadd.s32 %v248, %v247
  %vm265 = vcmp.lt.s32.totalorder %v249, 128
  %vm266 = vcmp.lt.s32.totalorder %v250, 128
  %vm267 = vcmp.lt.s32.totalorder %v251, 128
  %vm268 = vcmp.lt.s32.totalorder %v252, 128
  %vm269 = vcmp.lt.s32.totalorder %v253, 128
  %vm270 = vcmp.lt.s32.totalorder %v254, 128
  %vm271 = vcmp.lt.s32.totalorder %v255, 128
  %vm272 = vcmp.lt.s32.totalorder %v256, 128
  %vm273 = vcmp.lt.s32.totalorder %v257, 128
  %vm274 = vcmp.lt.s32.totalorder %v258, 128
  %vm275 = vcmp.lt.s32.totalorder %v259, 128
  %vm276 = vcmp.lt.s32.totalorder %v260, 128
  %vm277 = vcmp.lt.s32.totalorder %v261, 128
  %vm278 = vcmp.lt.s32.totalorder %v262, 128
  %vm279 = vcmp.lt.s32.totalorder %v263, 128
  %vm280 = vcmp.lt.s32.totalorder %v264, 128
  %v281 = vsel %vm265, %v158, 0.0
  %v282 = vsel %vm266, %v160, 0.0
  %v283 = vsel %vm267, %v163, 0.0
  %v284 = vsel %vm268, %v165, 0.0
  %v285 = vsel %vm269, %v168, 0.0
  %v286 = vsel %vm270, %v170, 0.0
  %v287 = vsel %vm271, %v173, 0.0
  %v288 = vsel %vm272, %v175, 0.0
  %v289 = vsel %vm273, %v178, 0.0
  %v290 = vsel %vm274, %v180, 0.0
  %v291 = vsel %vm275, %v183, 0.0
  %v292 = vsel %vm276, %v185, 0.0
  %v293 = vsel %vm277, %v188, 0.0
  %v294 = vsel %vm278, %v190, 0.0
  %v295 = vsel %vm279, %v193, 0.0
  %v296 = vsel %vm280, %v195, 0.0
  %vm297 = vcmask 130048
  %v298 = vsel %vm297, %v281, 0.0
  %v299 = vsel %vm297, %v282, 0.0
  %v300 = vadd.f32 %v298, %v299
  %v301 = vsel %vm297, %v283, 0.0
  %v302 = vadd.f32 %v300, %v301
  %v303 = vsel %vm297, %v284, 0.0
  %v304 = vadd.f32 %v302, %v303
  %v305 = vsel %vm297, %v285, 0.0
  %v306 = vadd.f32 %v304, %v305
  %v307 = vsel %vm297, %v286, 0.0
  %v308 = vadd.f32 %v306, %v307
  %v309 = vsel %vm297, %v287, 0.0
  %v310 = vadd.f32 %v308, %v309
  %v311 = vsel %vm297, %v288, 0.0
  %v312 = vadd.f32 %v310, %v311
  %v313 = vsel %vm297, %v289, 0.0
  %v314 = vadd.f32 %v312, %v313
  %v315 = vsel %vm297, %v290, 0.0
  %v316 = vadd.f32 %v314, %v315
  %v317 = vsel %vm297, %v291, 0.0
  %v318 = vadd.f32 %v316, %v317
  %v319 = vsel %vm297, %v292, 0.0
  %v320 = vadd.f32 %v318, %v319
  %v321 = vsel %vm297, %v293, 0.0
  %v322 = vadd.f32 %v320, %v321
  %v323 = vsel %vm297, %v294, 0.0
  %v324 = vadd.f32 %v322, %v323
  %v325 = vsel %vm297, %v295, 0.0
  %v326 = vadd.f32 %v324, %v325
  %v327 = vsel %vm297, %v296, 0.0
  %v328 = vadd.f32 %v326, %v327
  %v329 = vrot.slane %v328, 4
  %v330 = vadd.f32 %v328, %v329
  %v331 = vrot.slane %v330, 2
  %v332 = vadd.f32 %v330, %v331
  %v333 = vrot.slane %v332, 1
  %v334 = vadd.f32 %v332, %v333
  %v335 = vmul.f32 %v281, %v281
  %v336 = vmul.f32 %v282, %v282
  %v337 = vmul.f32 %v283, %v283
  %v338 = vmul.f32 %v284, %v284
  %v339 = vmul.f32 %v285, %v285
  %v340 = vmul.f32 %v286, %v286
  %v341 = vmul.f32 %v287, %v287
  %v342 = vmul.f32 %v288, %v288
  %v343 = vmul.f32 %v289, %v289
  %v344 = vmul.f32 %v290, %v290
  %v345 = vmul.f32 %v291, %v291
  %v346 = vmul.f32 %v292, %v292
  %v347 = vmul.f32 %v293, %v293
  %v348 = vmul.f32 %v294, %v294
  %v349 = vmul.f32 %v295, %v295
  %v350 = vmul.f32 %v296, %v296
  %v351 = vsel %vm297, %v335, 0.0
  %v352 = vsel %vm297, %v336, 0.0
  %v353 = vadd.f32 %v351, %v352
  %v354 = vsel %vm297, %v337, 0.0
  %v355 = vadd.f32 %v353, %v354
  %v356 = vsel %vm297, %v338, 0.0
  %v357 = vadd.f32 %v355, %v356
  %v358 = vsel %vm297, %v339, 0.0
  %v359 = vadd.f32 %v357, %v358
  %v360 = vsel %vm297, %v340, 0.0
  %v361 = vadd.f32 %v359, %v360
  %v362 = vsel %vm297, %v341, 0.0
  %v363 = vadd.f32 %v361, %v362
  %v364 = vsel %vm297, %v342, 0.0
  %v365 = vadd.f32 %v363, %v364
  %v366 = vsel %vm297, %v343, 0.0
  %v367 = vadd.f32 %v365, %v366
  %v368 = vsel %vm297, %v344, 0.0
  %v369 = vadd.f32 %v367, %v368
  %v370 = vsel %vm297, %v345, 0.0
  %v371 = vadd.f32 %v369, %v370
  %v372 = vsel %vm297, %v346, 0.0
  %v373 = vadd.f32 %v371, %v372
  %v374 = vsel %vm297, %v347, 0.0
  %v375 = vadd.f32 %v373, %v374
  %v376 = vsel %vm297, %v348, 0.0
  %v377 = vadd.f32 %v375, %v376
  %v378 = vsel %vm297, %v349, 0.0
  %v379 = vadd.f32 %v377, %v378
  %v380 = vsel %vm297, %v350, 0.0
  %v381 = vadd.f32 %v379, %v380
  %v382 = vrot.slane %v381, 4
  %v383 = vadd.f32 %v381, %v382
  %v384 = vrot.slane %v383, 2
  %v385 = vadd.f32 %v383, %v384
  %v386 = vrot.slane %v385, 1
  %v387 = vadd.f32 %v385, %v386
  %vm388 = vcmask 1040384
  %v389 = vsel %vm388, %v334, %v387
  %vm390 = vcmask 123904
  %391 = vst.msk [vmem:[%s4] sm:$0x3] %vm390, %v389
  // Predicated region
  $region14: #{dc_discriminator_forward.11} parent=0 // pred_check
    _
  $region15: #{dc_discriminator_forward.11} parent=0 // pred_check_branch
    %393 = sbr.rel (0) target = $region17
  $region16: #{dc_discriminator_forward.11} parent=0 // pred_region
    _
  $region17: #{dc_discriminator_forward.11} parent=0 // pred_fallthru
    _
  // Predicated region
  $region18: #{dc_discriminator_forward.11} parent=0 // pred_check
    _
  $region19: #{dc_discriminator_forward.11} parent=0 // pred_check_branch
    %395 = sbr.rel (0) target = $region21
  $region20: #{dc_discriminator_forward.11} parent=0 // pred_region
    _
  $region21: #{dc_discriminator_forward.11} parent=0 // pred_fallthru
    _
  // Predicated region
  $region22: #{dc_discriminator_forward.11} parent=0 // pred_check
    _
  $region23: #{dc_discriminator_forward.11} parent=0 // pred_check_branch
    %397 = sbr.rel (0) target = $region25
  $region24: #{dc_discriminator_forward.11} parent=0 // pred_region
    _
  $region25: #{dc_discriminator_forward.11} parent=0 // pred_fallthru
    _
  // Predicated region
  $region26: #{dc_discriminator_forward.11} parent=0 // pred_check
    _
  $region27: #{dc_discriminator_forward.11} parent=0 // pred_check_branch
    %399 = sbr.rel (0) target = $region29
  $region28: #{dc_discriminator_forward.11} parent=0 // pred_region
    _
  $region29: #{dc_discriminator_forward.11} parent=0 // pred_fallthru
    _

// kernel: dc_discriminator_forward.12
$region0: #{dc_discriminator_forward.12}
  #allocation0 [shape = 'u32[]', space=smem, size = 0x4, offset = 0x4, fixed_abs, tag = 'smem constant byte address 0x4 - core index']
  #allocation1 [shape = 'u32[72,128]{1,0:T(1,128)}', space=vmem, size = 0x9000, scoped, tag = 'internal scratch']
  %s0 = inlined_call_operand.vmem [shape: bf16[128,16], index: 0, kind: input, shape index: {}]
  %s1 = inlined_call_operand.vmem [shape: f32[1,16], index: 1, kind: input, shape index: {}]
  %s2 = inlined_call_operand.vmem [shape: f32[1,16], index: 2, kind: input, shape index: {}]
  %s3 = inlined_call_operand.vmem [shape: bf16[128,16], index: 3, kind: output, shape index: {}]
  %s4 = sld [smem:[#allocation0]]
  $region22: #{dc_discriminator_forward.12} parent=0
    _
  %s6 = ssub.s32 1, %s4
  %s7 = scalar_select 0, %s6, %s4
  // Predicated region
  $region2: #{dc_discriminator_forward.12} parent=0 // pred_check
    _
  $region3: #{dc_discriminator_forward.12} parent=0 // pred_check_branch
    %9 = sbr.rel (0) target = $region5
  $region4: #{dc_discriminator_forward.12} parent=0 // pred_region
    _
  $region5: #{dc_discriminator_forward.12} parent=0 // pred_fallthru
    _
  // Predicated region
  $region6: #{dc_discriminator_forward.12} parent=0 // pred_check
    _
  $region7: #{dc_discriminator_forward.12} parent=0 // pred_check_branch
    %11 = sbr.rel (0) target = $region9
  $region8: #{dc_discriminator_forward.12} parent=0 // pred_region
    _
  $region9: #{dc_discriminator_forward.12} parent=0 // pred_fallthru
    _
  // Predicated region
  $region10: #{dc_discriminator_forward.12} parent=0 // pred_check
    _
  $region11: #{dc_discriminator_forward.12} parent=0 // pred_check_branch
    %13 = sbr.rel (0) target = $region13
  $region12: #{dc_discriminator_forward.12} parent=0 // pred_region
    _
  $region13: #{dc_discriminator_forward.12} parent=0 // pred_fallthru
    _
  %v14 = vld [vmem:[%s0] sm:$0xf]
  %v15 = vld [vmem:[%s0 + $0x4] sm:$0xf]
  %v16 = vld [vmem:[%s0 + $0x8] sm:$0xf]
  %v17 = vld [vmem:[%s0 + $0xc] sm:$0xf]
  %v18 = vld [vmem:[%s0 + $0x10] sm:$0xf]
  %v19 = vld [vmem:[%s0 + $0x14] sm:$0xf]
  %v20 = vld [vmem:[%s0 + $0x18] sm:$0xf]
  %v21 = vld [vmem:[%s0 + $0x1c] sm:$0xf]
  %v22 = vld [vmem:[%s0 + $0x20] sm:$0xf]
  %v23 = vld [vmem:[%s0 + $0x24] sm:$0xf]
  %v24 = vld [vmem:[%s0 + $0x28] sm:$0xf]
  %v25 = vld [vmem:[%s0 + $0x2c] sm:$0xf]
  %v26 = vld [vmem:[%s0 + $0x30] sm:$0xf]
  %v27 = vld [vmem:[%s0 + $0x34] sm:$0xf]
  %v28 = vld [vmem:[%s0 + $0x38] sm:$0xf]
  %v29 = vld [vmem:[%s0 + $0x3c] sm:$0xf]
  %v30 = vunpack.c.l.bf16 %v14
  %v31 = vunpack.c.l.bf16 %v15
  %v32 = vunpack.c.l.bf16 %v16
  %v33 = vunpack.c.l.bf16 %v17
  %v34 = vunpack.c.l.bf16 %v18
  %v35 = vunpack.c.l.bf16 %v19
  %v36 = vunpack.c.l.bf16 %v20
  %v37 = vunpack.c.l.bf16 %v21
  %v38 = vunpack.c.l.bf16 %v22
  %v39 = vunpack.c.l.bf16 %v23
  %v40 = vunpack.c.l.bf16 %v24
  %v41 = vunpack.c.l.bf16 %v25
  %v42 = vunpack.c.l.bf16 %v26
  %v43 = vunpack.c.l.bf16 %v27
  %v44 = vunpack.c.l.bf16 %v28
  %v45 = vunpack.c.l.bf16 %v29
  %v46 = vld [vmem:[%s1] sm:$0x1]
  %v48 = vperm.slane %v46, 0
  %v50 = vmul.f32 %v30, %v48
  %v51 = vmul.f32 %v31, %v48
  %v52 = vmul.f32 %v32, %v48
  %v53 = vmul.f32 %v33, %v48
  %v54 = vmul.f32 %v34, %v48
  %v55 = vmul.f32 %v35, %v48
  %v56 = vmul.f32 %v36, %v48
  %v57 = vmul.f32 %v37, %v48
  %v58 = vmul.f32 %v38, %v48
  %v59 = vmul.f32 %v39, %v48
  %v60 = vmul.f32 %v40, %v48
  %v61 = vmul.f32 %v41, %v48
  %v62 = vmul.f32 %v42, %v48
  %v63 = vmul.f32 %v43, %v48
  %v64 = vmul.f32 %v44, %v48
  %v65 = vmul.f32 %v45, %v48
  %v66 = vld [vmem:[%s2] sm:$0x1]
  %v68 = vperm.slane %v66, 0
  %v70 = vadd.f32 %v50, %v68
  %v71 = vadd.f32 %v51, %v68
  %v72 = vadd.f32 %v52, %v68
  %v73 = vadd.f32 %v53, %v68
  %v74 = vadd.f32 %v54, %v68
  %v75 = vadd.f32 %v55, %v68
  %v76 = vadd.f32 %v56, %v68
  %v77 = vadd.f32 %v57, %v68
  %v78 = vadd.f32 %v58, %v68
  %v79 = vadd.f32 %v59, %v68
  %v80 = vadd.f32 %v60, %v68
  %v81 = vadd.f32 %v61, %v68
  %v82 = vadd.f32 %v62, %v68
  %v83 = vadd.f32 %v63, %v68
  %v84 = vadd.f32 %v64, %v68
  %v85 = vadd.f32 %v65, %v68
  %vm86 = vcmp.ge.f32.partialorder %v70, 0.0
  %vm87 = vcmp.ge.f32.partialorder %v71, 0.0
  %vm88 = vcmp.ge.f32.partialorder %v72, 0.0
  %vm89 = vcmp.ge.f32.partialorder %v73, 0.0
  %vm90 = vcmp.ge.f32.partialorder %v74, 0.0
  %vm91 = vcmp.ge.f32.partialorder %v75, 0.0
  %vm92 = vcmp.ge.f32.partialorder %v76, 0.0
  %vm93 = vcmp.ge.f32.partialorder %v77, 0.0
  %vm94 = vcmp.ge.f32.partialorder %v78, 0.0
  %vm95 = vcmp.ge.f32.partialorder %v79, 0.0
  %vm96 = vcmp.ge.f32.partialorder %v80, 0.0
  %vm97 = vcmp.ge.f32.partialorder %v81, 0.0
  %vm98 = vcmp.ge.f32.partialorder %v82, 0.0
  %vm99 = vcmp.ge.f32.partialorder %v83, 0.0
  %vm100 = vcmp.ge.f32.partialorder %v84, 0.0
  %vm101 = vcmp.ge.f32.partialorder %v85, 0.0
  %v102 = vmul.f32 %v70, 0.2
  %v103 = vmul.f32 %v71, 0.2
  %v104 = vmul.f32 %v72, 0.2
  %v105 = vmul.f32 %v73, 0.2
  %v106 = vmul.f32 %v74, 0.2
  %v107 = vmul.f32 %v75, 0.2
  %v108 = vmul.f32 %v76, 0.2
  %v109 = vmul.f32 %v77, 0.2
  %v110 = vmul.f32 %v78, 0.2
  %v111 = vmul.f32 %v79, 0.2
  %v112 = vmul.f32 %v80, 0.2
  %v113 = vmul.f32 %v81, 0.2
  %v114 = vmul.f32 %v82, 0.2
  %v115 = vmul.f32 %v83, 0.2
  %v116 = vmul.f32 %v84, 0.2
  %v117 = vmul.f32 %v85, 0.2
  %v118 = vsel %vm86, %v70, %v102
  %v119 = vsel %vm87, %v71, %v103
  %v120 = vsel %vm88, %v72, %v104
  %v121 = vsel %vm89, %v73, %v105
  %v122 = vsel %vm90, %v74, %v106
  %v123 = vsel %vm91, %v75, %v107
  %v124 = vsel %vm92, %v76, %v108
  %v125 = vsel %vm93, %v77, %v109
  %v126 = vsel %vm94, %v78, %v110
  %v127 = vsel %vm95, %v79, %v111
  %v128 = vsel %vm96, %v80, %v112
  %v129 = vsel %vm97, %v81, %v113
  %v130 = vsel %vm98, %v82, %v114
  %v131 = vsel %vm99, %v83, %v115
  %v132 = vsel %vm100, %v84, %v116
  %v133 = vsel %vm101, %v85, %v117
  %v134 = vpack.c.bf16 %v118, %v118
  %v135 = vpack.c.bf16 %v119, %v119
  %v136 = vpack.c.bf16 %v120, %v120
  %v137 = vpack.c.bf16 %v121, %v121
  %v138 = vpack.c.bf16 %v122, %v122
  %v139 = vpack.c.bf16 %v123, %v123
  %v140 = vpack.c.bf16 %v124, %v124
  %v141 = vpack.c.bf16 %v125, %v125
  %v142 = vpack.c.bf16 %v126, %v126
  %v143 = vpack.c.bf16 %v127, %v127
  %v144 = vpack.c.bf16 %v128, %v128
  %v145 = vpack.c.bf16 %v129, %v129
  %v146 = vpack.c.bf16 %v130, %v130
  %v147 = vpack.c.bf16 %v131, %v131
  %v148 = vpack.c.bf16 %v132, %v132
  %v149 = vpack.c.bf16 %v133, %v133
  %vm150 = vcmask 125952
  %151 = vst.msk [vmem:[%s3] sm:$0xf] %vm150, %v134
  %152 = vst.msk [vmem:[%s3 + $0x4] sm:$0xf] %vm150, %v135
  %153 = vst.msk [vmem:[%s3 + $0x8] sm:$0xf] %vm150, %v136
  %154 = vst.msk [vmem:[%s3 + $0xc] sm:$0xf] %vm150, %v137
  %155 = vst.msk [vmem:[%s3 + $0x10] sm:$0xf] %vm150, %v138
  %156 = vst.msk [vmem:[%s3 + $0x14] sm:$0xf] %vm150, %v139
  %157 = vst.msk [vmem:[%s3 + $0x18] sm:$0xf] %vm150, %v140
  %158 = vst.msk [vmem:[%s3 + $0x1c] sm:$0xf] %vm150, %v141
  %159 = vst.msk [vmem:[%s3 + $0x20] sm:$0xf] %vm150, %v142
  %160 = vst.msk [vmem:[%s3 + $0x24] sm:$0xf] %vm150, %v143
  %161 = vst.msk [vmem:[%s3 + $0x28] sm:$0xf] %vm150, %v144
  %162 = vst.msk [vmem:[%s3 + $0x2c] sm:$0xf] %vm150, %v145
  %163 = vst.msk [vmem:[%s3 + $0x30] sm:$0xf] %vm150, %v146
  %164 = vst.msk [vmem:[%s3 + $0x34] sm:$0xf] %vm150, %v147
  %165 = vst.msk [vmem:[%s3 + $0x38] sm:$0xf] %vm150, %v148
  %166 = vst.msk [vmem:[%s3 + $0x3c] sm:$0xf] %vm150, %v149
  // Predicated region
  $region14: #{dc_discriminator_forward.12} parent=0 // pred_check
    _
  $region15: #{dc_discriminator_forward.12} parent=0 // pred_check_branch
    %168 = sbr.rel (0) target = $region17
  $region16: #{dc_discriminator_forward.12} parent=0 // pred_region
    _
  $region17: #{dc_discriminator_forward.12} parent=0 // pred_fallthru
    _
  // Predicated region
  $region18: #{dc_discriminator_forward.12} parent=0 // pred_check
    _
  $region19: #{dc_discriminator_forward.12} parent=0 // pred_check_branch
    %170 = sbr.rel (0) target = $region21
  $region20: #{dc_discriminator_forward.12} parent=0 // pred_region
    _
  $region21: #{dc_discriminator_forward.12} parent=0 // pred_fallthru
    _

// kernel: dc_discriminator_forward.14
$region0: #{dc_discriminator_forward.14}
  #allocation0 [shape = 'u32[]', space=smem, size = 0x4, offset = 0x4, fixed_abs, tag = 'smem constant byte address 0x4 - core index']
  #allocation1 [shape = 'u32[72,128]{1,0:T(1,128)}', space=vmem, size = 0x9000, scoped, tag = 'internal scratch']
  %s0 = inlined_call_operand.vmem [shape: bf16[32,32], index: 0, kind: input, shape index: {}]
  %s1 = inlined_call_operand.vmem [shape: f32[1,32], index: 1, kind: input, shape index: {}]
  %s2 = inlined_call_operand.vmem [shape: f32[1,32], index: 2, kind: input, shape index: {}]
  %s3 = inlined_call_operand.vmem [shape: bf16[32,32], index: 3, kind: output, shape index: {}]
  %s4 = sld [smem:[#allocation0]]
  $region22: #{dc_discriminator_forward.14} parent=0
    _
  %s6 = ssub.s32 1, %s4
  %s7 = scalar_select 0, %s6, %s4
  // Predicated region
  $region2: #{dc_discriminator_forward.14} parent=0 // pred_check
    _
  $region3: #{dc_discriminator_forward.14} parent=0 // pred_check_branch
    %9 = sbr.rel (0) target = $region5
  $region4: #{dc_discriminator_forward.14} parent=0 // pred_region
    _
  $region5: #{dc_discriminator_forward.14} parent=0 // pred_fallthru
    _
  // Predicated region
  $region6: #{dc_discriminator_forward.14} parent=0 // pred_check
    _
  $region7: #{dc_discriminator_forward.14} parent=0 // pred_check_branch
    %11 = sbr.rel (0) target = $region9
  $region8: #{dc_discriminator_forward.14} parent=0 // pred_region
    _
  $region9: #{dc_discriminator_forward.14} parent=0 // pred_fallthru
    _
  // Predicated region
  $region10: #{dc_discriminator_forward.14} parent=0 // pred_check
    _
  $region11: #{dc_discriminator_forward.14} parent=0 // pred_check_branch
    %13 = sbr.rel (0) target = $region13
  $region12: #{dc_discriminator_forward.14} parent=0 // pred_region
    _
  $region13: #{dc_discriminator_forward.14} parent=0 // pred_fallthru
    _
  %v14 = vld [vmem:[%s0] sm:$0xf]
  %v15 = vld [vmem:[%s0 + $0x4] sm:$0xf]
  %v16 = vld [vmem:[%s0 + $0x8] sm:$0xf]
  %v17 = vld [vmem:[%s0 + $0xc] sm:$0xf]
  %v18 = vunpack.c.l.bf16 %v14
  %v19 = vunpack.c.l.bf16 %v15
  %v20 = vunpack.c.l.bf16 %v16
  %v21 = vunpack.c.l.bf16 %v17
  %v22 = vld [vmem:[%s1] sm:$0x1]
  %v24 = vperm.slane %v22, 0
  %v26 = vmul.f32 %v18, %v24
  %v27 = vmul.f32 %v19, %v24
  %v28 = vmul.f32 %v20, %v24
  %v29 = vmul.f32 %v21, %v24
  %v30 = vld [vmem:[%s2] sm:$0x1]
  %v32 = vperm.slane %v30, 0
  %v34 = vadd.f32 %v26, %v32
  %v35 = vadd.f32 %v27, %v32
  %v36 = vadd.f32 %v28, %v32
  %v37 = vadd.f32 %v29, %v32
  %vm38 = vcmp.ge.f32.partialorder %v34, 0.0
  %vm39 = vcmp.ge.f32.partialorder %v35, 0.0
  %vm40 = vcmp.ge.f32.partialorder %v36, 0.0
  %vm41 = vcmp.ge.f32.partialorder %v37, 0.0
  %v42 = vmul.f32 %v34, 0.2
  %v43 = vmul.f32 %v35, 0.2
  %v44 = vmul.f32 %v36, 0.2
  %v45 = vmul.f32 %v37, 0.2
  %v46 = vsel %vm38, %v34, %v42
  %v47 = vsel %vm39, %v35, %v43
  %v48 = vsel %vm40, %v36, %v44
  %v49 = vsel %vm41, %v37, %v45
  %v50 = vpack.c.bf16 %v46, %v46
  %v51 = vpack.c.bf16 %v47, %v47
  %v52 = vpack.c.bf16 %v48, %v48
  %v53 = vpack.c.bf16 %v49, %v49
  %vm54 = vcmask 257024
  %55 = vst.msk [vmem:[%s3] sm:$0xf] %vm54, %v50
  %56 = vst.msk [vmem:[%s3 + $0x4] sm:$0xf] %vm54, %v51
  %57 = vst.msk [vmem:[%s3 + $0x8] sm:$0xf] %vm54, %v52
  %58 = vst.msk [vmem:[%s3 + $0xc] sm:$0xf] %vm54, %v53
  // Predicated region
  $region14: #{dc_discriminator_forward.14} parent=0 // pred_check
    _
  $region15: #{dc_discriminator_forward.14} parent=0 // pred_check_branch
    %60 = sbr.rel (0) target = $region17
  $region16: #{dc_discriminator_forward.14} parent=0 // pred_region
    _
  $region17: #{dc_discriminator_forward.14} parent=0 // pred_fallthru
    _
  // Predicated region
  $region18: #{dc_discriminator_forward.14} parent=0 // pred_check
    _
  $region19: #{dc_discriminator_forward.14} parent=0 // pred_check_branch
    %62 = sbr.rel (0) target = $region21
  $region20: #{dc_discriminator_forward.14} parent=0 // pred_region
    _
  $region21: #{dc_discriminator_forward.14} parent=0 // pred_fallthru
    _

// kernel: dc_discriminator_forward.15
$region0: #{dc_discriminator_forward.15}
  #allocation0 [shape = 'u32[]', space=smem, size = 0x4, offset = 0x4, fixed_abs, tag = 'smem constant byte address 0x4 - core index']
  #allocation1 [shape = 'u32[72,128]{1,0:T(1,128)}', space=vmem, size = 0x9000, scoped, tag = 'internal scratch']
  #allocation2 [shape = 'f32[1,1]{1,0:T(1,128)S(1)}', space=vmem, size = 0x200, scoped, tag = 'scoped memory for dc_discriminator_forward.15']
  %s0 = inlined_call_operand.vmem [shape: bf16[2,512], index: 0, kind: input, shape index: {}]
  %s1 = inlined_call_operand.vmem [shape: bf16[512,1], index: 1, kind: input, shape index: {}]
  %s2 = inlined_call_operand.<no memory space> [shape: f32[1,1], index: 2, kind: input, shape index: {}]
  %s3 = inlined_call_operand.vmem [shape: f32[2,1], index: 3, kind: output, shape index: {}]
  %s4 = sld [smem:[#allocation0]]
  $region22: #{dc_discriminator_forward.15} parent=0
    _
  %s6 = ssub.s32 1, %s4
  %s7 = scalar_select 0, %s6, %s4
  %v8 = vstv %s2
  %9 = vst [vmem:[#allocation2] sm:$0x1] %v8
  // Predicated region
  $region2: #{dc_discriminator_forward.15} parent=0 // pred_check
    _
  $region3: #{dc_discriminator_forward.15} parent=0 // pred_check_branch
    %11 = sbr.rel (0) target = $region5
  $region4: #{dc_discriminator_forward.15} parent=0 // pred_region
    _
  $region5: #{dc_discriminator_forward.15} parent=0 // pred_fallthru
    _
  // Predicated region
  $region6: #{dc_discriminator_forward.15} parent=0 // pred_check
    _
  $region7: #{dc_discriminator_forward.15} parent=0 // pred_check_branch
    %13 = sbr.rel (0) target = $region9
  $region8: #{dc_discriminator_forward.15} parent=0 // pred_region
    _
  $region9: #{dc_discriminator_forward.15} parent=0 // pred_fallthru
    _
  // Predicated region
  $region10: #{dc_discriminator_forward.15} parent=0 // pred_check
    _
  $region11: #{dc_discriminator_forward.15} parent=0 // pred_check_branch
    %15 = sbr.rel (0) target = $region13
  $region12: #{dc_discriminator_forward.15} parent=0 // pred_region
    _
  $region13: #{dc_discriminator_forward.15} parent=0 // pred_fallthru
    _
  %v16 = vld [vmem:[%s0] sm:$0xf]
  %v17 = vld [vmem:[%s1] sm:$0xf]
  %v18 = vld [vmem:[%s1 + $0x4] sm:$0xf]
  %v19 = vld [vmem:[%s1 + $0x8] sm:$0xf]
  %v20 = vld [vmem:[%s1 + $0xc] sm:$0xf]
  %v21 = vld [vmem:[%s1 + $0x10] sm:$0xf]
  %v22 = vld [vmem:[%s1 + $0x14] sm:$0xf]
  %v23 = vld [vmem:[%s1 + $0x18] sm:$0xf]
  %v24 = vld [vmem:[%s1 + $0x1c] sm:$0xf]
  %v25 = vld [vmem:[%s1 + $0x20] sm:$0xf]
  %v26 = vld [vmem:[%s1 + $0x24] sm:$0xf]
  %v27 = vld [vmem:[%s1 + $0x28] sm:$0xf]
  %v28 = vld [vmem:[%s1 + $0x2c] sm:$0xf]
  %v29 = vld [vmem:[%s1 + $0x30] sm:$0xf]
  %v30 = vld [vmem:[%s1 + $0x34] sm:$0xf]
  %v31 = vld [vmem:[%s1 + $0x38] sm:$0xf]
  %v32 = vld [vmem:[%s1 + $0x3c] sm:$0xf]
  %v33 = vld [vmem:[%s1 + $0x40] sm:$0xf]
  %v34 = vld [vmem:[%s1 + $0x44] sm:$0xf]
  %v35 = vld [vmem:[%s1 + $0x48] sm:$0xf]
  %v36 = vld [vmem:[%s1 + $0x4c] sm:$0xf]
  %v37 = vld [vmem:[%s1 + $0x50] sm:$0xf]
  %v38 = vld [vmem:[%s1 + $0x54] sm:$0xf]
  %v39 = vld [vmem:[%s1 + $0x58] sm:$0xf]
  %v40 = vld [vmem:[%s1 + $0x5c] sm:$0xf]
  %v41 = vld [vmem:[%s1 + $0x60] sm:$0xf]
  %v42 = vld [vmem:[%s1 + $0x64] sm:$0xf]
  %v43 = vld [vmem:[%s1 + $0x68] sm:$0xf]
  %v44 = vld [vmem:[%s1 + $0x6c] sm:$0xf]
  %v45 = vld [vmem:[%s1 + $0x70] sm:$0xf]
  %v46 = vld [vmem:[%s1 + $0x74] sm:$0xf]
  %v47 = vld [vmem:[%s1 + $0x78] sm:$0xf]
  %v48 = vld [vmem:[%s1 + $0x7c] sm:$0xf]
  %v49 = vld [vmem:[%s1 + $0x80] sm:$0xf]
  %v50 = vld [vmem:[%s1 + $0x84] sm:$0xf]
  %v51 = vld [vmem:[%s1 + $0x88] sm:$0xf]
  %v52 = vld [vmem:[%s1 + $0x8c] sm:$0xf]
  %v53 = vld [vmem:[%s1 + $0x90] sm:$0xf]
  %v54 = vld [vmem:[%s1 + $0x94] sm:$0xf]
  %v55 = vld [vmem:[%s1 + $0x98] sm:$0xf]
  %v56 = vld [vmem:[%s1 + $0x9c] sm:$0xf]
  %v57 = vld [vmem:[%s1 + $0xa0] sm:$0xf]
  %v58 = vld [vmem:[%s1 + $0xa4] sm:$0xf]
  %v59 = vld [vmem:[%s1 + $0xa8] sm:$0xf]
  %v60 = vld [vmem:[%s1 + $0xac] sm:$0xf]
  %v61 = vld [vmem:[%s1 + $0xb0] sm:$0xf]
  %v62 = vld [vmem:[%s1 + $0xb4] sm:$0xf]
  %v63 = vld [vmem:[%s1 + $0xb8] sm:$0xf]
  %v64 = vld [vmem:[%s1 + $0xbc] sm:$0xf]
  %v65 = vld [vmem:[%s1 + $0xc0] sm:$0xf]
  %v66 = vld [vmem:[%s1 + $0xc4] sm:$0xf]
  %v67 = vld [vmem:[%s1 + $0xc8] sm:$0xf]
  %v68 = vld [vmem:[%s1 + $0xcc] sm:$0xf]
  %v69 = vld [vmem:[%s1 + $0xd0] sm:$0xf]
  %v70 = vld [vmem:[%s1 + $0xd4] sm:$0xf]
  %v71 = vld [vmem:[%s1 + $0xd8] sm:$0xf]
  %v72 = vld [vmem:[%s1 + $0xdc] sm:$0xf]
  %v73 = vld [vmem:[%s1 + $0xe0] sm:$0xf]
  %v74 = vld [vmem:[%s1 + $0xe4] sm:$0xf]
  %v75 = vld [vmem:[%s1 + $0xe8] sm:$0xf]
  %v76 = vld [vmem:[%s1 + $0xec] sm:$0xf]
  %v77 = vld [vmem:[%s1 + $0xf0] sm:$0xf]
  %v78 = vld [vmem:[%s1 + $0xf4] sm:$0xf]
  %v79 = vld [vmem:[%s1 + $0xf8] sm:$0xf]
  %v80 = vld [vmem:[%s1 + $0xfc] sm:$0xf]
  %v81 = vld [vmem:[#allocation2] sm:$0x1]
  %v83 = vperm.slane %v81, 0
  %86 = vst [vmem:[#allocation1] ss:$9 sm:$0xff] %v16
  %v87 = vld [vmem:[#allocation1] sm:$0xff]
  %v88 = vld [vmem:[#allocation1 + $0x9] sm:$0xff]
  %v89 = vld [vmem:[#allocation1 + $0x12] sm:$0xff]
  %v90 = vld [vmem:[#allocation1 + $0x1b] sm:$0xff]
  %v159 = vunpack.c.l.b16 %v17
  %v160 = vunpack.c.l.b16 %v18
  %v161 = vunpack.c.l.b16 %v19
  %v162 = vunpack.c.l.b16 %v20
  %v163 = vunpack.c.l.b16 %v21
  %v164 = vunpack.c.l.b16 %v22
  %v165 = vunpack.c.l.b16 %v23
  %v166 = vunpack.c.l.b16 %v24
  %v167 = vunpack.c.l.b16 %v25
  %v168 = vunpack.c.l.b16 %v26
  %v169 = vunpack.c.l.b16 %v27
  %v170 = vunpack.c.l.b16 %v28
  %v171 = vunpack.c.l.b16 %v29
  %v172 = vunpack.c.l.b16 %v30
  %v173 = vunpack.c.l.b16 %v31
  %v174 = vunpack.c.l.b16 %v32
  %v175 = vunpack.c.l.b16 %v33
  %v176 = vunpack.c.l.b16 %v34
  %v177 = vunpack.c.l.b16 %v35
  %v178 = vunpack.c.l.b16 %v36
  %v179 = vunpack.c.l.b16 %v37
  %v180 = vunpack.c.l.b16 %v38
  %v181 = vunpack.c.l.b16 %v39
  %v182 = vunpack.c.l.b16 %v40
  %v183 = vunpack.c.l.b16 %v41
  %v184 = vunpack.c.l.b16 %v42
  %v185 = vunpack.c.l.b16 %v43
  %v186 = vunpack.c.l.b16 %v44
  %v187 = vunpack.c.l.b16 %v45
  %v188 = vunpack.c.l.b16 %v46
  %v189 = vunpack.c.l.b16 %v47
  %v190 = vunpack.c.l.b16 %v48
  %v191 = vunpack.c.l.b16 %v49
  %v192 = vunpack.c.l.b16 %v50
  %v193 = vunpack.c.l.b16 %v51
  %v194 = vunpack.c.l.b16 %v52
  %v195 = vunpack.c.l.b16 %v53
  %v196 = vunpack.c.l.b16 %v54
  %v197 = vunpack.c.l.b16 %v55
  %v198 = vunpack.c.l.b16 %v56
  %v199 = vunpack.c.l.b16 %v57
  %v200 = vunpack.c.l.b16 %v58
  %v201 = vunpack.c.l.b16 %v59
  %v202 = vunpack.c.l.b16 %v60
  %v203 = vunpack.c.l.b16 %v61
  %v204 = vunpack.c.l.b16 %v62
  %v205 = vunpack.c.l.b16 %v63
  %v206 = vunpack.c.l.b16 %v64
  %v207 = vunpack.c.l.b16 %v65
  %v208 = vunpack.c.l.b16 %v66
  %v209 = vunpack.c.l.b16 %v67
  %v210 = vunpack.c.l.b16 %v68
  %v211 = vunpack.c.l.b16 %v69
  %v212 = vunpack.c.l.b16 %v70
  %v213 = vunpack.c.l.b16 %v71
  %v214 = vunpack.c.l.b16 %v72
  %v215 = vunpack.c.l.b16 %v73
  %v216 = vunpack.c.l.b16 %v74
  %v217 = vunpack.c.l.b16 %v75
  %v218 = vunpack.c.l.b16 %v76
  %v219 = vunpack.c.l.b16 %v77
  %v220 = vunpack.c.l.b16 %v78
  %v221 = vunpack.c.l.b16 %v79
  %v222 = vunpack.c.l.b16 %v80
  %v223 = vpack.c.b16 %v160, %v159
  %v224 = vpack.c.b16 %v162, %v161
  %v225 = vpack.c.b16 %v164, %v163
  %v226 = vpack.c.b16 %v166, %v165
  %v227 = vpack.c.b16 %v168, %v167
  %v228 = vpack.c.b16 %v170, %v169
  %v229 = vpack.c.b16 %v172, %v171
  %v230 = vpack.c.b16 %v174, %v173
  %v231 = vpack.c.b16 %v176, %v175
  %v232 = vpack.c.b16 %v178, %v177
  %v233 = vpack.c.b16 %v180, %v179
  %v234 = vpack.c.b16 %v182, %v181
  %v235 = vpack.c.b16 %v184, %v183
  %v236 = vpack.c.b16 %v186, %v185
  %v237 = vpack.c.b16 %v188, %v187
  %v238 = vpack.c.b16 %v190, %v189
  %v239 = vpack.c.b16 %v192, %v191
  %v240 = vpack.c.b16 %v194, %v193
  %v241 = vpack.c.b16 %v196, %v195
  %v242 = vpack.c.b16 %v198, %v197
  %v243 = vpack.c.b16 %v200, %v199
  %v244 = vpack.c.b16 %v202, %v201
  %v245 = vpack.c.b16 %v204, %v203
  %v246 = vpack.c.b16 %v206, %v205
  %v247 = vpack.c.b16 %v208, %v207
  %v248 = vpack.c.b16 %v210, %v209
  %v249 = vpack.c.b16 %v212, %v211
  %v250 = vpack.c.b16 %v214, %v213
  %v251 = vpack.c.b16 %v216, %v215
  %v252 = vpack.c.b16 %v218, %v217
  %v253 = vpack.c.b16 %v220, %v219
  %v254 = vpack.c.b16 %v222, %v221
  %287 = vmatpush.bf16.msra.mxu0 %v230
  %288 = vmatpush.bf16.msra.mxu0 %v229
  %289 = vmatpush.bf16.msra.mxu0 %v228
  %290 = vmatpush.bf16.msra.mxu0 %v227
  %291 = vmatpush.bf16.msra.mxu0 %v226
  %292 = vmatpush.bf16.msra.mxu0 %v225
  %293 = vmatpush.bf16.msra.mxu0 %v224
  %294 = vmatpush.bf16.msra.mxu0 %v223
  %295 = vmatmul.bf16.gmra.mxu0 %v87
  %v296 = vpop.f32.mrf.mxu0
  %v297 = vadd.f32 %v83, %v296
  %v298 = vpop.f32.mrf.mxu0
  %299 = vdwg.mxu0
  %300 = vmatpush.bf16.msra.mxu0 %v238
  %301 = vmatpush.bf16.msra.mxu0 %v237
  %302 = vmatpush.bf16.msra.mxu0 %v236
  %303 = vmatpush.bf16.msra.mxu0 %v235
  %304 = vmatpush.bf16.msra.mxu0 %v234
  %305 = vmatpush.bf16.msra.mxu0 %v233
  %306 = vmatpush.bf16.msra.mxu0 %v232
  %307 = vmatpush.bf16.msra.mxu0 %v231
  %308 = vmatmul.bf16.gmra.mxu0 %v88
  %v309 = vpop.f32.mrf.mxu0
  %v310 = vadd.f32 %v297, %v309
  %v311 = vpop.f32.mrf.mxu0
  %312 = vdwg.mxu0
  %313 = vmatpush.bf16.msra.mxu0 %v246
  %314 = vmatpush.bf16.msra.mxu0 %v245
  %315 = vmatpush.bf16.msra.mxu0 %v244
  %316 = vmatpush.bf16.msra.mxu0 %v243
  %317 = vmatpush.bf16.msra.mxu0 %v242
  %318 = vmatpush.bf16.msra.mxu0 %v241
  %319 = vmatpush.bf16.msra.mxu0 %v240
  %320 = vmatpush.bf16.msra.mxu0 %v239
  %321 = vmatmul.bf16.gmra.mxu0 %v89
  %v322 = vpop.f32.mrf.mxu0
  %v323 = vadd.f32 %v310, %v322
  %v324 = vpop.f32.mrf.mxu0
  %325 = vdwg.mxu0
  %326 = vmatpush.bf16.msra.mxu0 %v254
  %327 = vmatpush.bf16.msra.mxu0 %v253
  %328 = vmatpush.bf16.msra.mxu0 %v252
  %329 = vmatpush.bf16.msra.mxu0 %v251
  %330 = vmatpush.bf16.msra.mxu0 %v250
  %331 = vmatpush.bf16.msra.mxu0 %v249
  %332 = vmatpush.bf16.msra.mxu0 %v248
  %333 = vmatpush.bf16.msra.mxu0 %v247
  %334 = vmatmul.bf16.gmra.mxu0 %v90
  %v335 = vpop.f32.mrf.mxu0
  %v336 = vadd.f32 %v323, %v335
  %v337 = vpop.f32.mrf.mxu0
  %338 = vdwg.mxu0
  %v339 = vsub.f32 0.0, %v336
  %v340 = vmul.f32 %v339, 1.442695
  %v341 = vpow.pop %v340
  %v342 = vadd.f32 %v341, 1.0
  %v343 = vrcp.pop %v342
  %v344 = vmax.f32 %v343, 0.0
  %v345 = vmin.f32 %v344, 1.0
  %vm346 = vcmask 1024
  %347 = vst.msk [vmem:[%s3] sm:$0x3] %vm346, %v345
  // Predicated region
  $region14: #{dc_discriminator_forward.15} parent=0 // pred_check
    _
  $region15: #{dc_discriminator_forward.15} parent=0 // pred_check_branch
    %349 = sbr.rel (0) target = $region17
  $region16: #{dc_discriminator_forward.15} parent=0 // pred_region
    _
  $region17: #{dc_discriminator_forward.15} parent=0 // pred_fallthru
    _
  // Predicated region
  $region18: #{dc_discriminator_forward.15} parent=0 // pred_check
    _
  $region19: #{dc_discriminator_forward.15} parent=0 // pred_check_branch
    %351 = sbr.rel (0) target = $region21
  $region20: #{dc_discriminator_forward.15} parent=0 // pred_region
    _
  $region21: #{dc_discriminator_forward.15} parent=0 // pred_fallthru
    _

// kernel: dc_discriminator_forward.13
$region0: #{dc_discriminator_forward.13}
  #allocation0 [shape = 'u32[]', space=smem, size = 0x4, offset = 0x4, fixed_abs, tag = 'smem constant byte address 0x4 - core index']
  #allocation1 [shape = 'u32[72,128]{1,0:T(1,128)}', space=vmem, size = 0x9000, scoped, tag = 'internal scratch']
  %s0 = inlined_call_operand.vmem [shape: bf16[32,256], index: 0, kind: input, shape index: {}]
  %s1 = inlined_call_operand.vmem [shape: bf16[256,32], index: 1, kind: input, shape index: {}]
  %s2 = inlined_call_operand.vmem [shape: f32[1,32], index: 2, kind: input, shape index: {}]
  %s3 = inlined_call_operand.vmem [shape: bf16[32,32], index: 3, kind: output, shape index: {0}]
  %s4 = inlined_call_operand.vmem [shape: f32[1,2,32], index: 4, kind: output, shape index: {1}]
  %5 = xla_tuple %s3, %s4
  %s6 = sld [smem:[#allocation0]]
  $region30: #{dc_discriminator_forward.13} parent=0
    _
  %s8 = ssub.s32 1, %s6
  %s9 = scalar_select 0, %s8, %s6
  // Predicated region
  $region2: #{dc_discriminator_forward.13} parent=0 // pred_check
    _
  $region3: #{dc_discriminator_forward.13} parent=0 // pred_check_branch
    %11 = sbr.rel (0) target = $region5
  $region4: #{dc_discriminator_forward.13} parent=0 // pred_region
    _
  $region5: #{dc_discriminator_forward.13} parent=0 // pred_fallthru
    _
  // Predicated region
  $region6: #{dc_discriminator_forward.13} parent=0 // pred_check
    _
  $region7: #{dc_discriminator_forward.13} parent=0 // pred_check_branch
    %13 = sbr.rel (0) target = $region9
  $region8: #{dc_discriminator_forward.13} parent=0 // pred_region
    _
  $region9: #{dc_discriminator_forward.13} parent=0 // pred_fallthru
    _
  // Predicated region
  $region10: #{dc_discriminator_forward.13} parent=0 // pred_check
    _
  $region11: #{dc_discriminator_forward.13} parent=0 // pred_check_branch
    %15 = sbr.rel (0) target = $region13
  $region12: #{dc_discriminator_forward.13} parent=0 // pred_region
    _
  $region13: #{dc_discriminator_forward.13} parent=0 // pred_fallthru
    _
  %v16 = vld [vmem:[%s0] sm:$0xff]
  %v17 = vld [vmem:[%s0 + $0x8] sm:$0xff]
  %v18 = vld [vmem:[%s0 + $0x10] sm:$0xff]
  %v19 = vld [vmem:[%s0 + $0x18] sm:$0xff]
  %v20 = vld [vmem:[%s1] sm:$0xf]
  %v21 = vld [vmem:[%s1 + $0x4] sm:$0xf]
  %v22 = vld [vmem:[%s1 + $0x8] sm:$0xf]
  %v23 = vld [vmem:[%s1 + $0xc] sm:$0xf]
  %v24 = vld [vmem:[%s1 + $0x10] sm:$0xf]
  %v25 = vld [vmem:[%s1 + $0x14] sm:$0xf]
  %v26 = vld [vmem:[%s1 + $0x18] sm:$0xf]
  %v27 = vld [vmem:[%s1 + $0x1c] sm:$0xf]
  %v28 = vld [vmem:[%s1 + $0x20] sm:$0xf]
  %v29 = vld [vmem:[%s1 + $0x24] sm:$0xf]
  %v30 = vld [vmem:[%s1 + $0x28] sm:$0xf]
  %v31 = vld [vmem:[%s1 + $0x2c] sm:$0xf]
  %v32 = vld [vmem:[%s1 + $0x30] sm:$0xf]
  %v33 = vld [vmem:[%s1 + $0x34] sm:$0xf]
  %v34 = vld [vmem:[%s1 + $0x38] sm:$0xf]
  %v35 = vld [vmem:[%s1 + $0x3c] sm:$0xf]
  %v36 = vld [vmem:[%s1 + $0x40] sm:$0xf]
  %v37 = vld [vmem:[%s1 + $0x44] sm:$0xf]
  %v38 = vld [vmem:[%s1 + $0x48] sm:$0xf]
  %v39 = vld [vmem:[%s1 + $0x4c] sm:$0xf]
  %v40 = vld [vmem:[%s1 + $0x50] sm:$0xf]
  %v41 = vld [vmem:[%s1 + $0x54] sm:$0xf]
  %v42 = vld [vmem:[%s1 + $0x58] sm:$0xf]
  %v43 = vld [vmem:[%s1 + $0x5c] sm:$0xf]
  %v44 = vld [vmem:[%s1 + $0x60] sm:$0xf]
  %v45 = vld [vmem:[%s1 + $0x64] sm:$0xf]
  %v46 = vld [vmem:[%s1 + $0x68] sm:$0xf]
  %v47 = vld [vmem:[%s1 + $0x6c] sm:$0xf]
  %v48 = vld [vmem:[%s1 + $0x70] sm:$0xf]
  %v49 = vld [vmem:[%s1 + $0x74] sm:$0xf]
  %v50 = vld [vmem:[%s1 + $0x78] sm:$0xf]
  %v51 = vld [vmem:[%s1 + $0x7c] sm:$0xf]
  %v52 = vld [vmem:[%s2] sm:$0x1]
  %v54 = vperm.slane %v52, 0
  %v60 = vunpack.c.l.b16 %v16
  %v61 = vunpack.c.h.b16 %v16
  %v62 = vunpack.c.l.b16 %v17
  %v63 = vunpack.c.h.b16 %v17
  %v64 = vunpack.c.l.b16 %v18
  %v65 = vunpack.c.h.b16 %v18
  %v66 = vunpack.c.l.b16 %v19
  %v67 = vunpack.c.h.b16 %v19
  %v68 = vpack.c.b16 %v62, %v60
  %v69 = vpack.c.b16 %v63, %v61
  %v70 = vpack.c.b16 %v66, %v64
  %v71 = vpack.c.b16 %v67, %v65
  %v108 = vunpack.c.l.b16 %v20
  %v109 = vunpack.c.l.b16 %v21
  %v110 = vunpack.c.l.b16 %v22
  %v111 = vunpack.c.l.b16 %v23
  %v112 = vunpack.c.l.b16 %v24
  %v113 = vunpack.c.l.b16 %v25
  %v114 = vunpack.c.l.b16 %v26
  %v115 = vunpack.c.l.b16 %v27
  %v116 = vunpack.c.l.b16 %v28
  %v117 = vunpack.c.l.b16 %v29
  %v118 = vunpack.c.l.b16 %v30
  %v119 = vunpack.c.l.b16 %v31
  %v120 = vunpack.c.l.b16 %v32
  %v121 = vunpack.c.l.b16 %v33
  %v122 = vunpack.c.l.b16 %v34
  %v123 = vunpack.c.l.b16 %v35
  %v124 = vunpack.c.l.b16 %v36
  %v125 = vunpack.c.l.b16 %v37
  %v126 = vunpack.c.l.b16 %v38
  %v127 = vunpack.c.l.b16 %v39
  %v128 = vunpack.c.l.b16 %v40
  %v129 = vunpack.c.l.b16 %v41
  %v130 = vunpack.c.l.b16 %v42
  %v131 = vunpack.c.l.b16 %v43
  %v132 = vunpack.c.l.b16 %v44
  %v133 = vunpack.c.l.b16 %v45
  %v134 = vunpack.c.l.b16 %v46
  %v135 = vunpack.c.l.b16 %v47
  %v136 = vunpack.c.l.b16 %v48
  %v137 = vunpack.c.l.b16 %v49
  %v138 = vunpack.c.l.b16 %v50
  %v139 = vunpack.c.l.b16 %v51
  %v140 = vpack.c.b16 %v109, %v108
  %v141 = vpack.c.b16 %v111, %v110
  %v142 = vpack.c.b16 %v113, %v112
  %v143 = vpack.c.b16 %v115, %v114
  %v144 = vpack.c.b16 %v117, %v116
  %v145 = vpack.c.b16 %v119, %v118
  %v146 = vpack.c.b16 %v121, %v120
  %v147 = vpack.c.b16 %v123, %v122
  %v148 = vpack.c.b16 %v125, %v124
  %v149 = vpack.c.b16 %v127, %v126
  %v150 = vpack.c.b16 %v129, %v128
  %v151 = vpack.c.b16 %v131, %v130
  %v152 = vpack.c.b16 %v133, %v132
  %v153 = vpack.c.b16 %v135, %v134
  %v154 = vpack.c.b16 %v137, %v136
  %v155 = vpack.c.b16 %v139, %v138
  %172 = vmatpush.bf16.msra.mxu0 %v147
  %173 = vmatpush.bf16.msra.mxu0 %v146
  %174 = vmatpush.bf16.msra.mxu0 %v145
  %175 = vmatpush.bf16.msra.mxu0 %v144
  %176 = vmatpush.bf16.msra.mxu0 %v143
  %177 = vmatpush.bf16.msra.mxu0 %v142
  %178 = vmatpush.bf16.msra.mxu0 %v141
  %179 = vmatpush.bf16.msra.mxu0 %v140
  %180 = vmatmul.bf16.gmra.mxu0 %v68
  %v181 = vpop.f32.mrf.mxu0
  %v182 = vadd.f32 %v54, %v181
  %v183 = vpop.f32.mrf.mxu0
  %v184 = vadd.f32 %v54, %v183
  %185 = vmatmul.bf16.gmra.mxu0 %v70
  %v186 = vpop.f32.mrf.mxu0
  %v187 = vadd.f32 %v54, %v186
  %v188 = vpop.f32.mrf.mxu0
  %v189 = vadd.f32 %v54, %v188
  %190 = vdwg.mxu0
  %191 = vmatpush.bf16.msra.mxu0 %v155
  %192 = vmatpush.bf16.msra.mxu0 %v154
  %193 = vmatpush.bf16.msra.mxu0 %v153
  %194 = vmatpush.bf16.msra.mxu0 %v152
  %195 = vmatpush.bf16.msra.mxu0 %v151
  %196 = vmatpush.bf16.msra.mxu0 %v150
  %197 = vmatpush.bf16.msra.mxu0 %v149
  %198 = vmatpush.bf16.msra.mxu0 %v148
  %199 = vmatmul.bf16.gmra.mxu0 %v69
  %v200 = vpop.f32.mrf.mxu0
  %v201 = vadd.f32 %v182, %v200
  %v202 = vpop.f32.mrf.mxu0
  %v203 = vadd.f32 %v184, %v202
  %204 = vmatmul.bf16.gmra.mxu0 %v71
  %v205 = vpop.f32.mrf.mxu0
  %v206 = vadd.f32 %v187, %v205
  %v207 = vpop.f32.mrf.mxu0
  %v208 = vadd.f32 %v189, %v207
  %209 = vdwg.mxu0
  %v210 = vpack.c.bf16 %v201, %v201
  %v211 = vpack.c.bf16 %v203, %v203
  %v212 = vpack.c.bf16 %v206, %v206
  %v213 = vpack.c.bf16 %v208, %v208
  %vm214 = vcmask 257024
  %215 = vst.msk [vmem:[%s3] sm:$0xf] %vm214, %v210
  %216 = vst.msk [vmem:[%s3 + $0x4] sm:$0xf] %vm214, %v211
  %217 = vst.msk [vmem:[%s3 + $0x8] sm:$0xf] %vm214, %v212
  %218 = vst.msk [vmem:[%s3 + $0xc] sm:$0xf] %vm214, %v213
  %s219 = smul.u32 0, 32
  %v220 = vlaneseq
  %v221 = vshrl.u32 %v220, 7
  %v222 = vadd.s32 %v221, 8
  %v223 = vadd.s32 %v221, 16
  %v224 = vadd.s32 %v221, 24
  %v225 = vstv %s219
  %v226 = vadd.s32 %v225, %v221
  %v227 = vadd.s32 %v225, %v222
  %v228 = vadd.s32 %v225, %v223
  %v229 = vadd.s32 %v225, %v224
  %vm230 = vcmp.lt.s32.totalorder %v226, 32
  %vm231 = vcmp.lt.s32.totalorder %v227, 32
  %vm232 = vcmp.lt.s32.totalorder %v228, 32
  %vm233 = vcmp.lt.s32.totalorder %v229, 32
  %v234 = vsel %vm230, %v201, 0.0
  %v235 = vsel %vm231, %v203, 0.0
  %v236 = vsel %vm232, %v206, 0.0
  %v237 = vsel %vm233, %v208, 0.0
  %vm238 = vcmask 261120
  %v239 = vsel %vm238, %v234, 0.0
  %v240 = vsel %vm238, %v235, 0.0
  %v241 = vadd.f32 %v239, %v240
  %v242 = vsel %vm238, %v236, 0.0
  %v243 = vadd.f32 %v241, %v242
  %v244 = vsel %vm238, %v237, 0.0
  %v245 = vadd.f32 %v243, %v244
  %v246 = vrot.slane %v245, 4
  %v247 = vadd.f32 %v245, %v246
  %v248 = vrot.slane %v247, 2
  %v249 = vadd.f32 %v247, %v248
  %v250 = vrot.slane %v249, 1
  %v251 = vadd.f32 %v249, %v250
  %v252 = vmul.f32 %v234, %v234
  %v253 = vmul.f32 %v235, %v235
  %v254 = vmul.f32 %v236, %v236
  %v255 = vmul.f32 %v237, %v237
  %v256 = vsel %vm238, %v252, 0.0
  %v257 = vsel %vm238, %v253, 0.0
  %v258 = vadd.f32 %v256, %v257
  %v259 = vsel %vm238, %v254, 0.0
  %v260 = vadd.f32 %v258, %v259
  %v261 = vsel %vm238, %v255, 0.0
  %v262 = vadd.f32 %v260, %v261
  %v263 = vrot.slane %v262, 4
  %v264 = vadd.f32 %v262, %v263
  %v265 = vrot.slane %v264, 2
  %v266 = vadd.f32 %v264, %v265
  %v267 = vrot.slane %v266, 1
  %v268 = vadd.f32 %v266, %v267
  %vm269 = vcmask 1040384
  %v270 = vsel %vm269, %v251, %v268
  %vm271 = vcmask 254976
  %272 = vst.msk [vmem:[%s4] sm:$0x3] %vm271, %v270
  // Predicated region
  $region14: #{dc_discriminator_forward.13} parent=0 // pred_check
    _
  $region15: #{dc_discriminator_forward.13} parent=0 // pred_check_branch
    %274 = sbr.rel (0) target = $region17
  $region16: #{dc_discriminator_forward.13} parent=0 // pred_region
    _
  $region17: #{dc_discriminator_forward.13} parent=0 // pred_fallthru
    _
  // Predicated region
  $region18: #{dc_discriminator_forward.13} parent=0 // pred_check
    _
  $region19: #{dc_discriminator_forward.13} parent=0 // pred_check_branch
    %276 = sbr.rel (0) target = $region21
  $region20: #{dc_discriminator_forward.13} parent=0 // pred_region
    _
  $region21: #{dc_discriminator_forward.13} parent=0 // pred_fallthru
    _
  // Predicated region
  $region22: #{dc_discriminator_forward.13} parent=0 // pred_check
    _
  $region23: #{dc_discriminator_forward.13} parent=0 // pred_check_branch
    %278 = sbr.rel (0) target = $region25
  $region24: #{dc_discriminator_forward.13} parent=0 // pred_region
    _
  $region25: #{dc_discriminator_forward.13} parent=0 // pred_fallthru
    _
  // Predicated region
  $region26: #{dc_discriminator_forward.13} parent=0 // pred_check
    _
  $region27: #{dc_discriminator_forward.13} parent=0 // pred_check_branch
    %280 = sbr.rel (0) target = $region29
  $region28: #{dc_discriminator_forward.13} parent=0 // pred_region
    _
  $region29: #{dc_discriminator_forward.13} parent=0 // pred_fallthru
    _

</llo_original>
